<compile_context>
chip_gen: v7x
topology: tpu7x:2x2x1
jax: 0.10.0
libtpu: 0.0.40
codegen_flags: <defaults>
</compile_context>

<pallas_src>
import jax
import jax.numpy as jnp
import numpy as np
from jax import lax
from jax.experimental import pallas as pl
from jax.experimental.pallas import tpu as pltpu

_BAND = 128  # lane width of one kh-band / one flattened-feature band


# --------------------------------------------------------------------------
# One-time host-side parameter preparation (layout folding).
# --------------------------------------------------------------------------

def _band_conv_weight(w, w_in, band=_BAND):
    """torch Conv2d weight [OC, IC, KH, KW] -> fused banded [KH*band, OW*OC].

    Activations are laid out as A[h, w*IC + ic] padded to `band` lanes; the
    kernel builds A_wide[oh, kh*band + l] = A[oh + kh, l] by a lane-aligned
    concatenation of KH row-shifted slices, so the conv is one MXU matmul:
        out[oh, ow*OC + oc] = (A_wide @ wb)[oh, ow*OC + oc].
    """
    w = np.asarray(w, dtype=np.float32)
    oc, ic, n_kh, n_kw = w.shape
    assert w_in * ic <= band
    ow = w_in - n_kw + 1
    wb = np.zeros((n_kh * band, ow * oc), np.float32)
    for kh in range(n_kh):
        for owi in range(ow):
            for kw in range(n_kw):
                wi = owi + kw
                r0 = kh * band + wi * ic
                wb[r0:r0 + ic, owi * oc:(owi + 1) * oc] = w[:, :, kh, kw].T
    return wb


def _pool_row_select(h_out):
    """0/1 matrices selecting even/odd rows: [h_out, 2*h_out]."""
    ev = np.zeros((h_out, 2 * h_out), np.float32)
    od = np.zeros((h_out, 2 * h_out), np.float32)
    for i in range(h_out):
        ev[i, 2 * i] = 1.0
        od[i, 2 * i + 1] = 1.0
    return ev, od


def _pool_col_select(w_out, c, out_lanes=_BAND):
    """0/1 matrices selecting even/odd spatial columns of the [.., w*c + ch]
    lane layout, output padded to `out_lanes` lanes: [2*w_out*c, out_lanes]."""
    assert w_out * c <= out_lanes
    ev = np.zeros((2 * w_out * c, out_lanes), np.float32)
    od = np.zeros((2 * w_out * c, out_lanes), np.float32)
    for j in range(w_out):
        for ch in range(c):
            ev[(2 * j) * c + ch, j * c + ch] = 1.0
            od[(2 * j + 1) * c + ch, j * c + ch] = 1.0
    return ev, od


_PARAM_ORDER = ("w1", "b1", "er1", "or1", "ec1", "oc1",
                "w2", "b2", "er2", "or2", "ec2", "oc2",
                "wf1", "bf1", "wf2", "bf2", "wf3", "bf3")


def prep_params(p):
    """One-time layout folding of torch-style parameters (host side, numpy)."""
    er1, or1 = _pool_row_select(14)
    ec1, oc1 = _pool_col_select(14, 6)
    er2, or2 = _pool_row_select(5)
    ec2, oc2 = _pool_col_select(5, 16)
    # fc1: fold torch's (c, h, w) flatten order + the banded 128-lane feature
    # layout into a single [5*128, 120] weight:
    #   wf1[h*128 + w*16 + c, n] = l1_w[n, c*25 + h*5 + w]  (rows >= 80 per band are 0)
    l1 = np.asarray(p["l1_w"], np.float32).reshape(120, 16, 5, 5)   # [n, c, h, w]
    wf1 = np.zeros((5, _BAND, 120), np.float32)
    wf1[:, :80, :] = np.transpose(l1, (2, 3, 1, 0)).reshape(5, 80, 120)
    vals = {
        "w1": _band_conv_weight(p["conv1_w"], w_in=32),             # [640, 168]
        "b1": np.tile(np.asarray(p["conv1_b"], np.float32), 28)[None, :],
        "er1": er1, "or1": or1, "ec1": ec1, "oc1": oc1,
        "w2": _band_conv_weight(p["conv2_w"], w_in=14),             # [640, 160]
        "b2": np.tile(np.asarray(p["conv2_b"], np.float32), 10)[None, :],
        "er2": er2, "or2": or2, "ec2": ec2, "oc2": oc2,
        "wf1": wf1.reshape(5 * _BAND, 120),                         # [640, 120]
        "bf1": np.asarray(p["l1_b"], np.float32)[None, :],
        "wf2": np.asarray(p["l2_w"], np.float32).T,                 # [120, 84]
        "bf2": np.asarray(p["l2_b"], np.float32)[None, :],
        "wf3": np.asarray(p["l3_w"], np.float32).T,                 # [84, 10]
        "bf3": np.asarray(p["l3_b"], np.float32)[None, :],
    }
    return {k: jnp.asarray(v) for k, v in vals.items()}


# --------------------------------------------------------------------------
# The fused Pallas kernel: one grid step = `bt` images.
# --------------------------------------------------------------------------

def _lenet_kernel(x_ref,
                  w1_ref, b1_ref, er1_ref, or1_ref, ec1_ref, oc1_ref,
                  w2_ref, b2_ref, er2_ref, or2_ref, ec2_ref, oc2_ref,
                  wf1_ref, bf1_ref, wf2_ref, bf2_ref, wf3_ref, bf3_ref,
                  out_ref, feat_ref):
    f32 = jnp.float32
    bt = x_ref.shape[0]

    def mm(a, b):
        return jnp.dot(a, b, preferred_element_type=f32)

    def per_image(b, carry):
        xb = x_ref[b]                                               # [32, 128]
        # conv1 (5x5 valid, 3->6): implicit im2col via a lane-aligned concat of
        # 5 row-shifted bands -> one wide-K MXU matmul; + bias + ReLU.
        a1 = jnp.concatenate([xb[kh:kh + 28, :] for kh in range(5)], axis=-1)
        c1 = jnp.maximum(mm(a1, w1_ref[...]) + b1_ref[...], 0.0)    # [28, 168]
        # 2x2 maxpool via exact 0/1 selection matmuls -> [14, 128] (84 real lanes)
        r1 = jnp.maximum(mm(er1_ref[...], c1), mm(or1_ref[...], c1))
        p1 = jnp.maximum(mm(r1, ec1_ref[...]), mm(r1, oc1_ref[...]))
        # conv2 (5x5 valid, 6->16), same wide-K trick; + bias + ReLU.
        a2 = jnp.concatenate([p1[kh:kh + 10, :] for kh in range(5)], axis=-1)
        c2 = jnp.maximum(mm(a2, w2_ref[...]) + b2_ref[...], 0.0)    # [10, 160]
        # 2x2 maxpool -> [5, 128] (80 real lanes)
        r2 = jnp.maximum(mm(er2_ref[...], c2), mm(or2_ref[...], c2))
        p2 = jnp.maximum(mm(r2, ec2_ref[...]), mm(r2, oc2_ref[...]))
        # Flatten to one lane-aligned [1, 640] feature row for the batched head.
        feat_row = jnp.concatenate([p2[i:i + 1, :] for i in range(5)], axis=-1)
        feat_ref[pl.ds(b, 1), :] = feat_row
        return carry

    lax.fori_loop(0, bt, per_image, 0)

    # Batched FC head (torch (c,h,w) flatten order is folded into wf1).
    h = jnp.maximum(mm(feat_ref[...], wf1_ref[...]) + bf1_ref[...], 0.0)
    h = jnp.maximum(mm(h, wf2_ref[...]) + bf2_ref[...], 0.0)
    logits = mm(h, wf3_ref[...]) + bf3_ref[...]                     # [bt, 10]
    z = logits - jnp.max(logits, axis=-1, keepdims=True)
    e = jnp.exp(z)
    out_ref[...] = e * pl.reciprocal(jnp.sum(e, axis=-1, keepdims=True),
                                     approx=True)


def _const_index_map(ndim):
    zeros = (0,) * ndim
    return lambda i: zeros


def lenet_forward(x, pp, bt=32):
    """x: [B, 3, 32, 32] NCHW float32; pp: prep_params() output."""
    assert bt % 8 == 0, "bt must be a multiple of 8 (sublane tiling)"
    B = x.shape[0]
    g = pl.cdiv(B, bt)
    b_pad = g * bt
    # NCHW -> lane-dense [B, 32, w*3 + c]; pad lanes 96 -> 128 (aligned bands)
    # and pad the batch to a multiple of bt.  This is the only per-forward XLA
    # relayout; everything else happens in one pallas_call.
    xt = jnp.transpose(x, (0, 2, 3, 1)).reshape(B, 32, 96)
    x2 = jnp.pad(xt, ((0, b_pad - B), (0, 0), (0, _BAND - 96)))

    in_specs = [pl.BlockSpec((bt, 32, _BAND), lambda i: (i, 0, 0))]
    operands = [x2]
    for k in _PARAM_ORDER:
        a = pp[k]
        in_specs.append(pl.BlockSpec(a.shape, _const_index_map(a.ndim)))
        operands.append(a)

    out = pl.pallas_call(
        _lenet_kernel,
        out_shape=jax.ShapeDtypeStruct((b_pad, 10), jnp.float32),
        grid_spec=pltpu.PrefetchScalarGridSpec(
            num_scalar_prefetch=0,
            grid=(g,),
            in_specs=in_specs,
            out_specs=pl.BlockSpec((bt, 10), lambda i: (i, 0)),
            scratch_shapes=[pltpu.VMEM((bt, 5 * _BAND), jnp.float32)],
        ),
        compiler_params=pltpu.CompilerParams(
            dimension_semantics=("parallel",)),
    )(*operands)
    return out[:B]


# --------------------------------------------------------------------------
# Parameters + pure-JAX reference (for a sanity check).
# --------------------------------------------------------------------------

def init_params(key):
    ks = jax.random.split(key, 10)

    def rnd(k, shape, scale):
        return jax.random.normal(k, shape, jnp.float32) * scale

    return {
        "conv1_w": rnd(ks[0], (6, 3, 5, 5), 0.10),    # torch Conv2d(3, 6, 5)
        "conv1_b": rnd(ks[1], (6,), 0.10),
        "conv2_w": rnd(ks[2], (16, 6, 5, 5), 0.10),   # torch Conv2d(6, 16, 5)
        "conv2_b": rnd(ks[3], (16,), 0.10),
        "l1_w": rnd(ks[4], (120, 400), 0.05),         # torch Linear(400, 120)
        "l1_b": rnd(ks[5], (120,), 0.05),
        "l2_w": rnd(ks[6], (84, 120), 0.05),          # torch Linear(120, 84)
        "l2_b": rnd(ks[7], (84,), 0.05),
        "l3_w": rnd(ks[8], (10, 84), 0.05),           # torch Linear(84, 10)
        "l3_b": rnd(ks[9], (10,), 0.05),
    }


def lenet_reference(x, p):
    hp = jax.lax.Precision.HIGHEST
    dn = ("NCHW", "OIHW", "NCHW")
    y = jax.lax.conv_general_dilated(x, p["conv1_w"], (1, 1), "VALID",
                                     dimension_numbers=dn, precision=hp)
    y = jnp.maximum(y + p["conv1_b"].reshape(1, -1, 1, 1), 0.0)
    y = jax.lax.reduce_window(y, -jnp.inf, jax.lax.max,
                              (1, 1, 2, 2), (1, 1, 2, 2), "VALID")
    y = jax.lax.conv_general_dilated(y, p["conv2_w"], (1, 1), "VALID",
                                     dimension_numbers=dn, precision=hp)
    y = jnp.maximum(y + p["conv2_b"].reshape(1, -1, 1, 1), 0.0)
    y = jax.lax.reduce_window(y, -jnp.inf, jax.lax.max,
                              (1, 1, 2, 2), (1, 1, 2, 2), "VALID")
    y = y.reshape(y.shape[0], -1)                                  # (c,h,w) order
    y = jnp.maximum(jnp.dot(y, p["l1_w"].T, precision=hp) + p["l1_b"], 0.0)
    y = jnp.maximum(jnp.dot(y, p["l2_w"].T, precision=hp) + p["l2_b"], 0.0)
    logits = jnp.dot(y, p["l3_w"].T, precision=hp) + p["l3_b"]
    return jax.nn.softmax(logits, axis=1)


if __name__ == "__main__":
    key = jax.random.PRNGKey(0)
    pkey, xkey = jax.random.split(key)
    params = init_params(pkey)
    # Spatial 32x32 / 3 channels are fixed by the architecture (16*5*5 flatten).
    # B=20 with bt=8 exercises batch-tile padding and a multi-step parallel grid.
    B = 20
    x = jax.random.normal(xkey, (B, 3, 32, 32), jnp.float32)

    prepped = prep_params(params)                  # one-time weight prep
    fwd = jax.jit(lenet_forward, static_argnames=("bt",))
    out = jax.block_until_ready(fwd(x, prepped, bt=8))

    assert out.shape == (B, 10)
    assert out.dtype == jnp.float32
    assert bool(jnp.all(jnp.isfinite(out)))
    # softmax rows sum to 1 (approximate reciprocal in the denominator)
    assert bool(jnp.allclose(jnp.sum(out, axis=1), 1.0, atol=1e-2))
    # sanity check vs a pure-JAX reference (loose tol: MXU pass precision)
    ref = lenet_reference(x, params)
    assert bool(jnp.allclose(out, ref, atol=1e-2)), "mismatch vs reference"
    print("KERNEL_OK")
</pallas_src>

<mosaic_0001>
module attributes {stable_mosaic.version = 11 : i64} {
  func.func @_lenet_kernel(%arg0: i32, %arg1: memref<8x32x128xf32, #tpu.memory_space<vmem>>, %arg2: memref<640x168xf32, #tpu.memory_space<vmem>>, %arg3: memref<1x168xf32, #tpu.memory_space<vmem>>, %arg4: memref<14x28xf32, #tpu.memory_space<vmem>>, %arg5: memref<14x28xf32, #tpu.memory_space<vmem>>, %arg6: memref<168x128xf32, #tpu.memory_space<vmem>>, %arg7: memref<168x128xf32, #tpu.memory_space<vmem>>, %arg8: memref<640x160xf32, #tpu.memory_space<vmem>>, %arg9: memref<1x160xf32, #tpu.memory_space<vmem>>, %arg10: memref<5x10xf32, #tpu.memory_space<vmem>>, %arg11: memref<5x10xf32, #tpu.memory_space<vmem>>, %arg12: memref<160x128xf32, #tpu.memory_space<vmem>>, %arg13: memref<160x128xf32, #tpu.memory_space<vmem>>, %arg14: memref<640x120xf32, #tpu.memory_space<vmem>>, %arg15: memref<1x120xf32, #tpu.memory_space<vmem>>, %arg16: memref<120x84xf32, #tpu.memory_space<vmem>>, %arg17: memref<1x84xf32, #tpu.memory_space<vmem>>, %arg18: memref<84x10xf32, #tpu.memory_space<vmem>>, %arg19: memref<1x10xf32, #tpu.memory_space<vmem>>, %arg20: memref<8x10xf32, #tpu.memory_space<vmem>>, %arg21: memref<8x640xf32, #tpu.memory_space<vmem>>) attributes {dimension_semantics = [#tpu.dimension_semantics<parallel>], iteration_bounds = array<i64: 3>, scalar_prefetch = 0 : i64, scratch_operands = 1 : i64, tpu.core_type = #tpu.core_type<tc>, window_params = [{transform_indices = @transform_0, window_bounds = array<i64: 8, 32, 128>}, {pipeline_mode = #tpu.pipeline_mode<synchronous>, transform_indices = @transform_1, window_bounds = array<i64: 640, 168>}, {pipeline_mode = #tpu.pipeline_mode<synchronous>, transform_indices = @transform_2, window_bounds = array<i64: 1, 168>}, {pipeline_mode = #tpu.pipeline_mode<synchronous>, transform_indices = @transform_3, window_bounds = array<i64: 14, 28>}, {pipeline_mode = #tpu.pipeline_mode<synchronous>, transform_indices = @transform_4, window_bounds = array<i64: 14, 28>}, {pipeline_mode = #tpu.pipeline_mode<synchronous>, transform_indices = @transform_5, window_bounds = array<i64: 168, 128>}, {pipeline_mode = #tpu.pipeline_mode<synchronous>, transform_indices = @transform_6, window_bounds = array<i64: 168, 128>}, {pipeline_mode = #tpu.pipeline_mode<synchronous>, transform_indices = @transform_7, window_bounds = array<i64: 640, 160>}, {pipeline_mode = #tpu.pipeline_mode<synchronous>, transform_indices = @transform_8, window_bounds = array<i64: 1, 160>}, {pipeline_mode = #tpu.pipeline_mode<synchronous>, transform_indices = @transform_9, window_bounds = array<i64: 5, 10>}, {pipeline_mode = #tpu.pipeline_mode<synchronous>, transform_indices = @transform_10, window_bounds = array<i64: 5, 10>}, {pipeline_mode = #tpu.pipeline_mode<synchronous>, transform_indices = @transform_11, window_bounds = array<i64: 160, 128>}, {pipeline_mode = #tpu.pipeline_mode<synchronous>, transform_indices = @transform_12, window_bounds = array<i64: 160, 128>}, {pipeline_mode = #tpu.pipeline_mode<synchronous>, transform_indices = @transform_13, window_bounds = array<i64: 640, 120>}, {pipeline_mode = #tpu.pipeline_mode<synchronous>, transform_indices = @transform_14, window_bounds = array<i64: 1, 120>}, {pipeline_mode = #tpu.pipeline_mode<synchronous>, transform_indices = @transform_15, window_bounds = array<i64: 120, 84>}, {pipeline_mode = #tpu.pipeline_mode<synchronous>, transform_indices = @transform_16, window_bounds = array<i64: 1, 84>}, {pipeline_mode = #tpu.pipeline_mode<synchronous>, transform_indices = @transform_17, window_bounds = array<i64: 84, 10>}, {pipeline_mode = #tpu.pipeline_mode<synchronous>, transform_indices = @transform_18, window_bounds = array<i64: 1, 10>}, {transform_indices = @transform_19, window_bounds = array<i64: 8, 10>}]} {
    %c0_i32 = arith.constant 0 : i32
    %c8_i32 = arith.constant 8 : i32
    %0 = arith.addi %c0_i32, %c8_i32 : i32
    %c1_i32 = arith.constant 1 : i32
    scf.for %arg22 = %c0_i32 to %0 step %c1_i32  : i32 {
      %32 = arith.index_cast %arg22 : i32 to index
      %c0_22 = arith.constant 0 : index
      %c0_23 = arith.constant 0 : index
      %33 = vector.load %arg1[%32, %c0_22, %c0_23] : memref<8x32x128xf32, #tpu.memory_space<vmem>>, vector<1x32x128xf32>
      %34 = vector.shape_cast %33 : vector<1x32x128xf32> to vector<32x128xf32>
      %35 = vector.extract_strided_slice %34 {offsets = [0, 0], sizes = [28, 128], strides = [1, 1]} : vector<32x128xf32> to vector<28x128xf32>
      %36 = vector.extract_strided_slice %34 {offsets = [1, 0], sizes = [28, 128], strides = [1, 1]} : vector<32x128xf32> to vector<28x128xf32>
      %37 = vector.extract_strided_slice %34 {offsets = [2, 0], sizes = [28, 128], strides = [1, 1]} : vector<32x128xf32> to vector<28x128xf32>
      %38 = vector.extract_strided_slice %34 {offsets = [3, 0], sizes = [28, 128], strides = [1, 1]} : vector<32x128xf32> to vector<28x128xf32>
      %39 = vector.extract_strided_slice %34 {offsets = [4, 0], sizes = [28, 128], strides = [1, 1]} : vector<32x128xf32> to vector<28x128xf32>
      %40 = tpu.concatenate %35, %36, %37, %38, %39 in 1 : vector<28x128xf32>, vector<28x128xf32>, vector<28x128xf32>, vector<28x128xf32>, vector<28x128xf32> -> vector<28x640xf32>
      %c0_24 = arith.constant 0 : index
      %c0_25 = arith.constant 0 : index
      %41 = vector.load %arg2[%c0_24, %c0_25] : memref<640x168xf32, #tpu.memory_space<vmem>>, vector<640x168xf32>
      %cst_26 = arith.constant dense<0.000000e+00> : vector<28x168xf32>
      %42 = tpu.matmul %40, %41, %cst_26 {dimension_numbers = #tpu.dot_dimension_numbers<[1], [0], [0], [1], [0, 0, 1, 1], [], []>} : vector<28x640xf32>, vector<640x168xf32>, vector<28x168xf32> -> vector<28x168xf32>
      %c0_27 = arith.constant 0 : index
      %c0_28 = arith.constant 0 : index
      %43 = vector.load %arg3[%c0_27, %c0_28] : memref<1x168xf32, #tpu.memory_space<vmem>>, vector<1x168xf32>
      %44 = vector.broadcast %43 : vector<1x168xf32> to vector<28x168xf32>
      %45 = arith.addf %42, %44 : vector<28x168xf32>
      %cst_29 = arith.constant 0.000000e+00 : f32
      %46 = vector.broadcast %cst_29 : f32 to vector<28x168xf32>
      %47 = arith.maximumf %45, %46 : vector<28x168xf32>
      %c0_30 = arith.constant 0 : index
      %c0_31 = arith.constant 0 : index
      %48 = vector.load %arg4[%c0_30, %c0_31] : memref<14x28xf32, #tpu.memory_space<vmem>>, vector<14x28xf32>
      %cst_32 = arith.constant dense<0.000000e+00> : vector<14x168xf32>
      %49 = tpu.matmul %48, %47, %cst_32 {dimension_numbers = #tpu.dot_dimension_numbers<[1], [0], [0], [1], [0, 0, 1, 1], [], []>} : vector<14x28xf32>, vector<28x168xf32>, vector<14x168xf32> -> vector<14x168xf32>
      %c0_33 = arith.constant 0 : index
      %c0_34 = arith.constant 0 : index
      %50 = vector.load %arg5[%c0_33, %c0_34] : memref<14x28xf32, #tpu.memory_space<vmem>>, vector<14x28xf32>
      %cst_35 = arith.constant dense<0.000000e+00> : vector<14x168xf32>
      %51 = tpu.matmul %50, %47, %cst_35 {dimension_numbers = #tpu.dot_dimension_numbers<[1], [0], [0], [1], [0, 0, 1, 1], [], []>} : vector<14x28xf32>, vector<28x168xf32>, vector<14x168xf32> -> vector<14x168xf32>
      %52 = arith.maximumf %49, %51 : vector<14x168xf32>
      %c0_36 = arith.constant 0 : index
      %c0_37 = arith.constant 0 : index
      %53 = vector.load %arg6[%c0_36, %c0_37] : memref<168x128xf32, #tpu.memory_space<vmem>>, vector<168x128xf32>
      %cst_38 = arith.constant dense<0.000000e+00> : vector<14x128xf32>
      %54 = tpu.matmul %52, %53, %cst_38 {dimension_numbers = #tpu.dot_dimension_numbers<[1], [0], [0], [1], [0, 0, 1, 1], [], []>} : vector<14x168xf32>, vector<168x128xf32>, vector<14x128xf32> -> vector<14x128xf32>
      %c0_39 = arith.constant 0 : index
      %c0_40 = arith.constant 0 : index
      %55 = vector.load %arg7[%c0_39, %c0_40] : memref<168x128xf32, #tpu.memory_space<vmem>>, vector<168x128xf32>
      %cst_41 = arith.constant dense<0.000000e+00> : vector<14x128xf32>
      %56 = tpu.matmul %52, %55, %cst_41 {dimension_numbers = #tpu.dot_dimension_numbers<[1], [0], [0], [1], [0, 0, 1, 1], [], []>} : vector<14x168xf32>, vector<168x128xf32>, vector<14x128xf32> -> vector<14x128xf32>
      %57 = arith.maximumf %54, %56 : vector<14x128xf32>
      %58 = vector.extract_strided_slice %57 {offsets = [0, 0], sizes = [10, 128], strides = [1, 1]} : vector<14x128xf32> to vector<10x128xf32>
      %59 = vector.extract_strided_slice %57 {offsets = [1, 0], sizes = [10, 128], strides = [1, 1]} : vector<14x128xf32> to vector<10x128xf32>
      %60 = vector.extract_strided_slice %57 {offsets = [2, 0], sizes = [10, 128], strides = [1, 1]} : vector<14x128xf32> to vector<10x128xf32>
      %61 = vector.extract_strided_slice %57 {offsets = [3, 0], sizes = [10, 128], strides = [1, 1]} : vector<14x128xf32> to vector<10x128xf32>
      %62 = vector.extract_strided_slice %57 {offsets = [4, 0], sizes = [10, 128], strides = [1, 1]} : vector<14x128xf32> to vector<10x128xf32>
      %63 = tpu.concatenate %58, %59, %60, %61, %62 in 1 : vector<10x128xf32>, vector<10x128xf32>, vector<10x128xf32>, vector<10x128xf32>, vector<10x128xf32> -> vector<10x640xf32>
      %c0_42 = arith.constant 0 : index
      %c0_43 = arith.constant 0 : index
      %64 = vector.load %arg8[%c0_42, %c0_43] : memref<640x160xf32, #tpu.memory_space<vmem>>, vector<640x160xf32>
      %cst_44 = arith.constant dense<0.000000e+00> : vector<10x160xf32>
      %65 = tpu.matmul %63, %64, %cst_44 {dimension_numbers = #tpu.dot_dimension_numbers<[1], [0], [0], [1], [0, 0, 1, 1], [], []>} : vector<10x640xf32>, vector<640x160xf32>, vector<10x160xf32> -> vector<10x160xf32>
      %c0_45 = arith.constant 0 : index
      %c0_46 = arith.constant 0 : index
      %66 = vector.load %arg9[%c0_45, %c0_46] : memref<1x160xf32, #tpu.memory_space<vmem>>, vector<1x160xf32>
      %67 = vector.broadcast %66 : vector<1x160xf32> to vector<10x160xf32>
      %68 = arith.addf %65, %67 : vector<10x160xf32>
      %cst_47 = arith.constant 0.000000e+00 : f32
      %69 = vector.broadcast %cst_47 : f32 to vector<10x160xf32>
      %70 = arith.maximumf %68, %69 : vector<10x160xf32>
      %c0_48 = arith.constant 0 : index
      %c0_49 = arith.constant 0 : index
      %71 = vector.load %arg10[%c0_48, %c0_49] : memref<5x10xf32, #tpu.memory_space<vmem>>, vector<5x10xf32>
      %cst_50 = arith.constant dense<0.000000e+00> : vector<5x160xf32>
      %72 = tpu.matmul %71, %70, %cst_50 {dimension_numbers = #tpu.dot_dimension_numbers<[1], [0], [0], [1], [0, 0, 1, 1], [], []>} : vector<5x10xf32>, vector<10x160xf32>, vector<5x160xf32> -> vector<5x160xf32>
      %c0_51 = arith.constant 0 : index
      %c0_52 = arith.constant 0 : index
      %73 = vector.load %arg11[%c0_51, %c0_52] : memref<5x10xf32, #tpu.memory_space<vmem>>, vector<5x10xf32>
      %cst_53 = arith.constant dense<0.000000e+00> : vector<5x160xf32>
      %74 = tpu.matmul %73, %70, %cst_53 {dimension_numbers = #tpu.dot_dimension_numbers<[1], [0], [0], [1], [0, 0, 1, 1], [], []>} : vector<5x10xf32>, vector<10x160xf32>, vector<5x160xf32> -> vector<5x160xf32>
      %75 = arith.maximumf %72, %74 : vector<5x160xf32>
      %c0_54 = arith.constant 0 : index
      %c0_55 = arith.constant 0 : index
      %76 = vector.load %arg12[%c0_54, %c0_55] : memref<160x128xf32, #tpu.memory_space<vmem>>, vector<160x128xf32>
      %cst_56 = arith.constant dense<0.000000e+00> : vector<5x128xf32>
      %77 = tpu.matmul %75, %76, %cst_56 {dimension_numbers = #tpu.dot_dimension_numbers<[1], [0], [0], [1], [0, 0, 1, 1], [], []>} : vector<5x160xf32>, vector<160x128xf32>, vector<5x128xf32> -> vector<5x128xf32>
      %c0_57 = arith.constant 0 : index
      %c0_58 = arith.constant 0 : index
      %78 = vector.load %arg13[%c0_57, %c0_58] : memref<160x128xf32, #tpu.memory_space<vmem>>, vector<160x128xf32>
      %cst_59 = arith.constant dense<0.000000e+00> : vector<5x128xf32>
      %79 = tpu.matmul %75, %78, %cst_59 {dimension_numbers = #tpu.dot_dimension_numbers<[1], [0], [0], [1], [0, 0, 1, 1], [], []>} : vector<5x160xf32>, vector<160x128xf32>, vector<5x128xf32> -> vector<5x128xf32>
      %80 = arith.maximumf %77, %79 : vector<5x128xf32>
      %81 = vector.extract_strided_slice %80 {offsets = [0, 0], sizes = [1, 128], strides = [1, 1]} : vector<5x128xf32> to vector<1x128xf32>
      %82 = vector.extract_strided_slice %80 {offsets = [1, 0], sizes = [1, 128], strides = [1, 1]} : vector<5x128xf32> to vector<1x128xf32>
      %83 = vector.extract_strided_slice %80 {offsets = [2, 0], sizes = [1, 128], strides = [1, 1]} : vector<5x128xf32> to vector<1x128xf32>
      %84 = vector.extract_strided_slice %80 {offsets = [3, 0], sizes = [1, 128], strides = [1, 1]} : vector<5x128xf32> to vector<1x128xf32>
      %85 = vector.extract_strided_slice %80 {offsets = [4, 0], sizes = [1, 128], strides = [1, 1]} : vector<5x128xf32> to vector<1x128xf32>
      %86 = tpu.concatenate %81, %82, %83, %84, %85 in 1 : vector<1x128xf32>, vector<1x128xf32>, vector<1x128xf32>, vector<1x128xf32>, vector<1x128xf32> -> vector<1x640xf32>
      %87 = arith.index_cast %arg22 : i32 to index
      %c0_60 = arith.constant 0 : index
      %88 = vector.load %arg21[%87, %c0_60] : memref<8x640xf32, #tpu.memory_space<vmem>>, vector<1x640xf32>
      tpu.vector_store %arg21[%87, %c0_60], %86 {strides = array<i32>} : memref<8x640xf32, #tpu.memory_space<vmem>>, vector<1x640xf32>,
    }
    %c8_i32_0 = arith.constant 8 : i32
    %c0 = arith.constant 0 : index
    %c0_1 = arith.constant 0 : index
    %1 = vector.load %arg21[%c0, %c0_1] : memref<8x640xf32, #tpu.memory_space<vmem>>, vector<8x640xf32>
    %c0_2 = arith.constant 0 : index
    %c0_3 = arith.constant 0 : index
    %2 = vector.load %arg14[%c0_2, %c0_3] : memref<640x120xf32, #tpu.memory_space<vmem>>, vector<640x120xf32>
    %cst = arith.constant dense<0.000000e+00> : vector<8x120xf32>
    %3 = tpu.matmul %1, %2, %cst {dimension_numbers = #tpu.dot_dimension_numbers<[1], [0], [0], [1], [0, 0, 1, 1], [], []>} : vector<8x640xf32>, vector<640x120xf32>, vector<8x120xf32> -> vector<8x120xf32>
    %c0_4 = arith.constant 0 : index
    %c0_5 = arith.constant 0 : index
    %4 = vector.load %arg15[%c0_4, %c0_5] : memref<1x120xf32, #tpu.memory_space<vmem>>, vector<1x120xf32>
    %5 = vector.broadcast %4 : vector<1x120xf32> to vector<8x120xf32>
    %6 = arith.addf %3, %5 : vector<8x120xf32>
    %cst_6 = arith.constant 0.000000e+00 : f32
    %7 = vector.broadcast %cst_6 : f32 to vector<8x120xf32>
    %8 = arith.maximumf %6, %7 : vector<8x120xf32>
    %c0_7 = arith.constant 0 : index
    %c0_8 = arith.constant 0 : index
    %9 = vector.load %arg16[%c0_7, %c0_8] : memref<120x84xf32, #tpu.memory_space<vmem>>, vector<120x84xf32>
    %cst_9 = arith.constant dense<0.000000e+00> : vector<8x84xf32>
    %10 = tpu.matmul %8, %9, %cst_9 {dimension_numbers = #tpu.dot_dimension_numbers<[1], [0], [0], [1], [0, 0, 1, 1], [], []>} : vector<8x120xf32>, vector<120x84xf32>, vector<8x84xf32> -> vector<8x84xf32>
    %c0_10 = arith.constant 0 : index
    %c0_11 = arith.constant 0 : index
    %11 = vector.load %arg17[%c0_10, %c0_11] : memref<1x84xf32, #tpu.memory_space<vmem>>, vector<1x84xf32>
    %12 = vector.broadcast %11 : vector<1x84xf32> to vector<8x84xf32>
    %13 = arith.addf %10, %12 : vector<8x84xf32>
    %cst_12 = arith.constant 0.000000e+00 : f32
    %14 = vector.broadcast %cst_12 : f32 to vector<8x84xf32>
    %15 = arith.maximumf %13, %14 : vector<8x84xf32>
    %c0_13 = arith.constant 0 : index
    %c0_14 = arith.constant 0 : index
    %16 = vector.load %arg18[%c0_13, %c0_14] : memref<84x10xf32, #tpu.memory_space<vmem>>, vector<84x10xf32>
    %cst_15 = arith.constant dense<0.000000e+00> : vector<8x10xf32>
    %17 = tpu.matmul %15, %16, %cst_15 {dimension_numbers = #tpu.dot_dimension_numbers<[1], [0], [0], [1], [0, 0, 1, 1], [], []>} : vector<8x84xf32>, vector<84x10xf32>, vector<8x10xf32> -> vector<8x10xf32>
    %c0_16 = arith.constant 0 : index
    %c0_17 = arith.constant 0 : index
    %18 = vector.load %arg19[%c0_16, %c0_17] : memref<1x10xf32, #tpu.memory_space<vmem>>, vector<1x10xf32>
    %19 = vector.broadcast %18 : vector<1x10xf32> to vector<8x10xf32>
    %20 = arith.addf %17, %19 : vector<8x10xf32>
    %cst_18 = arith.constant dense<0xFF800000> : vector<8xf32>
    %21 = vector.multi_reduction <maximumf>, %20, %cst_18 [1] : vector<8x10xf32> to vector<8xf32>
    %22 = vector.shape_cast %21 : vector<8xf32> to vector<8x1xf32>
    %23 = vector.broadcast %22 : vector<8x1xf32> to vector<8x10xf32>
    %24 = arith.subf %20, %23 : vector<8x10xf32>
    %25 = math.exp %24 : vector<8x10xf32>
    %cst_19 = arith.constant dense<0.000000e+00> : vector<8xf32>
    %26 = vector.multi_reduction <add>, %25, %cst_19 [1] : vector<8x10xf32> to vector<8xf32>
    %27 = vector.shape_cast %26 : vector<8xf32> to vector<8x1xf32>
    %28 = tpu.reciprocal %27 {approx = true} : vector<8x1xf32> -> vector<8x1xf32>
    %29 = vector.broadcast %28 : vector<8x1xf32> to vector<8x10xf32>
    %30 = arith.mulf %25, %29 : vector<8x10xf32>
    %c0_20 = arith.constant 0 : index
    %c0_21 = arith.constant 0 : index
    %31 = vector.load %arg20[%c0_20, %c0_21] : memref<8x10xf32, #tpu.memory_space<vmem>>, vector<8x10xf32>
    tpu.vector_store %arg20[%c0_20, %c0_21], %30 {strides = array<i32>} : memref<8x10xf32, #tpu.memory_space<vmem>>, vector<8x10xf32>,
    return
  }
  func.func @transform_0(%arg0: i32) -> (i32, i32, i32) {
    %c0_i32 = arith.constant 0 : i32
    %c0_i32_0 = arith.constant 0 : i32
    %c0_i32_1 = arith.constant 0 : i32
    return %arg0, %c0_i32, %c0_i32_0 : i32, i32, i32
  }
  func.func @transform_1(%arg0: i32) -> (i32, i32) {
    %c0_i32 = arith.constant 0 : i32
    %c0_i32_0 = arith.constant 0 : i32
    %c0_i32_1 = arith.constant 0 : i32
    return %c0_i32, %c0_i32_0 : i32, i32
  }
  func.func @transform_2(%arg0: i32) -> (i32, i32) {
    %c0_i32 = arith.constant 0 : i32
    %c0_i32_0 = arith.constant 0 : i32
    %c0_i32_1 = arith.constant 0 : i32
    return %c0_i32, %c0_i32_0 : i32, i32
  }
  func.func @transform_3(%arg0: i32) -> (i32, i32) {
    %c0_i32 = arith.constant 0 : i32
    %c0_i32_0 = arith.constant 0 : i32
    %c0_i32_1 = arith.constant 0 : i32
    return %c0_i32, %c0_i32_0 : i32, i32
  }
  func.func @transform_4(%arg0: i32) -> (i32, i32) {
    %c0_i32 = arith.constant 0 : i32
    %c0_i32_0 = arith.constant 0 : i32
    %c0_i32_1 = arith.constant 0 : i32
    return %c0_i32, %c0_i32_0 : i32, i32
  }
  func.func @transform_5(%arg0: i32) -> (i32, i32) {
    %c0_i32 = arith.constant 0 : i32
    %c0_i32_0 = arith.constant 0 : i32
    %c0_i32_1 = arith.constant 0 : i32
    return %c0_i32, %c0_i32_0 : i32, i32
  }
  func.func @transform_6(%arg0: i32) -> (i32, i32) {
    %c0_i32 = arith.constant 0 : i32
    %c0_i32_0 = arith.constant 0 : i32
    %c0_i32_1 = arith.constant 0 : i32
    return %c0_i32, %c0_i32_0 : i32, i32
  }
  func.func @transform_7(%arg0: i32) -> (i32, i32) {
    %c0_i32 = arith.constant 0 : i32
    %c0_i32_0 = arith.constant 0 : i32
    %c0_i32_1 = arith.constant 0 : i32
    return %c0_i32, %c0_i32_0 : i32, i32
  }
  func.func @transform_8(%arg0: i32) -> (i32, i32) {
    %c0_i32 = arith.constant 0 : i32
    %c0_i32_0 = arith.constant 0 : i32
    %c0_i32_1 = arith.constant 0 : i32
    return %c0_i32, %c0_i32_0 : i32, i32
  }
  func.func @transform_9(%arg0: i32) -> (i32, i32) {
    %c0_i32 = arith.constant 0 : i32
    %c0_i32_0 = arith.constant 0 : i32
    %c0_i32_1 = arith.constant 0 : i32
    return %c0_i32, %c0_i32_0 : i32, i32
  }
  func.func @transform_10(%arg0: i32) -> (i32, i32) {
    %c0_i32 = arith.constant 0 : i32
    %c0_i32_0 = arith.constant 0 : i32
    %c0_i32_1 = arith.constant 0 : i32
    return %c0_i32, %c0_i32_0 : i32, i32
  }
  func.func @transform_11(%arg0: i32) -> (i32, i32) {
    %c0_i32 = arith.constant 0 : i32
    %c0_i32_0 = arith.constant 0 : i32
    %c0_i32_1 = arith.constant 0 : i32
    return %c0_i32, %c0_i32_0 : i32, i32
  }
  func.func @transform_12(%arg0: i32) -> (i32, i32) {
    %c0_i32 = arith.constant 0 : i32
    %c0_i32_0 = arith.constant 0 : i32
    %c0_i32_1 = arith.constant 0 : i32
    return %c0_i32, %c0_i32_0 : i32, i32
  }
  func.func @transform_13(%arg0: i32) -> (i32, i32) {
    %c0_i32 = arith.constant 0 : i32
    %c0_i32_0 = arith.constant 0 : i32
    %c0_i32_1 = arith.constant 0 : i32
    return %c0_i32, %c0_i32_0 : i32, i32
  }
  func.func @transform_14(%arg0: i32) -> (i32, i32) {
    %c0_i32 = arith.constant 0 : i32
    %c0_i32_0 = arith.constant 0 : i32
    %c0_i32_1 = arith.constant 0 : i32
    return %c0_i32, %c0_i32_0 : i32, i32
  }
  func.func @transform_15(%arg0: i32) -> (i32, i32) {
    %c0_i32 = arith.constant 0 : i32
    %c0_i32_0 = arith.constant 0 : i32
    %c0_i32_1 = arith.constant 0 : i32
    return %c0_i32, %c0_i32_0 : i32, i32
  }
  func.func @transform_16(%arg0: i32) -> (i32, i32) {
    %c0_i32 = arith.constant 0 : i32
    %c0_i32_0 = arith.constant 0 : i32
    %c0_i32_1 = arith.constant 0 : i32
    return %c0_i32, %c0_i32_0 : i32, i32
  }
  func.func @transform_17(%arg0: i32) -> (i32, i32) {
    %c0_i32 = arith.constant 0 : i32
    %c0_i32_0 = arith.constant 0 : i32
    %c0_i32_1 = arith.constant 0 : i32
    return %c0_i32, %c0_i32_0 : i32, i32
  }
  func.func @transform_18(%arg0: i32) -> (i32, i32) {
    %c0_i32 = arith.constant 0 : i32
    %c0_i32_0 = arith.constant 0 : i32
    %c0_i32_1 = arith.constant 0 : i32
    return %c0_i32, %c0_i32_0 : i32, i32
  }
  func.func @transform_19(%arg0: i32) -> (i32, i32) {
    %c0_i32 = arith.constant 0 : i32
    %c0_i32_0 = arith.constant 0 : i32
    return %arg0, %c0_i32 : i32, i32
  }
}

</mosaic_0001>

<llo_original>
// kernel: lenet_forward.1
$region0: #{lenet_forward.1}
  #allocation0 [shape = 'u32[]', space=smem, size = 0x4, offset = 0x4, fixed_abs, tag = 'smem constant byte address 0x4 - core index']
  #allocation1 [shape = 'u32[144,128]{1,0:T(1,128)}', space=vmem, size = 0x12000, scoped, tag = 'internal scratch']
  #allocation2 [shape = 'f32[8,640]{1,0:T(8,128)}', space=vmem, size = 0x5000, scoped, tag = 'scratch operand']
  %s0 = inlined_call_operand.vmem [shape: f32[24,32,128], index: 0, kind: input, shape index: {}]
  %s1 = inlined_call_operand.vmem [shape: f32[640,168], index: 1, kind: input, shape index: {}]
  %s2 = inlined_call_operand.vmem [shape: f32[1,168], index: 2, kind: input, shape index: {}]
  %s3 = inlined_call_operand.vmem [shape: f32[14,28], index: 3, kind: input, shape index: {}]
  %s4 = inlined_call_operand.vmem [shape: f32[14,28], index: 4, kind: input, shape index: {}]
  %s5 = inlined_call_operand.vmem [shape: f32[168,128], index: 5, kind: input, shape index: {}]
  %s6 = inlined_call_operand.vmem [shape: f32[168,128], index: 6, kind: input, shape index: {}]
  %s7 = inlined_call_operand.vmem [shape: f32[640,160], index: 7, kind: input, shape index: {}]
  %s8 = inlined_call_operand.vmem [shape: f32[1,160], index: 8, kind: input, shape index: {}]
  %s9 = inlined_call_operand.vmem [shape: f32[5,10], index: 9, kind: input, shape index: {}]
  %s10 = inlined_call_operand.vmem [shape: f32[5,10], index: 10, kind: input, shape index: {}]
  %s11 = inlined_call_operand.vmem [shape: f32[160,128], index: 11, kind: input, shape index: {}]
  %s12 = inlined_call_operand.vmem [shape: f32[160,128], index: 12, kind: input, shape index: {}]
  %s13 = inlined_call_operand.vmem [shape: f32[640,120], index: 13, kind: input, shape index: {}]
  %s14 = inlined_call_operand.vmem [shape: f32[1,120], index: 14, kind: input, shape index: {}]
  %s15 = inlined_call_operand.vmem [shape: f32[120,84], index: 15, kind: input, shape index: {}]
  %s16 = inlined_call_operand.vmem [shape: f32[1,84], index: 16, kind: input, shape index: {}]
  %s17 = inlined_call_operand.vmem [shape: f32[84,10], index: 17, kind: input, shape index: {}]
  %s18 = inlined_call_operand.vmem [shape: f32[1,10], index: 18, kind: input, shape index: {}]
  %s19 = inlined_call_operand.vmem [shape: f32[24,10], index: 19, kind: output, shape index: {}]
  %s20 = sld [smem:[#allocation0]]
  $region116: #{lenet_forward.1} parent=0
    _
  %s22 = ssub.s32 1, %s20
  %s23 = scalar_select 0, %s22, %s20
  loop: start=0, step=1, limit=5
  $region2: #{lenet_forward.1} parent=0 // loop_pre_header
    _
  $region3: #{lenet_forward.1} parent=0 // loop_header
    %s25 = sphi 0, %s29
    %p26 = scmp.ge.s32.totalorder %s25, 5
    %s35 = sphi 0, %s37
    %s38 = sphi 0, %s35
    %s39 = sphi 0, %s38
    %s55 = sphi 0, %s39
    %s59 = sphi 0, %s59
    %s61 = sphi 0, %s59
    %s62 = sphi 0, %s61
    %s76 = sphi 0, %s62
    %s80 = sphi 0, %s80
    %s82 = sphi 0, %s80
    %s83 = sphi 0, %s82
    %s97 = sphi 0, %s83
    %s101 = sphi 0, %s101
    %s103 = sphi 0, %s101
    %s104 = sphi 0, %s103
    %s118 = sphi 0, %s104
    %s122 = sphi 0, %s122
    %s124 = sphi 0, %s122
    %s125 = sphi 0, %s124
    %s139 = sphi 0, %s125
    %s143 = sphi 0, %s143
    %s145 = sphi 0, %s143
    %s146 = sphi 0, %s145
    %s160 = sphi 0, %s146
    %s164 = sphi 0, %s164
    %s166 = sphi 0, %s164
    %s167 = sphi 0, %s166
    %s181 = sphi 0, %s167
    %s185 = sphi 0, %s185
    %s187 = sphi 0, %s185
    %s188 = sphi 0, %s187
    %s202 = sphi 0, %s188
    %s206 = sphi 0, %s206
    %s208 = sphi 0, %s206
    %s209 = sphi 0, %s208
    %s223 = sphi 0, %s209
    %s227 = sphi 0, %s227
    %s229 = sphi 0, %s227
    %s230 = sphi 0, %s229
    %s244 = sphi 0, %s230
    %s248 = sphi 0, %s248
    %s250 = sphi 0, %s248
    %s251 = sphi 0, %s250
    %s265 = sphi 0, %s251
    %s269 = sphi 0, %s269
    %s271 = sphi 0, %s269
    %s272 = sphi 0, %s271
    %s286 = sphi 0, %s272
    %s290 = sphi 0, %s290
    %s292 = sphi 0, %s290
    %s293 = sphi 0, %s292
    %s307 = sphi 0, %s293
    %s311 = sphi 0, %s311
    %s313 = sphi 0, %s311
    %s314 = sphi 0, %s313
    %s328 = sphi 0, %s314
    %s332 = sphi 0, %s332
    %s334 = sphi 0, %s332
    %s335 = sphi 0, %s334
    %s349 = sphi 0, %s335
    %s353 = sphi 0, %s353
    %s355 = sphi 0, %s353
    %s356 = sphi 0, %s355
    %s370 = sphi 0, %s356
    %s374 = sphi 0, %s374
    %s376 = sphi 0, %s374
    %s377 = sphi 0, %s376
    %s391 = sphi 0, %s377
    %s395 = sphi 0, %s395
    %s397 = sphi 0, %s395
    %s398 = sphi 0, %s397
    %s412 = sphi 0, %s398
    %s416 = sphi 0, %s416
    %s418 = sphi 0, %s416
    %s419 = sphi 0, %s418
    %s433 = sphi 0, %s419
    %s439 = sphi 0, %s441
    %s442 = sphi 0, %s439
    %s443 = sphi 0, %s442
    %s459 = sphi 0, %s443
  $region4: #{lenet_forward.1} parent=0 // loop_header_branch
    %28 = sbr.rel (%p26) target = $region8
  $region5: #{lenet_forward.1} parent=0 // loop_body
    %s30 = ssub.s32 %s25, 1
    %s31 = ssub.s32 %s25, 2
    %s32 = sadd.s32 %s25, 1
    %s33 = ssub.s32 %s25, %s32
    %p34 = scmp.eq.s32.totalorder %s33, 0
    %s36 = sadd.s32 %s35, 1
    %s37 = scalar_select %p34, %s35, %s36
    %p40 = pneg %p34
    %p41 = scmp.eq.s32.totalorder %s25, 2
    %p42 = por %p40, %p41
    %p43 = scmp.ne.s32.totalorder %s35, %s38
    %p44 = scmp.eq.s32.totalorder %s25, 0
    %p45 = por %p43, %p44
    %p46 = scmp.ne.s32.totalorder %s35, %s38
    %p47 = scmp.eq.s32.totalorder %s30, 2
    %p48 = por %p46, %p47
    %p49 = scmp.ne.s32.totalorder %s38, %s39
    %p50 = scmp.eq.s32.totalorder %s30, 0
    %p51 = por %p49, %p50
    %p52 = scmp.ne.s32.totalorder %s38, %s39
    %p53 = scmp.eq.s32.totalorder %s31, 2
    %p54 = por %p52, %p53
    %p56 = scmp.ne.s32.totalorder %s39, %s55
    %p57 = scmp.eq.s32.totalorder %s31, 0
    %p58 = por %p56, %p57
    %s60 = sadd.s32 %s59, 1
    %p63 = scmp.eq.s32.totalorder %s25, 2
    %p64 = scmp.ne.s32.totalorder %s59, %s61
    %p65 = scmp.eq.s32.totalorder %s25, 0
    %p66 = por %p64, %p65
    %p67 = scmp.ne.s32.totalorder %s59, %s61
    %p68 = scmp.eq.s32.totalorder %s30, 2
    %p69 = por %p67, %p68
    %p70 = scmp.ne.s32.totalorder %s61, %s62
    %p71 = scmp.eq.s32.totalorder %s30, 0
    %p72 = por %p70, %p71
    %p73 = scmp.ne.s32.totalorder %s61, %s62
    %p74 = scmp.eq.s32.totalorder %s31, 2
    %p75 = por %p73, %p74
    %p77 = scmp.ne.s32.totalorder %s62, %s76
    %p78 = scmp.eq.s32.totalorder %s31, 0
    %p79 = por %p77, %p78
    %s81 = sadd.s32 %s80, 1
    %p84 = scmp.eq.s32.totalorder %s25, 2
    %p85 = scmp.ne.s32.totalorder %s80, %s82
    %p86 = scmp.eq.s32.totalorder %s25, 0
    %p87 = por %p85, %p86
    %p88 = scmp.ne.s32.totalorder %s80, %s82
    %p89 = scmp.eq.s32.totalorder %s30, 2
    %p90 = por %p88, %p89
    %p91 = scmp.ne.s32.totalorder %s82, %s83
    %p92 = scmp.eq.s32.totalorder %s30, 0
    %p93 = por %p91, %p92
    %p94 = scmp.ne.s32.totalorder %s82, %s83
    %p95 = scmp.eq.s32.totalorder %s31, 2
    %p96 = por %p94, %p95
    %p98 = scmp.ne.s32.totalorder %s83, %s97
    %p99 = scmp.eq.s32.totalorder %s31, 0
    %p100 = por %p98, %p99
    %s102 = sadd.s32 %s101, 1
    %p105 = scmp.eq.s32.totalorder %s25, 2
    %p106 = scmp.ne.s32.totalorder %s101, %s103
    %p107 = scmp.eq.s32.totalorder %s25, 0
    %p108 = por %p106, %p107
    %p109 = scmp.ne.s32.totalorder %s101, %s103
    %p110 = scmp.eq.s32.totalorder %s30, 2
    %p111 = por %p109, %p110
    %p112 = scmp.ne.s32.totalorder %s103, %s104
    %p113 = scmp.eq.s32.totalorder %s30, 0
    %p114 = por %p112, %p113
    %p115 = scmp.ne.s32.totalorder %s103, %s104
    %p116 = scmp.eq.s32.totalorder %s31, 2
    %p117 = por %p115, %p116
    %p119 = scmp.ne.s32.totalorder %s104, %s118
    %p120 = scmp.eq.s32.totalorder %s31, 0
    %p121 = por %p119, %p120
    %s123 = sadd.s32 %s122, 1
    %p126 = scmp.eq.s32.totalorder %s25, 2
    %p127 = scmp.ne.s32.totalorder %s122, %s124
    %p128 = scmp.eq.s32.totalorder %s25, 0
    %p129 = por %p127, %p128
    %p130 = scmp.ne.s32.totalorder %s122, %s124
    %p131 = scmp.eq.s32.totalorder %s30, 2
    %p132 = por %p130, %p131
    %p133 = scmp.ne.s32.totalorder %s124, %s125
    %p134 = scmp.eq.s32.totalorder %s30, 0
    %p135 = por %p133, %p134
    %p136 = scmp.ne.s32.totalorder %s124, %s125
    %p137 = scmp.eq.s32.totalorder %s31, 2
    %p138 = por %p136, %p137
    %p140 = scmp.ne.s32.totalorder %s125, %s139
    %p141 = scmp.eq.s32.totalorder %s31, 0
    %p142 = por %p140, %p141
    %s144 = sadd.s32 %s143, 1
    %p147 = scmp.eq.s32.totalorder %s25, 2
    %p148 = scmp.ne.s32.totalorder %s143, %s145
    %p149 = scmp.eq.s32.totalorder %s25, 0
    %p150 = por %p148, %p149
    %p151 = scmp.ne.s32.totalorder %s143, %s145
    %p152 = scmp.eq.s32.totalorder %s30, 2
    %p153 = por %p151, %p152
    %p154 = scmp.ne.s32.totalorder %s145, %s146
    %p155 = scmp.eq.s32.totalorder %s30, 0
    %p156 = por %p154, %p155
    %p157 = scmp.ne.s32.totalorder %s145, %s146
    %p158 = scmp.eq.s32.totalorder %s31, 2
    %p159 = por %p157, %p158
    %p161 = scmp.ne.s32.totalorder %s146, %s160
    %p162 = scmp.eq.s32.totalorder %s31, 0
    %p163 = por %p161, %p162
    %s165 = sadd.s32 %s164, 1
    %p168 = scmp.eq.s32.totalorder %s25, 2
    %p169 = scmp.ne.s32.totalorder %s164, %s166
    %p170 = scmp.eq.s32.totalorder %s25, 0
    %p171 = por %p169, %p170
    %p172 = scmp.ne.s32.totalorder %s164, %s166
    %p173 = scmp.eq.s32.totalorder %s30, 2
    %p174 = por %p172, %p173
    %p175 = scmp.ne.s32.totalorder %s166, %s167
    %p176 = scmp.eq.s32.totalorder %s30, 0
    %p177 = por %p175, %p176
    %p178 = scmp.ne.s32.totalorder %s166, %s167
    %p179 = scmp.eq.s32.totalorder %s31, 2
    %p180 = por %p178, %p179
    %p182 = scmp.ne.s32.totalorder %s167, %s181
    %p183 = scmp.eq.s32.totalorder %s31, 0
    %p184 = por %p182, %p183
    %s186 = sadd.s32 %s185, 1
    %p189 = scmp.eq.s32.totalorder %s25, 2
    %p190 = scmp.ne.s32.totalorder %s185, %s187
    %p191 = scmp.eq.s32.totalorder %s25, 0
    %p192 = por %p190, %p191
    %p193 = scmp.ne.s32.totalorder %s185, %s187
    %p194 = scmp.eq.s32.totalorder %s30, 2
    %p195 = por %p193, %p194
    %p196 = scmp.ne.s32.totalorder %s187, %s188
    %p197 = scmp.eq.s32.totalorder %s30, 0
    %p198 = por %p196, %p197
    %p199 = scmp.ne.s32.totalorder %s187, %s188
    %p200 = scmp.eq.s32.totalorder %s31, 2
    %p201 = por %p199, %p200
    %p203 = scmp.ne.s32.totalorder %s188, %s202
    %p204 = scmp.eq.s32.totalorder %s31, 0
    %p205 = por %p203, %p204
    %s207 = sadd.s32 %s206, 1
    %p210 = scmp.eq.s32.totalorder %s25, 2
    %p211 = scmp.ne.s32.totalorder %s206, %s208
    %p212 = scmp.eq.s32.totalorder %s25, 0
    %p213 = por %p211, %p212
    %p214 = scmp.ne.s32.totalorder %s206, %s208
    %p215 = scmp.eq.s32.totalorder %s30, 2
    %p216 = por %p214, %p215
    %p217 = scmp.ne.s32.totalorder %s208, %s209
    %p218 = scmp.eq.s32.totalorder %s30, 0
    %p219 = por %p217, %p218
    %p220 = scmp.ne.s32.totalorder %s208, %s209
    %p221 = scmp.eq.s32.totalorder %s31, 2
    %p222 = por %p220, %p221
    %p224 = scmp.ne.s32.totalorder %s209, %s223
    %p225 = scmp.eq.s32.totalorder %s31, 0
    %p226 = por %p224, %p225
    %s228 = sadd.s32 %s227, 1
    %p231 = scmp.eq.s32.totalorder %s25, 2
    %p232 = scmp.ne.s32.totalorder %s227, %s229
    %p233 = scmp.eq.s32.totalorder %s25, 0
    %p234 = por %p232, %p233
    %p235 = scmp.ne.s32.totalorder %s227, %s229
    %p236 = scmp.eq.s32.totalorder %s30, 2
    %p237 = por %p235, %p236
    %p238 = scmp.ne.s32.totalorder %s229, %s230
    %p239 = scmp.eq.s32.totalorder %s30, 0
    %p240 = por %p238, %p239
    %p241 = scmp.ne.s32.totalorder %s229, %s230
    %p242 = scmp.eq.s32.totalorder %s31, 2
    %p243 = por %p241, %p242
    %p245 = scmp.ne.s32.totalorder %s230, %s244
    %p246 = scmp.eq.s32.totalorder %s31, 0
    %p247 = por %p245, %p246
    %s249 = sadd.s32 %s248, 1
    %p252 = scmp.eq.s32.totalorder %s25, 2
    %p253 = scmp.ne.s32.totalorder %s248, %s250
    %p254 = scmp.eq.s32.totalorder %s25, 0
    %p255 = por %p253, %p254
    %p256 = scmp.ne.s32.totalorder %s248, %s250
    %p257 = scmp.eq.s32.totalorder %s30, 2
    %p258 = por %p256, %p257
    %p259 = scmp.ne.s32.totalorder %s250, %s251
    %p260 = scmp.eq.s32.totalorder %s30, 0
    %p261 = por %p259, %p260
    %p262 = scmp.ne.s32.totalorder %s250, %s251
    %p263 = scmp.eq.s32.totalorder %s31, 2
    %p264 = por %p262, %p263
    %p266 = scmp.ne.s32.totalorder %s251, %s265
    %p267 = scmp.eq.s32.totalorder %s31, 0
    %p268 = por %p266, %p267
    %s270 = sadd.s32 %s269, 1
    %p273 = scmp.eq.s32.totalorder %s25, 2
    %p274 = scmp.ne.s32.totalorder %s269, %s271
    %p275 = scmp.eq.s32.totalorder %s25, 0
    %p276 = por %p274, %p275
    %p277 = scmp.ne.s32.totalorder %s269, %s271
    %p278 = scmp.eq.s32.totalorder %s30, 2
    %p279 = por %p277, %p278
    %p280 = scmp.ne.s32.totalorder %s271, %s272
    %p281 = scmp.eq.s32.totalorder %s30, 0
    %p282 = por %p280, %p281
    %p283 = scmp.ne.s32.totalorder %s271, %s272
    %p284 = scmp.eq.s32.totalorder %s31, 2
    %p285 = por %p283, %p284
    %p287 = scmp.ne.s32.totalorder %s272, %s286
    %p288 = scmp.eq.s32.totalorder %s31, 0
    %p289 = por %p287, %p288
    %s291 = sadd.s32 %s290, 1
    %p294 = scmp.eq.s32.totalorder %s25, 2
    %p295 = scmp.ne.s32.totalorder %s290, %s292
    %p296 = scmp.eq.s32.totalorder %s25, 0
    %p297 = por %p295, %p296
    %p298 = scmp.ne.s32.totalorder %s290, %s292
    %p299 = scmp.eq.s32.totalorder %s30, 2
    %p300 = por %p298, %p299
    %p301 = scmp.ne.s32.totalorder %s292, %s293
    %p302 = scmp.eq.s32.totalorder %s30, 0
    %p303 = por %p301, %p302
    %p304 = scmp.ne.s32.totalorder %s292, %s293
    %p305 = scmp.eq.s32.totalorder %s31, 2
    %p306 = por %p304, %p305
    %p308 = scmp.ne.s32.totalorder %s293, %s307
    %p309 = scmp.eq.s32.totalorder %s31, 0
    %p310 = por %p308, %p309
    %s312 = sadd.s32 %s311, 1
    %p315 = scmp.eq.s32.totalorder %s25, 2
    %p316 = scmp.ne.s32.totalorder %s311, %s313
    %p317 = scmp.eq.s32.totalorder %s25, 0
    %p318 = por %p316, %p317
    %p319 = scmp.ne.s32.totalorder %s311, %s313
    %p320 = scmp.eq.s32.totalorder %s30, 2
    %p321 = por %p319, %p320
    %p322 = scmp.ne.s32.totalorder %s313, %s314
    %p323 = scmp.eq.s32.totalorder %s30, 0
    %p324 = por %p322, %p323
    %p325 = scmp.ne.s32.totalorder %s313, %s314
    %p326 = scmp.eq.s32.totalorder %s31, 2
    %p327 = por %p325, %p326
    %p329 = scmp.ne.s32.totalorder %s314, %s328
    %p330 = scmp.eq.s32.totalorder %s31, 0
    %p331 = por %p329, %p330
    %s333 = sadd.s32 %s332, 1
    %p336 = scmp.eq.s32.totalorder %s25, 2
    %p337 = scmp.ne.s32.totalorder %s332, %s334
    %p338 = scmp.eq.s32.totalorder %s25, 0
    %p339 = por %p337, %p338
    %p340 = scmp.ne.s32.totalorder %s332, %s334
    %p341 = scmp.eq.s32.totalorder %s30, 2
    %p342 = por %p340, %p341
    %p343 = scmp.ne.s32.totalorder %s334, %s335
    %p344 = scmp.eq.s32.totalorder %s30, 0
    %p345 = por %p343, %p344
    %p346 = scmp.ne.s32.totalorder %s334, %s335
    %p347 = scmp.eq.s32.totalorder %s31, 2
    %p348 = por %p346, %p347
    %p350 = scmp.ne.s32.totalorder %s335, %s349
    %p351 = scmp.eq.s32.totalorder %s31, 0
    %p352 = por %p350, %p351
    %s354 = sadd.s32 %s353, 1
    %p357 = scmp.eq.s32.totalorder %s25, 2
    %p358 = scmp.ne.s32.totalorder %s353, %s355
    %p359 = scmp.eq.s32.totalorder %s25, 0
    %p360 = por %p358, %p359
    %p361 = scmp.ne.s32.totalorder %s353, %s355
    %p362 = scmp.eq.s32.totalorder %s30, 2
    %p363 = por %p361, %p362
    %p364 = scmp.ne.s32.totalorder %s355, %s356
    %p365 = scmp.eq.s32.totalorder %s30, 0
    %p366 = por %p364, %p365
    %p367 = scmp.ne.s32.totalorder %s355, %s356
    %p368 = scmp.eq.s32.totalorder %s31, 2
    %p369 = por %p367, %p368
    %p371 = scmp.ne.s32.totalorder %s356, %s370
    %p372 = scmp.eq.s32.totalorder %s31, 0
    %p373 = por %p371, %p372
    %s375 = sadd.s32 %s374, 1
    %p378 = scmp.eq.s32.totalorder %s25, 2
    %p379 = scmp.ne.s32.totalorder %s374, %s376
    %p380 = scmp.eq.s32.totalorder %s25, 0
    %p381 = por %p379, %p380
    %p382 = scmp.ne.s32.totalorder %s374, %s376
    %p383 = scmp.eq.s32.totalorder %s30, 2
    %p384 = por %p382, %p383
    %p385 = scmp.ne.s32.totalorder %s376, %s377
    %p386 = scmp.eq.s32.totalorder %s30, 0
    %p387 = por %p385, %p386
    %p388 = scmp.ne.s32.totalorder %s376, %s377
    %p389 = scmp.eq.s32.totalorder %s31, 2
    %p390 = por %p388, %p389
    %p392 = scmp.ne.s32.totalorder %s377, %s391
    %p393 = scmp.eq.s32.totalorder %s31, 0
    %p394 = por %p392, %p393
    %s396 = sadd.s32 %s395, 1
    %p399 = scmp.eq.s32.totalorder %s25, 2
    %p400 = scmp.ne.s32.totalorder %s395, %s397
    %p401 = scmp.eq.s32.totalorder %s25, 0
    %p402 = por %p400, %p401
    %p403 = scmp.ne.s32.totalorder %s395, %s397
    %p404 = scmp.eq.s32.totalorder %s30, 2
    %p405 = por %p403, %p404
    %p406 = scmp.ne.s32.totalorder %s397, %s398
    %p407 = scmp.eq.s32.totalorder %s30, 0
    %p408 = por %p406, %p407
    %p409 = scmp.ne.s32.totalorder %s397, %s398
    %p410 = scmp.eq.s32.totalorder %s31, 2
    %p411 = por %p409, %p410
    %p413 = scmp.ne.s32.totalorder %s398, %s412
    %p414 = scmp.eq.s32.totalorder %s31, 0
    %p415 = por %p413, %p414
    %s417 = sadd.s32 %s416, 1
    %p420 = scmp.eq.s32.totalorder %s25, 2
    %p421 = scmp.ne.s32.totalorder %s416, %s418
    %p422 = scmp.eq.s32.totalorder %s25, 0
    %p423 = por %p421, %p422
    %p424 = scmp.ne.s32.totalorder %s416, %s418
    %p425 = scmp.eq.s32.totalorder %s30, 2
    %p426 = por %p424, %p425
    %p427 = scmp.ne.s32.totalorder %s418, %s419
    %p428 = scmp.eq.s32.totalorder %s30, 0
    %p429 = por %p427, %p428
    %p430 = scmp.ne.s32.totalorder %s418, %s419
    %p431 = scmp.eq.s32.totalorder %s31, 2
    %p432 = por %p430, %p431
    %p434 = scmp.ne.s32.totalorder %s419, %s433
    %p435 = scmp.eq.s32.totalorder %s31, 0
    %p436 = por %p434, %p435
    %s437 = ssub.s32 %s25, %s32
    %p438 = scmp.eq.s32.totalorder %s437, 0
    %s440 = sadd.s32 %s439, 1
    %s441 = scalar_select %p438, %s439, %s440
    %p444 = pneg %p438
    %p445 = scmp.eq.s32.totalorder %s25, 2
    %p446 = por %p444, %p445
    %p447 = scmp.ne.s32.totalorder %s439, %s442
    %p448 = scmp.eq.s32.totalorder %s25, 0
    %p449 = por %p447, %p448
    %p450 = scmp.ne.s32.totalorder %s439, %s442
    %p451 = scmp.eq.s32.totalorder %s30, 2
    %p452 = por %p450, %p451
    %p453 = scmp.ne.s32.totalorder %s442, %s443
    %p454 = scmp.eq.s32.totalorder %s30, 0
    %p455 = por %p453, %p454
    %p456 = scmp.ne.s32.totalorder %s442, %s443
    %p457 = scmp.eq.s32.totalorder %s31, 2
    %p458 = por %p456, %p457
    %p460 = scmp.ne.s32.totalorder %s443, %s459
    %p461 = scmp.eq.s32.totalorder %s31, 0
    %p462 = por %p460, %p461
    %p463 = scmp.le.s32.totalorder 1, %s25
    %p464 = scmp.lt.s32.totalorder %s25, 4
    %p465 = pnand %p463, %p464
    %p466 = pneg %p465
    // Predicated region
    $region9: #{lenet_forward.1} parent=5 // pred_check
      _
    $region10: #{lenet_forward.1} parent=5 // pred_check_branch
      %468 = sbr.rel (%p465) target = $region12
    $region11: #{lenet_forward.1} parent=5 // pred_region
      %s469 = ssub.s32 %s25, 1
      // Predicated region
      $region13: #{lenet_forward.1} parent=11 // pred_check
        %p470 = pneg %p72
      $region14: #{lenet_forward.1} parent=11 // pred_check_branch
        %472 = sbr.rel (%p470) target = $region16
      $region15: #{lenet_forward.1} parent=11 // pred_region
        _
      $region16: #{lenet_forward.1} parent=11 // pred_fallthru
        _
      // Predicated region
      $region17: #{lenet_forward.1} parent=11 // pred_check
        %p473 = pneg %p93
      $region18: #{lenet_forward.1} parent=11 // pred_check_branch
        %475 = sbr.rel (%p473) target = $region20
      $region19: #{lenet_forward.1} parent=11 // pred_region
        _
      $region20: #{lenet_forward.1} parent=11 // pred_fallthru
        _
      // Predicated region
      $region21: #{lenet_forward.1} parent=11 // pred_check
        %p476 = pneg %p114
      $region22: #{lenet_forward.1} parent=11 // pred_check_branch
        %478 = sbr.rel (%p476) target = $region24
      $region23: #{lenet_forward.1} parent=11 // pred_region
        _
      $region24: #{lenet_forward.1} parent=11 // pred_fallthru
        _
      // Predicated region
      $region25: #{lenet_forward.1} parent=11 // pred_check
        %p479 = pneg %p135
      $region26: #{lenet_forward.1} parent=11 // pred_check_branch
        %481 = sbr.rel (%p479) target = $region28
      $region27: #{lenet_forward.1} parent=11 // pred_region
        _
      $region28: #{lenet_forward.1} parent=11 // pred_fallthru
        _
      // Predicated region
      $region29: #{lenet_forward.1} parent=11 // pred_check
        %p482 = pneg %p156
      $region30: #{lenet_forward.1} parent=11 // pred_check_branch
        %484 = sbr.rel (%p482) target = $region32
      $region31: #{lenet_forward.1} parent=11 // pred_region
        _
      $region32: #{lenet_forward.1} parent=11 // pred_fallthru
        _
      // Predicated region
      $region33: #{lenet_forward.1} parent=11 // pred_check
        %p485 = pneg %p177
      $region34: #{lenet_forward.1} parent=11 // pred_check_branch
        %487 = sbr.rel (%p485) target = $region36
      $region35: #{lenet_forward.1} parent=11 // pred_region
        _
      $region36: #{lenet_forward.1} parent=11 // pred_fallthru
        _
      // Predicated region
      $region37: #{lenet_forward.1} parent=11 // pred_check
        %p488 = pneg %p198
      $region38: #{lenet_forward.1} parent=11 // pred_check_branch
        %490 = sbr.rel (%p488) target = $region40
      $region39: #{lenet_forward.1} parent=11 // pred_region
        _
      $region40: #{lenet_forward.1} parent=11 // pred_fallthru
        _
      // Predicated region
      $region41: #{lenet_forward.1} parent=11 // pred_check
        %p491 = pneg %p219
      $region42: #{lenet_forward.1} parent=11 // pred_check_branch
        %493 = sbr.rel (%p491) target = $region44
      $region43: #{lenet_forward.1} parent=11 // pred_region
        _
      $region44: #{lenet_forward.1} parent=11 // pred_fallthru
        _
      // Predicated region
      $region45: #{lenet_forward.1} parent=11 // pred_check
        %p494 = pneg %p240
      $region46: #{lenet_forward.1} parent=11 // pred_check_branch
        %496 = sbr.rel (%p494) target = $region48
      $region47: #{lenet_forward.1} parent=11 // pred_region
        _
      $region48: #{lenet_forward.1} parent=11 // pred_fallthru
        _
      // Predicated region
      $region49: #{lenet_forward.1} parent=11 // pred_check
        %p497 = pneg %p261
      $region50: #{lenet_forward.1} parent=11 // pred_check_branch
        %499 = sbr.rel (%p497) target = $region52
      $region51: #{lenet_forward.1} parent=11 // pred_region
        _
      $region52: #{lenet_forward.1} parent=11 // pred_fallthru
        _
      // Predicated region
      $region53: #{lenet_forward.1} parent=11 // pred_check
        %p500 = pneg %p282
      $region54: #{lenet_forward.1} parent=11 // pred_check_branch
        %502 = sbr.rel (%p500) target = $region56
      $region55: #{lenet_forward.1} parent=11 // pred_region
        _
      $region56: #{lenet_forward.1} parent=11 // pred_fallthru
        _
      // Predicated region
      $region57: #{lenet_forward.1} parent=11 // pred_check
        %p503 = pneg %p303
      $region58: #{lenet_forward.1} parent=11 // pred_check_branch
        %505 = sbr.rel (%p503) target = $region60
      $region59: #{lenet_forward.1} parent=11 // pred_region
        _
      $region60: #{lenet_forward.1} parent=11 // pred_fallthru
        _
      // Predicated region
      $region61: #{lenet_forward.1} parent=11 // pred_check
        %p506 = pneg %p324
      $region62: #{lenet_forward.1} parent=11 // pred_check_branch
        %508 = sbr.rel (%p506) target = $region64
      $region63: #{lenet_forward.1} parent=11 // pred_region
        _
      $region64: #{lenet_forward.1} parent=11 // pred_fallthru
        _
      // Predicated region
      $region65: #{lenet_forward.1} parent=11 // pred_check
        %p509 = pneg %p345
      $region66: #{lenet_forward.1} parent=11 // pred_check_branch
        %511 = sbr.rel (%p509) target = $region68
      $region67: #{lenet_forward.1} parent=11 // pred_region
        _
      $region68: #{lenet_forward.1} parent=11 // pred_fallthru
        _
      // Predicated region
      $region69: #{lenet_forward.1} parent=11 // pred_check
        %p512 = pneg %p366
      $region70: #{lenet_forward.1} parent=11 // pred_check_branch
        %514 = sbr.rel (%p512) target = $region72
      $region71: #{lenet_forward.1} parent=11 // pred_region
        _
      $region72: #{lenet_forward.1} parent=11 // pred_fallthru
        _
      // Predicated region
      $region73: #{lenet_forward.1} parent=11 // pred_check
        %p515 = pneg %p387
      $region74: #{lenet_forward.1} parent=11 // pred_check_branch
        %517 = sbr.rel (%p515) target = $region76
      $region75: #{lenet_forward.1} parent=11 // pred_region
        _
      $region76: #{lenet_forward.1} parent=11 // pred_fallthru
        _
      // Predicated region
      $region77: #{lenet_forward.1} parent=11 // pred_check
        %p518 = pneg %p408
      $region78: #{lenet_forward.1} parent=11 // pred_check_branch
        %520 = sbr.rel (%p518) target = $region80
      $region79: #{lenet_forward.1} parent=11 // pred_region
        _
      $region80: #{lenet_forward.1} parent=11 // pred_fallthru
        _
      // Predicated region
      $region81: #{lenet_forward.1} parent=11 // pred_check
        %p521 = pneg %p429
      $region82: #{lenet_forward.1} parent=11 // pred_check_branch
        %523 = sbr.rel (%p521) target = $region84
      $region83: #{lenet_forward.1} parent=11 // pred_region
        _
      $region84: #{lenet_forward.1} parent=11 // pred_fallthru
        _
    $region12: #{lenet_forward.1} parent=5 // pred_fallthru
      _
    %p524 = scmp.lt.s32.totalorder %s25, 3
    // Predicated region
    $region85: #{lenet_forward.1} parent=5 // pred_check
      %p525 = pneg %p524
    $region86: #{lenet_forward.1} parent=5 // pred_check_branch
      %527 = sbr.rel (%p525) target = $region88
    $region87: #{lenet_forward.1} parent=5 // pred_region
      // Predicated region
      $region89: #{lenet_forward.1} parent=87 // pred_check
        %p528 = pneg %p45
      $region90: #{lenet_forward.1} parent=87 // pred_check_branch
        %530 = sbr.rel (%p528) target = $region92
      $region91: #{lenet_forward.1} parent=87 // pred_region
        %s531 = smul.u32 8, %s25
        %p532 = scmp.lt.s32.totalorder %s531, 23
        %s533 = scalar_select %p532, %s531, 23
        %s534 = smul.addr %s533, 4
        %s535 = smul.addr %s534, 8
        %s536 = scalar_lea.vmem %s0, %s535
        %s537 = smul.u32 8, %s25
      $region92: #{lenet_forward.1} parent=87 // pred_fallthru
        _
    $region88: #{lenet_forward.1} parent=5 // pred_fallthru
      _
    %p538 = scmp.le.s32.totalorder 1, %s25
    %p539 = scmp.lt.s32.totalorder %s25, 4
    %p540 = pnand %p538, %p539
    %p541 = pneg %p540
    // Predicated region
    $region93: #{lenet_forward.1} parent=5 // pred_check
      _
    $region94: #{lenet_forward.1} parent=5 // pred_check_branch
      %543 = sbr.rel (%p540) target = $region96
    $region95: #{lenet_forward.1} parent=5 // pred_region
      %s544 = ssub.s32 %s25, 1
      %s545 = smul.u32 8, %s30
      %p546 = scmp.lt.s32.totalorder %s545, 23
      %s547 = scalar_select %p546, %s545, 23
      %s548 = smul.addr %s547, 4
      %s549 = smul.addr %s548, 8
      %s550 = scalar_lea.vmem %s0, %s549
      %p551 = pneg %p51
      %p552 = pneg %p48
      %p553 = pneg %p72
      %p554 = pneg %p69
      %p555 = pneg %p93
      %p556 = pneg %p90
      %p557 = pneg %p114
      %p558 = pneg %p111
      %p559 = pneg %p135
      %p560 = pneg %p132
      %p561 = pneg %p156
      %p562 = pneg %p153
      %p563 = pneg %p177
      %p564 = pneg %p174
      %p565 = pneg %p198
      %p566 = pneg %p195
      %p567 = pneg %p219
      %p568 = pneg %p216
      %p569 = pneg %p240
      %p570 = pneg %p237
      %p571 = pneg %p261
      %p572 = pneg %p258
      %p573 = pneg %p282
      %p574 = pneg %p279
      %p575 = pneg %p303
      %p576 = pneg %p300
      %p577 = pneg %p324
      %p578 = pneg %p321
      %p579 = pneg %p345
      %p580 = pneg %p342
      %p581 = pneg %p366
      %p582 = pneg %p363
      %p583 = pneg %p387
      %p584 = pneg %p384
      %p585 = pneg %p408
      %p586 = pneg %p405
      %p587 = pneg %p429
      %p588 = pneg %p426
      %p589 = pneg %p455
      %p590 = pneg %p452
      %p591 = scmp.lt.s32.totalorder %s30, 2
      %s592 = scalar_select %p591, %s30, 2
      %s593 = smul.addr %s592, 8
      %s594 = scalar_lea.vmem %s19, %s593
      %s595 = smul.u32 8, %s30
      %p596 = scmp.lt.s32.totalorder %s595, 23
      %s597 = scalar_select %p596, %s595, 23
      %s598 = smul.addr %s597, 4
      %s599 = smul.addr %s598, 8
      %s600 = scalar_lea.vmem %s0, %s599
      %s601 = smul.u32 8, %s30
      %p602 = scmp.lt.s32.totalorder %s30, 2
      %s603 = scalar_select %p602, %s30, 2
      %s604 = smul.addr %s603, 8
      %s605 = scalar_lea.vmem %s19, %s604
      loop: start=0, step=1, limit=8
      $region97: #{lenet_forward.1} parent=95 // loop_pre_header
        _
      $region98: #{lenet_forward.1} parent=95 // loop_header
        %s607 = sphi 0, %s611
        %p608 = scmp.ge.s32.totalorder %s607, 8
      $region99: #{lenet_forward.1} parent=95 // loop_header_branch
        %610 = sbr.rel (%p608) target = $region103
      $region100: #{lenet_forward.1} parent=95 // loop_body
        %s612 = smul.u32 %s607, 32
        %s613 = scalar_lea.vmem %s600, %s612
        %v614 = vld [vmem:[%s613] sm:$0xff]
        %v615 = vld [vmem:[%s613 + $0x8] sm:$0xff]
        %v616 = vld [vmem:[%s613 + $0x10] sm:$0xff]
        %v617 = vld [vmem:[%s613 + $0x18] sm:$0xff]
        %vm622 = vcmask 1046528
        %v623 = vrot.slane %v614, 1
        %v624 = vrot.slane %v615, 1
        %v625 = vsel %vm622, %v623, %v624
        %v626 = vrot.slane %v616, 1
        %v627 = vsel %vm622, %v624, %v626
        %v628 = vrot.slane %v617, 1
        %v629 = vsel %vm622, %v626, %v628
        %vm634 = vcmask 1045504
        %v635 = vrot.slane %v614, 2
        %v636 = vrot.slane %v615, 2
        %v637 = vsel %vm634, %v635, %v636
        %v638 = vrot.slane %v616, 2
        %v639 = vsel %vm634, %v636, %v638
        %v640 = vrot.slane %v617, 2
        %v641 = vsel %vm634, %v638, %v640
        %vm646 = vcmask 1044480
        %v647 = vrot.slane %v614, 3
        %v648 = vrot.slane %v615, 3
        %v649 = vsel %vm646, %v647, %v648
        %v650 = vrot.slane %v616, 3
        %v651 = vsel %vm646, %v648, %v650
        %v652 = vrot.slane %v617, 3
        %v653 = vsel %vm646, %v650, %v652
        %vm658 = vcmask 1043456
        %v659 = vrot.slane %v614, 4
        %v660 = vrot.slane %v615, 4
        %v661 = vsel %vm658, %v659, %v660
        %v662 = vrot.slane %v616, 4
        %v663 = vsel %vm658, %v660, %v662
        %v664 = vrot.slane %v617, 4
        %v665 = vsel %vm658, %v662, %v664
        %v670 = vld [vmem:[%s1] sm:$0xff]
        %v671 = vld [vmem:[%s1 + $0x8] sm:$0xff]
        %v672 = vld [vmem:[%s1 + $0x10] sm:$0xff]
        %v673 = vld [vmem:[%s1 + $0x18] sm:$0xff]
        %v674 = vld [vmem:[%s1 + $0x20] sm:$0xff]
        %v675 = vld [vmem:[%s1 + $0x28] sm:$0xff]
        %v676 = vld [vmem:[%s1 + $0x30] sm:$0xff]
        %v677 = vld [vmem:[%s1 + $0x38] sm:$0xff]
        %v678 = vld [vmem:[%s1 + $0x40] sm:$0xff]
        %v679 = vld [vmem:[%s1 + $0x48] sm:$0xff]
        %v680 = vld [vmem:[%s1 + $0x50] sm:$0xff]
        %v681 = vld [vmem:[%s1 + $0x58] sm:$0xff]
        %v682 = vld [vmem:[%s1 + $0x60] sm:$0xff]
        %v683 = vld [vmem:[%s1 + $0x68] sm:$0xff]
        %v684 = vld [vmem:[%s1 + $0x70] sm:$0xff]
        %v685 = vld [vmem:[%s1 + $0x78] sm:$0xff]
        %v686 = vld [vmem:[%s1 + $0x80] sm:$0xff]
        %v687 = vld [vmem:[%s1 + $0x88] sm:$0xff]
        %v688 = vld [vmem:[%s1 + $0x90] sm:$0xff]
        %v689 = vld [vmem:[%s1 + $0x98] sm:$0xff]
        %v690 = vld [vmem:[%s1 + $0xa0] sm:$0xff]
        %v691 = vld [vmem:[%s1 + $0xa8] sm:$0xff]
        %v692 = vld [vmem:[%s1 + $0xb0] sm:$0xff]
        %v693 = vld [vmem:[%s1 + $0xb8] sm:$0xff]
        %v694 = vld [vmem:[%s1 + $0xc0] sm:$0xff]
        %v695 = vld [vmem:[%s1 + $0xc8] sm:$0xff]
        %v696 = vld [vmem:[%s1 + $0xd0] sm:$0xff]
        %v697 = vld [vmem:[%s1 + $0xd8] sm:$0xff]
        %v698 = vld [vmem:[%s1 + $0xe0] sm:$0xff]
        %v699 = vld [vmem:[%s1 + $0xe8] sm:$0xff]
        %v700 = vld [vmem:[%s1 + $0xf0] sm:$0xff]
        %v701 = vld [vmem:[%s1 + $0xf8] sm:$0xff]
        %v702 = vld [vmem:[%s1 + $0x100] sm:$0xff]
        %v703 = vld [vmem:[%s1 + $0x108] sm:$0xff]
        %v704 = vld [vmem:[%s1 + $0x110] sm:$0xff]
        %v705 = vld [vmem:[%s1 + $0x118] sm:$0xff]
        %v706 = vld [vmem:[%s1 + $0x120] sm:$0xff]
        %v707 = vld [vmem:[%s1 + $0x128] sm:$0xff]
        %v708 = vld [vmem:[%s1 + $0x130] sm:$0xff]
        %v709 = vld [vmem:[%s1 + $0x138] sm:$0xff]
        %v710 = vld [vmem:[%s1 + $0x140] sm:$0xff]
        %v711 = vld [vmem:[%s1 + $0x148] sm:$0xff]
        %v712 = vld [vmem:[%s1 + $0x150] sm:$0xff]
        %v713 = vld [vmem:[%s1 + $0x158] sm:$0xff]
        %v714 = vld [vmem:[%s1 + $0x160] sm:$0xff]
        %v715 = vld [vmem:[%s1 + $0x168] sm:$0xff]
        %v716 = vld [vmem:[%s1 + $0x170] sm:$0xff]
        %v717 = vld [vmem:[%s1 + $0x178] sm:$0xff]
        %v718 = vld [vmem:[%s1 + $0x180] sm:$0xff]
        %v719 = vld [vmem:[%s1 + $0x188] sm:$0xff]
        %v720 = vld [vmem:[%s1 + $0x190] sm:$0xff]
        %v721 = vld [vmem:[%s1 + $0x198] sm:$0xff]
        %v722 = vld [vmem:[%s1 + $0x1a0] sm:$0xff]
        %v723 = vld [vmem:[%s1 + $0x1a8] sm:$0xff]
        %v724 = vld [vmem:[%s1 + $0x1b0] sm:$0xff]
        %v725 = vld [vmem:[%s1 + $0x1b8] sm:$0xff]
        %v726 = vld [vmem:[%s1 + $0x1c0] sm:$0xff]
        %v727 = vld [vmem:[%s1 + $0x1c8] sm:$0xff]
        %v728 = vld [vmem:[%s1 + $0x1d0] sm:$0xff]
        %v729 = vld [vmem:[%s1 + $0x1d8] sm:$0xff]
        %v730 = vld [vmem:[%s1 + $0x1e0] sm:$0xff]
        %v731 = vld [vmem:[%s1 + $0x1e8] sm:$0xff]
        %v732 = vld [vmem:[%s1 + $0x1f0] sm:$0xff]
        %v733 = vld [vmem:[%s1 + $0x1f8] sm:$0xff]
        %v734 = vld [vmem:[%s1 + $0x200] sm:$0xff]
        %v735 = vld [vmem:[%s1 + $0x208] sm:$0xff]
        %v736 = vld [vmem:[%s1 + $0x210] sm:$0xff]
        %v737 = vld [vmem:[%s1 + $0x218] sm:$0xff]
        %v738 = vld [vmem:[%s1 + $0x220] sm:$0xff]
        %v739 = vld [vmem:[%s1 + $0x228] sm:$0xff]
        %v740 = vld [vmem:[%s1 + $0x230] sm:$0xff]
        %v741 = vld [vmem:[%s1 + $0x238] sm:$0xff]
        %v742 = vld [vmem:[%s1 + $0x240] sm:$0xff]
        %v743 = vld [vmem:[%s1 + $0x248] sm:$0xff]
        %v744 = vld [vmem:[%s1 + $0x250] sm:$0xff]
        %v745 = vld [vmem:[%s1 + $0x258] sm:$0xff]
        %v746 = vld [vmem:[%s1 + $0x260] sm:$0xff]
        %v747 = vld [vmem:[%s1 + $0x268] sm:$0xff]
        %v748 = vld [vmem:[%s1 + $0x270] sm:$0xff]
        %v749 = vld [vmem:[%s1 + $0x278] sm:$0xff]
        %v750 = vld [vmem:[%s1 + $0x280] sm:$0xff]
        %v751 = vld [vmem:[%s1 + $0x288] sm:$0xff]
        %v752 = vld [vmem:[%s1 + $0x290] sm:$0xff]
        %v753 = vld [vmem:[%s1 + $0x298] sm:$0xff]
        %v754 = vld [vmem:[%s1 + $0x2a0] sm:$0xff]
        %v755 = vld [vmem:[%s1 + $0x2a8] sm:$0xff]
        %v756 = vld [vmem:[%s1 + $0x2b0] sm:$0xff]
        %v757 = vld [vmem:[%s1 + $0x2b8] sm:$0xff]
        %v758 = vld [vmem:[%s1 + $0x2c0] sm:$0xff]
        %v759 = vld [vmem:[%s1 + $0x2c8] sm:$0xff]
        %v760 = vld [vmem:[%s1 + $0x2d0] sm:$0xff]
        %v761 = vld [vmem:[%s1 + $0x2d8] sm:$0xff]
        %v762 = vld [vmem:[%s1 + $0x2e0] sm:$0xff]
        %v763 = vld [vmem:[%s1 + $0x2e8] sm:$0xff]
        %v764 = vld [vmem:[%s1 + $0x2f0] sm:$0xff]
        %v765 = vld [vmem:[%s1 + $0x2f8] sm:$0xff]
        %v766 = vld [vmem:[%s1 + $0x300] sm:$0xff]
        %v767 = vld [vmem:[%s1 + $0x308] sm:$0xff]
        %v768 = vld [vmem:[%s1 + $0x310] sm:$0xff]
        %v769 = vld [vmem:[%s1 + $0x318] sm:$0xff]
        %v770 = vld [vmem:[%s1 + $0x320] sm:$0xff]
        %v771 = vld [vmem:[%s1 + $0x328] sm:$0xff]
        %v772 = vld [vmem:[%s1 + $0x330] sm:$0xff]
        %v773 = vld [vmem:[%s1 + $0x338] sm:$0xff]
        %v774 = vld [vmem:[%s1 + $0x340] sm:$0xff]
        %v775 = vld [vmem:[%s1 + $0x348] sm:$0xff]
        %v776 = vld [vmem:[%s1 + $0x350] sm:$0xff]
        %v777 = vld [vmem:[%s1 + $0x358] sm:$0xff]
        %v778 = vld [vmem:[%s1 + $0x360] sm:$0xff]
        %v779 = vld [vmem:[%s1 + $0x368] sm:$0xff]
        %v780 = vld [vmem:[%s1 + $0x370] sm:$0xff]
        %v781 = vld [vmem:[%s1 + $0x378] sm:$0xff]
        %v782 = vld [vmem:[%s1 + $0x380] sm:$0xff]
        %v783 = vld [vmem:[%s1 + $0x388] sm:$0xff]
        %v784 = vld [vmem:[%s1 + $0x390] sm:$0xff]
        %v785 = vld [vmem:[%s1 + $0x398] sm:$0xff]
        %v786 = vld [vmem:[%s1 + $0x3a0] sm:$0xff]
        %v787 = vld [vmem:[%s1 + $0x3a8] sm:$0xff]
        %v788 = vld [vmem:[%s1 + $0x3b0] sm:$0xff]
        %v789 = vld [vmem:[%s1 + $0x3b8] sm:$0xff]
        %v790 = vld [vmem:[%s1 + $0x3c0] sm:$0xff]
        %v791 = vld [vmem:[%s1 + $0x3c8] sm:$0xff]
        %v792 = vld [vmem:[%s1 + $0x3d0] sm:$0xff]
        %v793 = vld [vmem:[%s1 + $0x3d8] sm:$0xff]
        %v794 = vld [vmem:[%s1 + $0x3e0] sm:$0xff]
        %v795 = vld [vmem:[%s1 + $0x3e8] sm:$0xff]
        %v796 = vld [vmem:[%s1 + $0x3f0] sm:$0xff]
        %v797 = vld [vmem:[%s1 + $0x3f8] sm:$0xff]
        %v798 = vld [vmem:[%s1 + $0x400] sm:$0xff]
        %v799 = vld [vmem:[%s1 + $0x408] sm:$0xff]
        %v800 = vld [vmem:[%s1 + $0x410] sm:$0xff]
        %v801 = vld [vmem:[%s1 + $0x418] sm:$0xff]
        %v802 = vld [vmem:[%s1 + $0x420] sm:$0xff]
        %v803 = vld [vmem:[%s1 + $0x428] sm:$0xff]
        %v804 = vld [vmem:[%s1 + $0x430] sm:$0xff]
        %v805 = vld [vmem:[%s1 + $0x438] sm:$0xff]
        %v806 = vld [vmem:[%s1 + $0x440] sm:$0xff]
        %v807 = vld [vmem:[%s1 + $0x448] sm:$0xff]
        %v808 = vld [vmem:[%s1 + $0x450] sm:$0xff]
        %v809 = vld [vmem:[%s1 + $0x458] sm:$0xff]
        %v810 = vld [vmem:[%s1 + $0x460] sm:$0xff]
        %v811 = vld [vmem:[%s1 + $0x468] sm:$0xff]
        %v812 = vld [vmem:[%s1 + $0x470] sm:$0xff]
        %v813 = vld [vmem:[%s1 + $0x478] sm:$0xff]
        %v814 = vld [vmem:[%s1 + $0x480] sm:$0xff]
        %v815 = vld [vmem:[%s1 + $0x488] sm:$0xff]
        %v816 = vld [vmem:[%s1 + $0x490] sm:$0xff]
        %v817 = vld [vmem:[%s1 + $0x498] sm:$0xff]
        %v818 = vld [vmem:[%s1 + $0x4a0] sm:$0xff]
        %v819 = vld [vmem:[%s1 + $0x4a8] sm:$0xff]
        %v820 = vld [vmem:[%s1 + $0x4b0] sm:$0xff]
        %v821 = vld [vmem:[%s1 + $0x4b8] sm:$0xff]
        %v822 = vld [vmem:[%s1 + $0x4c0] sm:$0xff]
        %v823 = vld [vmem:[%s1 + $0x4c8] sm:$0xff]
        %v824 = vld [vmem:[%s1 + $0x4d0] sm:$0xff]
        %v825 = vld [vmem:[%s1 + $0x4d8] sm:$0xff]
        %v826 = vld [vmem:[%s1 + $0x4e0] sm:$0xff]
        %v827 = vld [vmem:[%s1 + $0x4e8] sm:$0xff]
        %v828 = vld [vmem:[%s1 + $0x4f0] sm:$0xff]
        %v829 = vld [vmem:[%s1 + $0x4f8] sm:$0xff]
        %v830 = vld [vmem:[%s2] sm:$0x3]
        %v832 = vlaneseq
        %v833 = vshrl.u32 %v832, 7
        %v834 = vsub.s32 0, %v833
        %v835 = vrot.slane %v830, %v834
        %v836 = vlaneseq
        %v837 = vshrl.u32 %v836, 7
        %v838 = vsub.s32 1, %v837
        %v839 = vrot.slane %v830, %v838
        %842 = vmatprep.subr.mxu0 %v671
        %843 = vmatpush1.msra.mxu0 %v670
        %844 = vmatprep.subr.mxu0 %v673
        %845 = vmatpush1.msra.mxu0 %v672
        %846 = vmatprep.subr.mxu0 %v675
        %847 = vmatpush1.msra.mxu0 %v674
        %848 = vmatprep.subr.mxu0 %v677
        %849 = vmatpush1.msra.mxu0 %v676
        %850 = vmatprep.subr.mxu0 %v679
        %851 = vmatpush1.msra.mxu0 %v678
        %852 = vmatprep.subr.mxu0 %v681
        %853 = vmatpush1.msra.mxu0 %v680
        %854 = vmatprep.subr.mxu0 %v683
        %855 = vmatpush1.msra.mxu0 %v682
        %856 = vmatprep.subr.mxu0 %v685
        %857 = vmatpush1.msra.mxu0 %v684
        %858 = vmatprep.subr.mxu0 %v687
        %859 = vmatpush1.msra.mxu0 %v686
        %860 = vmatprep.subr.mxu0 %v689
        %861 = vmatpush1.msra.mxu0 %v688
        %862 = vmatprep.subr.mxu0 %v691
        %863 = vmatpush1.msra.mxu0 %v690
        %864 = vmatprep.subr.mxu0 %v693
        %865 = vmatpush1.msra.mxu0 %v692
        %866 = vmatprep.subr.mxu0 %v695
        %867 = vmatpush1.msra.mxu0 %v694
        %868 = vmatprep.subr.mxu0 %v697
        %869 = vmatpush1.msra.mxu0 %v696
        %870 = vmatprep.subr.mxu0 %v699
        %871 = vmatpush1.msra.mxu0 %v698
        %872 = vmatprep.subr.mxu0 %v701
        %873 = vmatpush1.msra.mxu0 %v700
        %874 = vmatprep.subr.mxu0 %v703
        %875 = vmatpush1.msra.mxu0 %v702
        %876 = vmatprep.subr.mxu0 %v705
        %877 = vmatpush1.msra.mxu0 %v704
        %878 = vmatprep.subr.mxu0 %v707
        %879 = vmatpush1.msra.mxu0 %v706
        %880 = vmatprep.subr.mxu0 %v709
        %881 = vmatpush1.msra.mxu0 %v708
        %882 = vmatprep.subr.mxu0 %v711
        %883 = vmatpush1.msra.mxu0 %v710
        %884 = vmatprep.subr.mxu0 %v713
        %885 = vmatpush1.msra.mxu0 %v712
        %886 = vmatprep.subr.mxu0 %v715
        %887 = vmatpush1.msra.mxu0 %v714
        %888 = vmatprep.subr.mxu0 %v717
        %889 = vmatpush1.msra.mxu0 %v716
        %890 = vmatprep.subr.mxu0 %v719
        %891 = vmatpush1.msra.mxu0 %v718
        %892 = vmatprep.subr.mxu0 %v721
        %893 = vmatpush1.msra.mxu0 %v720
        %894 = vmatprep.subr.mxu0 %v723
        %895 = vmatpush1.msra.mxu0 %v722
        %896 = vmatprep.subr.mxu0 %v725
        %897 = vmatpush1.msra.mxu0 %v724
        %898 = vmatprep.subr.mxu0 %v727
        %899 = vmatpush1.msra.mxu0 %v726
        %900 = vmatprep.subr.mxu0 %v729
        %901 = vmatpush1.msra.mxu0 %v728
        %902 = vmatprep.subr.mxu0 %v731
        %903 = vmatpush1.msra.mxu0 %v730
        %904 = vmatprep.subr.mxu0 %v733
        %905 = vmatpush1.msra.mxu0 %v732
        %906 = vmatprep.mubr.f32.mxu0 %v625
        %907 = vmatmul.mubr.f32.gmra.mrb[0].mxu0 %v614
        %v908 = vpop.f32.mrb[0].mxu0
        %v909 = vadd.f32 %v835, %v908
        %v910 = vpop.f32.mrb[0].mxu0
        %v911 = vadd.f32 %v839, %v910
        %912 = vmatprep.mubr.f32.mxu0 %v627
        %913 = vmatmul.mubr.f32.gmra.mrb[0].mxu0 %v615
        %v914 = vpop.f32.mrb[0].mxu0
        %v915 = vadd.f32 %v835, %v914
        %v916 = vpop.f32.mrb[0].mxu0
        %v917 = vadd.f32 %v839, %v916
        %918 = vmatprep.mubr.f32.mxu0 %v629
        %919 = vmatmul.mubr.f32.gmra.mrb[0].mxu0 %v616
        %v920 = vpop.f32.mrb[0].mxu0
        %v921 = vadd.f32 %v835, %v920
        %v922 = vpop.f32.mrb[0].mxu0
        %v923 = vadd.f32 %v839, %v922
        %924 = vmatprep.mubr.f32.mxu0 %v628
        %925 = vmatmul.mubr.f32.gmra.mrb[0].mxu0 %v617
        %v926 = vpop.f32.mrb[0].mxu0
        %v927 = vadd.f32 %v835, %v926
        %v928 = vpop.f32.mrb[0].mxu0
        %v929 = vadd.f32 %v839, %v928
        %930 = vdwg.mxu0
        %931 = vmatprep.subr.mxu0 %v735
        %932 = vmatpush1.msra.mxu0 %v734
        %933 = vmatprep.subr.mxu0 %v737
        %934 = vmatpush1.msra.mxu0 %v736
        %935 = vmatprep.subr.mxu0 %v739
        %936 = vmatpush1.msra.mxu0 %v738
        %937 = vmatprep.subr.mxu0 %v741
        %938 = vmatpush1.msra.mxu0 %v740
        %939 = vmatprep.subr.mxu0 %v743
        %940 = vmatpush1.msra.mxu0 %v742
        %941 = vmatprep.subr.mxu0 %v745
        %942 = vmatpush1.msra.mxu0 %v744
        %943 = vmatprep.subr.mxu0 %v747
        %944 = vmatpush1.msra.mxu0 %v746
        %945 = vmatprep.subr.mxu0 %v749
        %946 = vmatpush1.msra.mxu0 %v748
        %947 = vmatprep.subr.mxu0 %v751
        %948 = vmatpush1.msra.mxu0 %v750
        %949 = vmatprep.subr.mxu0 %v753
        %950 = vmatpush1.msra.mxu0 %v752
        %951 = vmatprep.subr.mxu0 %v755
        %952 = vmatpush1.msra.mxu0 %v754
        %953 = vmatprep.subr.mxu0 %v757
        %954 = vmatpush1.msra.mxu0 %v756
        %955 = vmatprep.subr.mxu0 %v759
        %956 = vmatpush1.msra.mxu0 %v758
        %957 = vmatprep.subr.mxu0 %v761
        %958 = vmatpush1.msra.mxu0 %v760
        %959 = vmatprep.subr.mxu0 %v763
        %960 = vmatpush1.msra.mxu0 %v762
        %961 = vmatprep.subr.mxu0 %v765
        %962 = vmatpush1.msra.mxu0 %v764
        %963 = vmatprep.subr.mxu0 %v767
        %964 = vmatpush1.msra.mxu0 %v766
        %965 = vmatprep.subr.mxu0 %v769
        %966 = vmatpush1.msra.mxu0 %v768
        %967 = vmatprep.subr.mxu0 %v771
        %968 = vmatpush1.msra.mxu0 %v770
        %969 = vmatprep.subr.mxu0 %v773
        %970 = vmatpush1.msra.mxu0 %v772
        %971 = vmatprep.subr.mxu0 %v775
        %972 = vmatpush1.msra.mxu0 %v774
        %973 = vmatprep.subr.mxu0 %v777
        %974 = vmatpush1.msra.mxu0 %v776
        %975 = vmatprep.subr.mxu0 %v779
        %976 = vmatpush1.msra.mxu0 %v778
        %977 = vmatprep.subr.mxu0 %v781
        %978 = vmatpush1.msra.mxu0 %v780
        %979 = vmatprep.subr.mxu0 %v783
        %980 = vmatpush1.msra.mxu0 %v782
        %981 = vmatprep.subr.mxu0 %v785
        %982 = vmatpush1.msra.mxu0 %v784
        %983 = vmatprep.subr.mxu0 %v787
        %984 = vmatpush1.msra.mxu0 %v786
        %985 = vmatprep.subr.mxu0 %v789
        %986 = vmatpush1.msra.mxu0 %v788
        %987 = vmatprep.subr.mxu0 %v791
        %988 = vmatpush1.msra.mxu0 %v790
        %989 = vmatprep.subr.mxu0 %v793
        %990 = vmatpush1.msra.mxu0 %v792
        %991 = vmatprep.subr.mxu0 %v795
        %992 = vmatpush1.msra.mxu0 %v794
        %993 = vmatprep.subr.mxu0 %v797
        %994 = vmatpush1.msra.mxu0 %v796
        %995 = vmatprep.mubr.f32.mxu0 %v649
        %996 = vmatmul.mubr.f32.gmra.mrb[0].mxu0 %v637
        %v997 = vpop.f32.mrb[0].mxu0
        %v998 = vadd.f32 %v909, %v997
        %v999 = vpop.f32.mrb[0].mxu0
        %v1000 = vadd.f32 %v911, %v999
        %1001 = vmatprep.mubr.f32.mxu0 %v651
        %1002 = vmatmul.mubr.f32.gmra.mrb[0].mxu0 %v639
        %v1003 = vpop.f32.mrb[0].mxu0
        %v1004 = vadd.f32 %v915, %v1003
        %v1005 = vpop.f32.mrb[0].mxu0
        %v1006 = vadd.f32 %v917, %v1005
        %1007 = vmatprep.mubr.f32.mxu0 %v653
        %1008 = vmatmul.mubr.f32.gmra.mrb[0].mxu0 %v641
        %v1009 = vpop.f32.mrb[0].mxu0
        %v1010 = vadd.f32 %v921, %v1009
        %v1011 = vpop.f32.mrb[0].mxu0
        %v1012 = vadd.f32 %v923, %v1011
        %1013 = vmatprep.mubr.f32.mxu0 %v652
        %1014 = vmatmul.mubr.f32.gmra.mrb[0].mxu0 %v640
        %v1015 = vpop.f32.mrb[0].mxu0
        %v1016 = vadd.f32 %v927, %v1015
        %v1017 = vpop.f32.mrb[0].mxu0
        %v1018 = vadd.f32 %v929, %v1017
        %1019 = vdwg.mxu0
        %1020 = vmatprep.subr.mxu0 %v799
        %1021 = vmatpush1.msra.mxu0 %v798
        %1022 = vmatprep.subr.mxu0 %v801
        %1023 = vmatpush1.msra.mxu0 %v800
        %1024 = vmatprep.subr.mxu0 %v803
        %1025 = vmatpush1.msra.mxu0 %v802
        %1026 = vmatprep.subr.mxu0 %v805
        %1027 = vmatpush1.msra.mxu0 %v804
        %1028 = vmatprep.subr.mxu0 %v807
        %1029 = vmatpush1.msra.mxu0 %v806
        %1030 = vmatprep.subr.mxu0 %v809
        %1031 = vmatpush1.msra.mxu0 %v808
        %1032 = vmatprep.subr.mxu0 %v811
        %1033 = vmatpush1.msra.mxu0 %v810
        %1034 = vmatprep.subr.mxu0 %v813
        %1035 = vmatpush1.msra.mxu0 %v812
        %1036 = vmatprep.subr.mxu0 %v815
        %1037 = vmatpush1.msra.mxu0 %v814
        %1038 = vmatprep.subr.mxu0 %v817
        %1039 = vmatpush1.msra.mxu0 %v816
        %1040 = vmatprep.subr.mxu0 %v819
        %1041 = vmatpush1.msra.mxu0 %v818
        %1042 = vmatprep.subr.mxu0 %v821
        %1043 = vmatpush1.msra.mxu0 %v820
        %1044 = vmatprep.subr.mxu0 %v823
        %1045 = vmatpush1.msra.mxu0 %v822
        %1046 = vmatprep.subr.mxu0 %v825
        %1047 = vmatpush1.msra.mxu0 %v824
        %1048 = vmatprep.subr.mxu0 %v827
        %1049 = vmatpush1.msra.mxu0 %v826
        %1050 = vmatprep.subr.mxu0 %v829
        %1051 = vmatpush1.msra.mxu0 %v828
        %1052 = vmatprep.subr.mxu0 0.0
        %1053 = vmatpush1.msra.mxu0 0.0
        %1054 = vmatprep.subr.mxu0 0.0
        %1055 = vmatpush1.msra.mxu0 0.0
        %1056 = vmatprep.subr.mxu0 0.0
        %1057 = vmatpush1.msra.mxu0 0.0
        %1058 = vmatprep.subr.mxu0 0.0
        %1059 = vmatpush1.msra.mxu0 0.0
        %1060 = vmatprep.subr.mxu0 0.0
        %1061 = vmatpush1.msra.mxu0 0.0
        %1062 = vmatprep.subr.mxu0 0.0
        %1063 = vmatpush1.msra.mxu0 0.0
        %1064 = vmatprep.subr.mxu0 0.0
        %1065 = vmatpush1.msra.mxu0 0.0
        %1066 = vmatprep.subr.mxu0 0.0
        %1067 = vmatpush1.msra.mxu0 0.0
        %1068 = vmatprep.subr.mxu0 0.0
        %1069 = vmatpush1.msra.mxu0 0.0
        %1070 = vmatprep.subr.mxu0 0.0
        %1071 = vmatpush1.msra.mxu0 0.0
        %1072 = vmatprep.subr.mxu0 0.0
        %1073 = vmatpush1.msra.mxu0 0.0
        %1074 = vmatprep.subr.mxu0 0.0
        %1075 = vmatpush1.msra.mxu0 0.0
        %1076 = vmatprep.subr.mxu0 0.0
        %1077 = vmatpush1.msra.mxu0 0.0
        %1078 = vmatprep.subr.mxu0 0.0
        %1079 = vmatpush1.msra.mxu0 0.0
        %1080 = vmatprep.subr.mxu0 0.0
        %1081 = vmatpush1.msra.mxu0 0.0
        %1082 = vmatprep.subr.mxu0 0.0
        %1083 = vmatpush1.msra.mxu0 0.0
        %1084 = vmatprep.mubr.f32.mxu0 0.0
        %1085 = vmatmul.mubr.f32.gmra.mrb[0].mxu0 %v661
        %v1086 = vpop.f32.mrb[0].mxu0
        %v1087 = vadd.f32 %v998, %v1086
        %v1088 = vpop.f32.mrb[0].mxu0
        %v1089 = vadd.f32 %v1000, %v1088
        %1090 = vmatprep.mubr.f32.mxu0 0.0
        %1091 = vmatmul.mubr.f32.gmra.mrb[0].mxu0 %v663
        %v1092 = vpop.f32.mrb[0].mxu0
        %v1093 = vadd.f32 %v1004, %v1092
        %v1094 = vpop.f32.mrb[0].mxu0
        %v1095 = vadd.f32 %v1006, %v1094
        %1096 = vmatprep.mubr.f32.mxu0 0.0
        %1097 = vmatmul.mubr.f32.gmra.mrb[0].mxu0 %v665
        %v1098 = vpop.f32.mrb[0].mxu0
        %v1099 = vadd.f32 %v1010, %v1098
        %v1100 = vpop.f32.mrb[0].mxu0
        %v1101 = vadd.f32 %v1012, %v1100
        %1102 = vmatprep.mubr.f32.mxu0 0.0
        %1103 = vmatmul.mubr.f32.gmra.mrb[0].mxu0 %v664
        %v1104 = vpop.f32.mrb[0].mxu0
        %v1105 = vadd.f32 %v1016, %v1104
        %v1106 = vpop.f32.mrb[0].mxu0
        %v1107 = vadd.f32 %v1018, %v1106
        %1108 = vdwg.mxu0
        %v1109 = vmax.f32 %v1087, 0.0
        %v1110 = vmax.f32 %v1089, 0.0
        %v1111 = vmax.f32 %v1093, 0.0
        %v1112 = vmax.f32 %v1095, 0.0
        %v1113 = vmax.f32 %v1099, 0.0
        %v1114 = vmax.f32 %v1101, 0.0
        %v1115 = vmax.f32 %v1105, 0.0
        %v1116 = vmax.f32 %v1107, 0.0
        %v1117 = vld [vmem:[%s3] sm:$0xff]
        %v1118 = vld [vmem:[%s3 + $0x8] sm:$0x3f]
        %vm1119 = vcmask 228352
        %v1121 = vsel %vm1119, %v1117, 0
        %v1124 = vsel %vm1119, %v1118, 0
        %v1127 = vsel %vm658, %v1115, 0
        %v1130 = vsel %vm658, %v1116, 0
        %1132 = vmatprep.subr.mxu0 %v1110
        %1133 = vmatpush1.msra.mxu0 %v1109
        %1134 = vmatprep.subr.mxu0 %v1112
        %1135 = vmatpush1.msra.mxu0 %v1111
        %1136 = vmatprep.subr.mxu0 %v1114
        %1137 = vmatpush1.msra.mxu0 %v1113
        %1138 = vmatprep.subr.mxu0 %v1130
        %1139 = vmatpush1.msra.mxu0 %v1127
        %1140 = vmatprep.subr.mxu0 0.0
        %1141 = vmatpush1.msra.mxu0 0.0
        %1142 = vmatprep.subr.mxu0 0.0
        %1143 = vmatpush1.msra.mxu0 0.0
        %1144 = vmatprep.subr.mxu0 0.0
        %1145 = vmatpush1.msra.mxu0 0.0
        %1146 = vmatprep.subr.mxu0 0.0
        %1147 = vmatpush1.msra.mxu0 0.0
        %1148 = vmatprep.subr.mxu0 0.0
        %1149 = vmatpush1.msra.mxu0 0.0
        %1150 = vmatprep.subr.mxu0 0.0
        %1151 = vmatpush1.msra.mxu0 0.0
        %1152 = vmatprep.subr.mxu0 0.0
        %1153 = vmatpush1.msra.mxu0 0.0
        %1154 = vmatprep.subr.mxu0 0.0
        %1155 = vmatpush1.msra.mxu0 0.0
        %1156 = vmatprep.subr.mxu0 0.0
        %1157 = vmatpush1.msra.mxu0 0.0
        %1158 = vmatprep.subr.mxu0 0.0
        %1159 = vmatpush1.msra.mxu0 0.0
        %1160 = vmatprep.subr.mxu0 0.0
        %1161 = vmatpush1.msra.mxu0 0.0
        %1162 = vmatprep.subr.mxu0 0.0
        %1163 = vmatpush1.msra.mxu0 0.0
        %1164 = vmatprep.subr.mxu0 0.0
        %1165 = vmatpush1.msra.mxu0 0.0
        %1166 = vmatprep.subr.mxu0 0.0
        %1167 = vmatpush1.msra.mxu0 0.0
        %1168 = vmatprep.subr.mxu0 0.0
        %1169 = vmatpush1.msra.mxu0 0.0
        %1170 = vmatprep.subr.mxu0 0.0
        %1171 = vmatpush1.msra.mxu0 0.0
        %1172 = vmatprep.subr.mxu0 0.0
        %1173 = vmatpush1.msra.mxu0 0.0
        %1174 = vmatprep.subr.mxu0 0.0
        %1175 = vmatpush1.msra.mxu0 0.0
        %1176 = vmatprep.subr.mxu0 0.0
        %1177 = vmatpush1.msra.mxu0 0.0
        %1178 = vmatprep.subr.mxu0 0.0
        %1179 = vmatpush1.msra.mxu0 0.0
        %1180 = vmatprep.subr.mxu0 0.0
        %1181 = vmatpush1.msra.mxu0 0.0
        %1182 = vmatprep.subr.mxu0 0.0
        %1183 = vmatpush1.msra.mxu0 0.0
        %1184 = vmatprep.subr.mxu0 0.0
        %1185 = vmatpush1.msra.mxu0 0.0
        %1186 = vmatprep.subr.mxu0 0.0
        %1187 = vmatpush1.msra.mxu0 0.0
        %1188 = vmatprep.subr.mxu0 0.0
        %1189 = vmatpush1.msra.mxu0 0.0
        %1190 = vmatprep.subr.mxu0 0.0
        %1191 = vmatpush1.msra.mxu0 0.0
        %1192 = vmatprep.subr.mxu0 0.0
        %1193 = vmatpush1.msra.mxu0 0.0
        %1194 = vmatprep.subr.mxu0 0.0
        %1195 = vmatpush1.msra.mxu0 0.0
        %1196 = vmatprep.mubr.f32.mxu0 0.0
        %1197 = vmatmul.mubr.f32.gmra.mrb[0].mxu0 %v1121
        %v1198 = vpop.f32.mrb[0].mxu0
        %v1199 = vadd.f32 0.0, %v1198
        %v1200 = vpop.f32.mrb[0].mxu0
        %v1201 = vadd.f32 0.0, %v1200
        %1202 = vmatprep.mubr.f32.mxu0 0.0
        %1203 = vmatmul.mubr.f32.gmra.mrb[0].mxu0 %v1124
        %v1204 = vpop.f32.mrb[0].mxu0
        %v1205 = vadd.f32 0.0, %v1204
        %v1206 = vpop.f32.mrb[0].mxu0
        %v1207 = vadd.f32 0.0, %v1206
        %1208 = vdwg.mxu0
        %v1209 = vld [vmem:[%s4] sm:$0xff]
        %v1210 = vld [vmem:[%s4 + $0x8] sm:$0x3f]
        %v1212 = vsel %vm1119, %v1209, 0
        %v1215 = vsel %vm1119, %v1210, 0
        %1217 = vmatprep.subr.mxu0 %v1110
        %1218 = vmatpush1.msra.mxu0 %v1109
        %1219 = vmatprep.subr.mxu0 %v1112
        %1220 = vmatpush1.msra.mxu0 %v1111
        %1221 = vmatprep.subr.mxu0 %v1114
        %1222 = vmatpush1.msra.mxu0 %v1113
        %1223 = vmatprep.subr.mxu0 %v1130
        %1224 = vmatpush1.msra.mxu0 %v1127
        %1225 = vmatprep.subr.mxu0 0.0
        %1226 = vmatpush1.msra.mxu0 0.0
        %1227 = vmatprep.subr.mxu0 0.0
        %1228 = vmatpush1.msra.mxu0 0.0
        %1229 = vmatprep.subr.mxu0 0.0
        %1230 = vmatpush1.msra.mxu0 0.0
        %1231 = vmatprep.subr.mxu0 0.0
        %1232 = vmatpush1.msra.mxu0 0.0
        %1233 = vmatprep.subr.mxu0 0.0
        %1234 = vmatpush1.msra.mxu0 0.0
        %1235 = vmatprep.subr.mxu0 0.0
        %1236 = vmatpush1.msra.mxu0 0.0
        %1237 = vmatprep.subr.mxu0 0.0
        %1238 = vmatpush1.msra.mxu0 0.0
        %1239 = vmatprep.subr.mxu0 0.0
        %1240 = vmatpush1.msra.mxu0 0.0
        %1241 = vmatprep.subr.mxu0 0.0
        %1242 = vmatpush1.msra.mxu0 0.0
        %1243 = vmatprep.subr.mxu0 0.0
        %1244 = vmatpush1.msra.mxu0 0.0
        %1245 = vmatprep.subr.mxu0 0.0
        %1246 = vmatpush1.msra.mxu0 0.0
        %1247 = vmatprep.subr.mxu0 0.0
        %1248 = vmatpush1.msra.mxu0 0.0
        %1249 = vmatprep.subr.mxu0 0.0
        %1250 = vmatpush1.msra.mxu0 0.0
        %1251 = vmatprep.subr.mxu0 0.0
        %1252 = vmatpush1.msra.mxu0 0.0
        %1253 = vmatprep.subr.mxu0 0.0
        %1254 = vmatpush1.msra.mxu0 0.0
        %1255 = vmatprep.subr.mxu0 0.0
        %1256 = vmatpush1.msra.mxu0 0.0
        %1257 = vmatprep.subr.mxu0 0.0
        %1258 = vmatpush1.msra.mxu0 0.0
        %1259 = vmatprep.subr.mxu0 0.0
        %1260 = vmatpush1.msra.mxu0 0.0
        %1261 = vmatprep.subr.mxu0 0.0
        %1262 = vmatpush1.msra.mxu0 0.0
        %1263 = vmatprep.subr.mxu0 0.0
        %1264 = vmatpush1.msra.mxu0 0.0
        %1265 = vmatprep.subr.mxu0 0.0
        %1266 = vmatpush1.msra.mxu0 0.0
        %1267 = vmatprep.subr.mxu0 0.0
        %1268 = vmatpush1.msra.mxu0 0.0
        %1269 = vmatprep.subr.mxu0 0.0
        %1270 = vmatpush1.msra.mxu0 0.0
        %1271 = vmatprep.subr.mxu0 0.0
        %1272 = vmatpush1.msra.mxu0 0.0
        %1273 = vmatprep.subr.mxu0 0.0
        %1274 = vmatpush1.msra.mxu0 0.0
        %1275 = vmatprep.subr.mxu0 0.0
        %1276 = vmatpush1.msra.mxu0 0.0
        %1277 = vmatprep.subr.mxu0 0.0
        %1278 = vmatpush1.msra.mxu0 0.0
        %1279 = vmatprep.subr.mxu0 0.0
        %1280 = vmatpush1.msra.mxu0 0.0
        %1281 = vmatprep.mubr.f32.mxu0 0.0
        %1282 = vmatmul.mubr.f32.gmra.mrb[0].mxu0 %v1212
        %v1283 = vpop.f32.mrb[0].mxu0
        %v1284 = vadd.f32 0.0, %v1283
        %v1285 = vpop.f32.mrb[0].mxu0
        %v1286 = vadd.f32 0.0, %v1285
        %1287 = vmatprep.mubr.f32.mxu0 0.0
        %1288 = vmatmul.mubr.f32.gmra.mrb[0].mxu0 %v1215
        %v1289 = vpop.f32.mrb[0].mxu0
        %v1290 = vadd.f32 0.0, %v1289
        %v1291 = vpop.f32.mrb[0].mxu0
        %v1292 = vadd.f32 0.0, %v1291
        %1293 = vdwg.mxu0
        %v1294 = vmax.f32 %v1199, %v1284
        %v1295 = vmax.f32 %v1201, %v1286
        %v1296 = vmax.f32 %v1205, %v1290
        %v1297 = vmax.f32 %v1207, %v1292
        %v1298 = vld [vmem:[%s5] sm:$0xff]
        %v1299 = vld [vmem:[%s5 + $0x8] sm:$0xff]
        %v1300 = vld [vmem:[%s5 + $0x10] sm:$0xff]
        %v1301 = vld [vmem:[%s5 + $0x18] sm:$0xff]
        %v1302 = vld [vmem:[%s5 + $0x20] sm:$0xff]
        %v1303 = vld [vmem:[%s5 + $0x28] sm:$0xff]
        %v1304 = vld [vmem:[%s5 + $0x30] sm:$0xff]
        %v1305 = vld [vmem:[%s5 + $0x38] sm:$0xff]
        %v1306 = vld [vmem:[%s5 + $0x40] sm:$0xff]
        %v1307 = vld [vmem:[%s5 + $0x48] sm:$0xff]
        %v1308 = vld [vmem:[%s5 + $0x50] sm:$0xff]
        %v1309 = vld [vmem:[%s5 + $0x58] sm:$0xff]
        %v1310 = vld [vmem:[%s5 + $0x60] sm:$0xff]
        %v1311 = vld [vmem:[%s5 + $0x68] sm:$0xff]
        %v1312 = vld [vmem:[%s5 + $0x70] sm:$0xff]
        %v1313 = vld [vmem:[%s5 + $0x78] sm:$0xff]
        %v1314 = vld [vmem:[%s5 + $0x80] sm:$0xff]
        %v1315 = vld [vmem:[%s5 + $0x88] sm:$0xff]
        %v1316 = vld [vmem:[%s5 + $0x90] sm:$0xff]
        %v1317 = vld [vmem:[%s5 + $0x98] sm:$0xff]
        %v1318 = vld [vmem:[%s5 + $0xa0] sm:$0xff]
        %vm1319 = vcmask 326656
        %v1321 = vsel %vm1319, %v1295, 0
        %v1324 = vsel %vm1319, %v1297, 0
        %1326 = vmatprep.subr.mxu0 0.0
        %1327 = vmatpush1.msra.mxu0 %v1298
        %1328 = vmatprep.subr.mxu0 0.0
        %1329 = vmatpush1.msra.mxu0 %v1299
        %1330 = vmatprep.subr.mxu0 0.0
        %1331 = vmatpush1.msra.mxu0 %v1300
        %1332 = vmatprep.subr.mxu0 0.0
        %1333 = vmatpush1.msra.mxu0 %v1301
        %1334 = vmatprep.subr.mxu0 0.0
        %1335 = vmatpush1.msra.mxu0 %v1302
        %1336 = vmatprep.subr.mxu0 0.0
        %1337 = vmatpush1.msra.mxu0 %v1303
        %1338 = vmatprep.subr.mxu0 0.0
        %1339 = vmatpush1.msra.mxu0 %v1304
        %1340 = vmatprep.subr.mxu0 0.0
        %1341 = vmatpush1.msra.mxu0 %v1305
        %1342 = vmatprep.subr.mxu0 0.0
        %1343 = vmatpush1.msra.mxu0 %v1306
        %1344 = vmatprep.subr.mxu0 0.0
        %1345 = vmatpush1.msra.mxu0 %v1307
        %1346 = vmatprep.subr.mxu0 0.0
        %1347 = vmatpush1.msra.mxu0 %v1308
        %1348 = vmatprep.subr.mxu0 0.0
        %1349 = vmatpush1.msra.mxu0 %v1309
        %1350 = vmatprep.subr.mxu0 0.0
        %1351 = vmatpush1.msra.mxu0 %v1310
        %1352 = vmatprep.subr.mxu0 0.0
        %1353 = vmatpush1.msra.mxu0 %v1311
        %1354 = vmatprep.subr.mxu0 0.0
        %1355 = vmatpush1.msra.mxu0 %v1312
        %1356 = vmatprep.subr.mxu0 0.0
        %1357 = vmatpush1.msra.mxu0 %v1313
        %1358 = vmatprep.subr.mxu0 0.0
        %1359 = vmatpush1.msra.mxu0 %v1314
        %1360 = vmatprep.subr.mxu0 0.0
        %1361 = vmatpush1.msra.mxu0 %v1315
        %1362 = vmatprep.subr.mxu0 0.0
        %1363 = vmatpush1.msra.mxu0 %v1316
        %1364 = vmatprep.subr.mxu0 0.0
        %1365 = vmatpush1.msra.mxu0 %v1317
        %1366 = vmatprep.subr.mxu0 0.0
        %1367 = vmatpush1.msra.mxu0 %v1318
        %1368 = vmatprep.subr.mxu0 0.0
        %1369 = vmatpush1.msra.mxu0 0.0
        %1370 = vmatprep.subr.mxu0 0.0
        %1371 = vmatpush1.msra.mxu0 0.0
        %1372 = vmatprep.subr.mxu0 0.0
        %1373 = vmatpush1.msra.mxu0 0.0
        %1374 = vmatprep.subr.mxu0 0.0
        %1375 = vmatpush1.msra.mxu0 0.0
        %1376 = vmatprep.subr.mxu0 0.0
        %1377 = vmatpush1.msra.mxu0 0.0
        %1378 = vmatprep.subr.mxu0 0.0
        %1379 = vmatpush1.msra.mxu0 0.0
        %1380 = vmatprep.subr.mxu0 0.0
        %1381 = vmatpush1.msra.mxu0 0.0
        %1382 = vmatprep.subr.mxu0 0.0
        %1383 = vmatpush1.msra.mxu0 0.0
        %1384 = vmatprep.subr.mxu0 0.0
        %1385 = vmatpush1.msra.mxu0 0.0
        %1386 = vmatprep.subr.mxu0 0.0
        %1387 = vmatpush1.msra.mxu0 0.0
        %1388 = vmatprep.subr.mxu0 0.0
        %1389 = vmatpush1.msra.mxu0 0.0
        %1390 = vmatprep.mubr.f32.mxu0 %v1321
        %1391 = vmatmul.mubr.f32.gmra.mrb[0].mxu0 %v1294
        %v1392 = vpop.f32.mrb[0].mxu0
        %v1393 = vadd.f32 0.0, %v1392
        %v1394 = vpop.f32.mrb[0].mxu0
        %1395 = vmatprep.mubr.f32.mxu0 %v1324
        %1396 = vmatmul.mubr.f32.gmra.mrb[0].mxu0 %v1296
        %v1397 = vpop.f32.mrb[0].mxu0
        %v1398 = vadd.f32 0.0, %v1397
        %v1399 = vpop.f32.mrb[0].mxu0
        %1400 = vdwg.mxu0
        %v1401 = vld [vmem:[%s6] sm:$0xff]
        %v1402 = vld [vmem:[%s6 + $0x8] sm:$0xff]
        %v1403 = vld [vmem:[%s6 + $0x10] sm:$0xff]
        %v1404 = vld [vmem:[%s6 + $0x18] sm:$0xff]
        %v1405 = vld [vmem:[%s6 + $0x20] sm:$0xff]
        %v1406 = vld [vmem:[%s6 + $0x28] sm:$0xff]
        %v1407 = vld [vmem:[%s6 + $0x30] sm:$0xff]
        %v1408 = vld [vmem:[%s6 + $0x38] sm:$0xff]
        %v1409 = vld [vmem:[%s6 + $0x40] sm:$0xff]
        %v1410 = vld [vmem:[%s6 + $0x48] sm:$0xff]
        %v1411 = vld [vmem:[%s6 + $0x50] sm:$0xff]
        %v1412 = vld [vmem:[%s6 + $0x58] sm:$0xff]
        %v1413 = vld [vmem:[%s6 + $0x60] sm:$0xff]
        %v1414 = vld [vmem:[%s6 + $0x68] sm:$0xff]
        %v1415 = vld [vmem:[%s6 + $0x70] sm:$0xff]
        %v1416 = vld [vmem:[%s6 + $0x78] sm:$0xff]
        %v1417 = vld [vmem:[%s6 + $0x80] sm:$0xff]
        %v1418 = vld [vmem:[%s6 + $0x88] sm:$0xff]
        %v1419 = vld [vmem:[%s6 + $0x90] sm:$0xff]
        %v1420 = vld [vmem:[%s6 + $0x98] sm:$0xff]
        %v1421 = vld [vmem:[%s6 + $0xa0] sm:$0xff]
        %1422 = vmatprep.subr.mxu0 0.0
        %1423 = vmatpush1.msra.mxu0 %v1401
        %1424 = vmatprep.subr.mxu0 0.0
        %1425 = vmatpush1.msra.mxu0 %v1402
        %1426 = vmatprep.subr.mxu0 0.0
        %1427 = vmatpush1.msra.mxu0 %v1403
        %1428 = vmatprep.subr.mxu0 0.0
        %1429 = vmatpush1.msra.mxu0 %v1404
        %1430 = vmatprep.subr.mxu0 0.0
        %1431 = vmatpush1.msra.mxu0 %v1405
        %1432 = vmatprep.subr.mxu0 0.0
        %1433 = vmatpush1.msra.mxu0 %v1406
        %1434 = vmatprep.subr.mxu0 0.0
        %1435 = vmatpush1.msra.mxu0 %v1407
        %1436 = vmatprep.subr.mxu0 0.0
        %1437 = vmatpush1.msra.mxu0 %v1408
        %1438 = vmatprep.subr.mxu0 0.0
        %1439 = vmatpush1.msra.mxu0 %v1409
        %1440 = vmatprep.subr.mxu0 0.0
        %1441 = vmatpush1.msra.mxu0 %v1410
        %1442 = vmatprep.subr.mxu0 0.0
        %1443 = vmatpush1.msra.mxu0 %v1411
        %1444 = vmatprep.subr.mxu0 0.0
        %1445 = vmatpush1.msra.mxu0 %v1412
        %1446 = vmatprep.subr.mxu0 0.0
        %1447 = vmatpush1.msra.mxu0 %v1413
        %1448 = vmatprep.subr.mxu0 0.0
        %1449 = vmatpush1.msra.mxu0 %v1414
        %1450 = vmatprep.subr.mxu0 0.0
        %1451 = vmatpush1.msra.mxu0 %v1415
        %1452 = vmatprep.subr.mxu0 0.0
        %1453 = vmatpush1.msra.mxu0 %v1416
        %1454 = vmatprep.subr.mxu0 0.0
        %1455 = vmatpush1.msra.mxu0 %v1417
        %1456 = vmatprep.subr.mxu0 0.0
        %1457 = vmatpush1.msra.mxu0 %v1418
        %1458 = vmatprep.subr.mxu0 0.0
        %1459 = vmatpush1.msra.mxu0 %v1419
        %1460 = vmatprep.subr.mxu0 0.0
        %1461 = vmatpush1.msra.mxu0 %v1420
        %1462 = vmatprep.subr.mxu0 0.0
        %1463 = vmatpush1.msra.mxu0 %v1421
        %1464 = vmatprep.subr.mxu0 0.0
        %1465 = vmatpush1.msra.mxu0 0.0
        %1466 = vmatprep.subr.mxu0 0.0
        %1467 = vmatpush1.msra.mxu0 0.0
        %1468 = vmatprep.subr.mxu0 0.0
        %1469 = vmatpush1.msra.mxu0 0.0
        %1470 = vmatprep.subr.mxu0 0.0
        %1471 = vmatpush1.msra.mxu0 0.0
        %1472 = vmatprep.subr.mxu0 0.0
        %1473 = vmatpush1.msra.mxu0 0.0
        %1474 = vmatprep.subr.mxu0 0.0
        %1475 = vmatpush1.msra.mxu0 0.0
        %1476 = vmatprep.subr.mxu0 0.0
        %1477 = vmatpush1.msra.mxu0 0.0
        %1478 = vmatprep.subr.mxu0 0.0
        %1479 = vmatpush1.msra.mxu0 0.0
        %1480 = vmatprep.subr.mxu0 0.0
        %1481 = vmatpush1.msra.mxu0 0.0
        %1482 = vmatprep.subr.mxu0 0.0
        %1483 = vmatpush1.msra.mxu0 0.0
        %1484 = vmatprep.subr.mxu0 0.0
        %1485 = vmatpush1.msra.mxu0 0.0
        %1486 = vmatprep.mubr.f32.mxu0 %v1321
        %1487 = vmatmul.mubr.f32.gmra.mrb[0].mxu0 %v1294
        %v1488 = vpop.f32.mrb[0].mxu0
        %v1489 = vadd.f32 0.0, %v1488
        %v1490 = vpop.f32.mrb[0].mxu0
        %1491 = vmatprep.mubr.f32.mxu0 %v1324
        %1492 = vmatmul.mubr.f32.gmra.mrb[0].mxu0 %v1296
        %v1493 = vpop.f32.mrb[0].mxu0
        %v1494 = vadd.f32 0.0, %v1493
        %v1495 = vpop.f32.mrb[0].mxu0
        %1496 = vdwg.mxu0
        %v1497 = vmax.f32 %v1393, %v1489
        %v1498 = vmax.f32 %v1398, %v1494
        %v1501 = vrot.slane %v1497, 1
        %v1502 = vrot.slane %v1498, 1
        %v1503 = vsel %vm622, %v1501, %v1502
        %v1506 = vrot.slane %v1497, 2
        %v1507 = vrot.slane %v1498, 2
        %v1508 = vsel %vm634, %v1506, %v1507
        %v1511 = vrot.slane %v1497, 3
        %v1512 = vrot.slane %v1498, 3
        %v1513 = vsel %vm646, %v1511, %v1512
        %v1516 = vrot.slane %v1497, 4
        %v1517 = vrot.slane %v1498, 4
        %v1518 = vsel %vm658, %v1516, %v1517
        %v1521 = vld [vmem:[%s7] sm:$0xff]
        %v1522 = vld [vmem:[%s7 + $0x8] sm:$0xff]
        %v1523 = vld [vmem:[%s7 + $0x10] sm:$0xff]
        %v1524 = vld [vmem:[%s7 + $0x18] sm:$0xff]
        %v1525 = vld [vmem:[%s7 + $0x20] sm:$0xff]
        %v1526 = vld [vmem:[%s7 + $0x28] sm:$0xff]
        %v1527 = vld [vmem:[%s7 + $0x30] sm:$0xff]
        %v1528 = vld [vmem:[%s7 + $0x38] sm:$0xff]
        %v1529 = vld [vmem:[%s7 + $0x40] sm:$0xff]
        %v1530 = vld [vmem:[%s7 + $0x48] sm:$0xff]
        %v1531 = vld [vmem:[%s7 + $0x50] sm:$0xff]
        %v1532 = vld [vmem:[%s7 + $0x58] sm:$0xff]
        %v1533 = vld [vmem:[%s7 + $0x60] sm:$0xff]
        %v1534 = vld [vmem:[%s7 + $0x68] sm:$0xff]
        %v1535 = vld [vmem:[%s7 + $0x70] sm:$0xff]
        %v1536 = vld [vmem:[%s7 + $0x78] sm:$0xff]
        %v1537 = vld [vmem:[%s7 + $0x80] sm:$0xff]
        %v1538 = vld [vmem:[%s7 + $0x88] sm:$0xff]
        %v1539 = vld [vmem:[%s7 + $0x90] sm:$0xff]
        %v1540 = vld [vmem:[%s7 + $0x98] sm:$0xff]
        %v1541 = vld [vmem:[%s7 + $0xa0] sm:$0xff]
        %v1542 = vld [vmem:[%s7 + $0xa8] sm:$0xff]
        %v1543 = vld [vmem:[%s7 + $0xb0] sm:$0xff]
        %v1544 = vld [vmem:[%s7 + $0xb8] sm:$0xff]
        %v1545 = vld [vmem:[%s7 + $0xc0] sm:$0xff]
        %v1546 = vld [vmem:[%s7 + $0xc8] sm:$0xff]
        %v1547 = vld [vmem:[%s7 + $0xd0] sm:$0xff]
        %v1548 = vld [vmem:[%s7 + $0xd8] sm:$0xff]
        %v1549 = vld [vmem:[%s7 + $0xe0] sm:$0xff]
        %v1550 = vld [vmem:[%s7 + $0xe8] sm:$0xff]
        %v1551 = vld [vmem:[%s7 + $0xf0] sm:$0xff]
        %v1552 = vld [vmem:[%s7 + $0xf8] sm:$0xff]
        %v1553 = vld [vmem:[%s7 + $0x100] sm:$0xff]
        %v1554 = vld [vmem:[%s7 + $0x108] sm:$0xff]
        %v1555 = vld [vmem:[%s7 + $0x110] sm:$0xff]
        %v1556 = vld [vmem:[%s7 + $0x118] sm:$0xff]
        %v1557 = vld [vmem:[%s7 + $0x120] sm:$0xff]
        %v1558 = vld [vmem:[%s7 + $0x128] sm:$0xff]
        %v1559 = vld [vmem:[%s7 + $0x130] sm:$0xff]
        %v1560 = vld [vmem:[%s7 + $0x138] sm:$0xff]
        %v1561 = vld [vmem:[%s7 + $0x140] sm:$0xff]
        %v1562 = vld [vmem:[%s7 + $0x148] sm:$0xff]
        %v1563 = vld [vmem:[%s7 + $0x150] sm:$0xff]
        %v1564 = vld [vmem:[%s7 + $0x158] sm:$0xff]
        %v1565 = vld [vmem:[%s7 + $0x160] sm:$0xff]
        %v1566 = vld [vmem:[%s7 + $0x168] sm:$0xff]
        %v1567 = vld [vmem:[%s7 + $0x170] sm:$0xff]
        %v1568 = vld [vmem:[%s7 + $0x178] sm:$0xff]
        %v1569 = vld [vmem:[%s7 + $0x180] sm:$0xff]
        %v1570 = vld [vmem:[%s7 + $0x188] sm:$0xff]
        %v1571 = vld [vmem:[%s7 + $0x190] sm:$0xff]
        %v1572 = vld [vmem:[%s7 + $0x198] sm:$0xff]
        %v1573 = vld [vmem:[%s7 + $0x1a0] sm:$0xff]
        %v1574 = vld [vmem:[%s7 + $0x1a8] sm:$0xff]
        %v1575 = vld [vmem:[%s7 + $0x1b0] sm:$0xff]
        %v1576 = vld [vmem:[%s7 + $0x1b8] sm:$0xff]
        %v1577 = vld [vmem:[%s7 + $0x1c0] sm:$0xff]
        %v1578 = vld [vmem:[%s7 + $0x1c8] sm:$0xff]
        %v1579 = vld [vmem:[%s7 + $0x1d0] sm:$0xff]
        %v1580 = vld [vmem:[%s7 + $0x1d8] sm:$0xff]
        %v1581 = vld [vmem:[%s7 + $0x1e0] sm:$0xff]
        %v1582 = vld [vmem:[%s7 + $0x1e8] sm:$0xff]
        %v1583 = vld [vmem:[%s7 + $0x1f0] sm:$0xff]
        %v1584 = vld [vmem:[%s7 + $0x1f8] sm:$0xff]
        %v1585 = vld [vmem:[%s7 + $0x200] sm:$0xff]
        %v1586 = vld [vmem:[%s7 + $0x208] sm:$0xff]
        %v1587 = vld [vmem:[%s7 + $0x210] sm:$0xff]
        %v1588 = vld [vmem:[%s7 + $0x218] sm:$0xff]
        %v1589 = vld [vmem:[%s7 + $0x220] sm:$0xff]
        %v1590 = vld [vmem:[%s7 + $0x228] sm:$0xff]
        %v1591 = vld [vmem:[%s7 + $0x230] sm:$0xff]
        %v1592 = vld [vmem:[%s7 + $0x238] sm:$0xff]
        %v1593 = vld [vmem:[%s7 + $0x240] sm:$0xff]
        %v1594 = vld [vmem:[%s7 + $0x248] sm:$0xff]
        %v1595 = vld [vmem:[%s7 + $0x250] sm:$0xff]
        %v1596 = vld [vmem:[%s7 + $0x258] sm:$0xff]
        %v1597 = vld [vmem:[%s7 + $0x260] sm:$0xff]
        %v1598 = vld [vmem:[%s7 + $0x268] sm:$0xff]
        %v1599 = vld [vmem:[%s7 + $0x270] sm:$0xff]
        %v1600 = vld [vmem:[%s7 + $0x278] sm:$0xff]
        %v1601 = vld [vmem:[%s7 + $0x280] sm:$0xff]
        %v1602 = vld [vmem:[%s7 + $0x288] sm:$0xff]
        %v1603 = vld [vmem:[%s7 + $0x290] sm:$0xff]
        %v1604 = vld [vmem:[%s7 + $0x298] sm:$0xff]
        %v1605 = vld [vmem:[%s7 + $0x2a0] sm:$0xff]
        %v1606 = vld [vmem:[%s7 + $0x2a8] sm:$0xff]
        %v1607 = vld [vmem:[%s7 + $0x2b0] sm:$0xff]
        %v1608 = vld [vmem:[%s7 + $0x2b8] sm:$0xff]
        %v1609 = vld [vmem:[%s7 + $0x2c0] sm:$0xff]
        %v1610 = vld [vmem:[%s7 + $0x2c8] sm:$0xff]
        %v1611 = vld [vmem:[%s7 + $0x2d0] sm:$0xff]
        %v1612 = vld [vmem:[%s7 + $0x2d8] sm:$0xff]
        %v1613 = vld [vmem:[%s7 + $0x2e0] sm:$0xff]
        %v1614 = vld [vmem:[%s7 + $0x2e8] sm:$0xff]
        %v1615 = vld [vmem:[%s7 + $0x2f0] sm:$0xff]
        %v1616 = vld [vmem:[%s7 + $0x2f8] sm:$0xff]
        %v1617 = vld [vmem:[%s7 + $0x300] sm:$0xff]
        %v1618 = vld [vmem:[%s7 + $0x308] sm:$0xff]
        %v1619 = vld [vmem:[%s7 + $0x310] sm:$0xff]
        %v1620 = vld [vmem:[%s7 + $0x318] sm:$0xff]
        %v1621 = vld [vmem:[%s7 + $0x320] sm:$0xff]
        %v1622 = vld [vmem:[%s7 + $0x328] sm:$0xff]
        %v1623 = vld [vmem:[%s7 + $0x330] sm:$0xff]
        %v1624 = vld [vmem:[%s7 + $0x338] sm:$0xff]
        %v1625 = vld [vmem:[%s7 + $0x340] sm:$0xff]
        %v1626 = vld [vmem:[%s7 + $0x348] sm:$0xff]
        %v1627 = vld [vmem:[%s7 + $0x350] sm:$0xff]
        %v1628 = vld [vmem:[%s7 + $0x358] sm:$0xff]
        %v1629 = vld [vmem:[%s7 + $0x360] sm:$0xff]
        %v1630 = vld [vmem:[%s7 + $0x368] sm:$0xff]
        %v1631 = vld [vmem:[%s7 + $0x370] sm:$0xff]
        %v1632 = vld [vmem:[%s7 + $0x378] sm:$0xff]
        %v1633 = vld [vmem:[%s7 + $0x380] sm:$0xff]
        %v1634 = vld [vmem:[%s7 + $0x388] sm:$0xff]
        %v1635 = vld [vmem:[%s7 + $0x390] sm:$0xff]
        %v1636 = vld [vmem:[%s7 + $0x398] sm:$0xff]
        %v1637 = vld [vmem:[%s7 + $0x3a0] sm:$0xff]
        %v1638 = vld [vmem:[%s7 + $0x3a8] sm:$0xff]
        %v1639 = vld [vmem:[%s7 + $0x3b0] sm:$0xff]
        %v1640 = vld [vmem:[%s7 + $0x3b8] sm:$0xff]
        %v1641 = vld [vmem:[%s7 + $0x3c0] sm:$0xff]
        %v1642 = vld [vmem:[%s7 + $0x3c8] sm:$0xff]
        %v1643 = vld [vmem:[%s7 + $0x3d0] sm:$0xff]
        %v1644 = vld [vmem:[%s7 + $0x3d8] sm:$0xff]
        %v1645 = vld [vmem:[%s7 + $0x3e0] sm:$0xff]
        %v1646 = vld [vmem:[%s7 + $0x3e8] sm:$0xff]
        %v1647 = vld [vmem:[%s7 + $0x3f0] sm:$0xff]
        %v1648 = vld [vmem:[%s7 + $0x3f8] sm:$0xff]
        %v1649 = vld [vmem:[%s7 + $0x400] sm:$0xff]
        %v1650 = vld [vmem:[%s7 + $0x408] sm:$0xff]
        %v1651 = vld [vmem:[%s7 + $0x410] sm:$0xff]
        %v1652 = vld [vmem:[%s7 + $0x418] sm:$0xff]
        %v1653 = vld [vmem:[%s7 + $0x420] sm:$0xff]
        %v1654 = vld [vmem:[%s7 + $0x428] sm:$0xff]
        %v1655 = vld [vmem:[%s7 + $0x430] sm:$0xff]
        %v1656 = vld [vmem:[%s7 + $0x438] sm:$0xff]
        %v1657 = vld [vmem:[%s7 + $0x440] sm:$0xff]
        %v1658 = vld [vmem:[%s7 + $0x448] sm:$0xff]
        %v1659 = vld [vmem:[%s7 + $0x450] sm:$0xff]
        %v1660 = vld [vmem:[%s7 + $0x458] sm:$0xff]
        %v1661 = vld [vmem:[%s7 + $0x460] sm:$0xff]
        %v1662 = vld [vmem:[%s7 + $0x468] sm:$0xff]
        %v1663 = vld [vmem:[%s7 + $0x470] sm:$0xff]
        %v1664 = vld [vmem:[%s7 + $0x478] sm:$0xff]
        %v1665 = vld [vmem:[%s7 + $0x480] sm:$0xff]
        %v1666 = vld [vmem:[%s7 + $0x488] sm:$0xff]
        %v1667 = vld [vmem:[%s7 + $0x490] sm:$0xff]
        %v1668 = vld [vmem:[%s7 + $0x498] sm:$0xff]
        %v1669 = vld [vmem:[%s7 + $0x4a0] sm:$0xff]
        %v1670 = vld [vmem:[%s7 + $0x4a8] sm:$0xff]
        %v1671 = vld [vmem:[%s7 + $0x4b0] sm:$0xff]
        %v1672 = vld [vmem:[%s7 + $0x4b8] sm:$0xff]
        %v1673 = vld [vmem:[%s7 + $0x4c0] sm:$0xff]
        %v1674 = vld [vmem:[%s7 + $0x4c8] sm:$0xff]
        %v1675 = vld [vmem:[%s7 + $0x4d0] sm:$0xff]
        %v1676 = vld [vmem:[%s7 + $0x4d8] sm:$0xff]
        %v1677 = vld [vmem:[%s7 + $0x4e0] sm:$0xff]
        %v1678 = vld [vmem:[%s7 + $0x4e8] sm:$0xff]
        %v1679 = vld [vmem:[%s7 + $0x4f0] sm:$0xff]
        %v1680 = vld [vmem:[%s7 + $0x4f8] sm:$0xff]
        %v1681 = vld [vmem:[%s8] sm:$0x3]
        %v1683 = vlaneseq
        %v1684 = vshrl.u32 %v1683, 7
        %v1685 = vsub.s32 0, %v1684
        %v1686 = vrot.slane %v1681, %v1685
        %v1687 = vlaneseq
        %v1688 = vshrl.u32 %v1687, 7
        %v1689 = vsub.s32 1, %v1688
        %v1690 = vrot.slane %v1681, %v1689
        %1693 = vmatprep.subr.mxu0 %v1522
        %1694 = vmatpush1.msra.mxu0 %v1521
        %1695 = vmatprep.subr.mxu0 %v1524
        %1696 = vmatpush1.msra.mxu0 %v1523
        %1697 = vmatprep.subr.mxu0 %v1526
        %1698 = vmatpush1.msra.mxu0 %v1525
        %1699 = vmatprep.subr.mxu0 %v1528
        %1700 = vmatpush1.msra.mxu0 %v1527
        %1701 = vmatprep.subr.mxu0 %v1530
        %1702 = vmatpush1.msra.mxu0 %v1529
        %1703 = vmatprep.subr.mxu0 %v1532
        %1704 = vmatpush1.msra.mxu0 %v1531
        %1705 = vmatprep.subr.mxu0 %v1534
        %1706 = vmatpush1.msra.mxu0 %v1533
        %1707 = vmatprep.subr.mxu0 %v1536
        %1708 = vmatpush1.msra.mxu0 %v1535
        %1709 = vmatprep.subr.mxu0 %v1538
        %1710 = vmatpush1.msra.mxu0 %v1537
        %1711 = vmatprep.subr.mxu0 %v1540
        %1712 = vmatpush1.msra.mxu0 %v1539
        %1713 = vmatprep.subr.mxu0 %v1542
        %1714 = vmatpush1.msra.mxu0 %v1541
        %1715 = vmatprep.subr.mxu0 %v1544
        %1716 = vmatpush1.msra.mxu0 %v1543
        %1717 = vmatprep.subr.mxu0 %v1546
        %1718 = vmatpush1.msra.mxu0 %v1545
        %1719 = vmatprep.subr.mxu0 %v1548
        %1720 = vmatpush1.msra.mxu0 %v1547
        %1721 = vmatprep.subr.mxu0 %v1550
        %1722 = vmatpush1.msra.mxu0 %v1549
        %1723 = vmatprep.subr.mxu0 %v1552
        %1724 = vmatpush1.msra.mxu0 %v1551
        %1725 = vmatprep.subr.mxu0 %v1554
        %1726 = vmatpush1.msra.mxu0 %v1553
        %1727 = vmatprep.subr.mxu0 %v1556
        %1728 = vmatpush1.msra.mxu0 %v1555
        %1729 = vmatprep.subr.mxu0 %v1558
        %1730 = vmatpush1.msra.mxu0 %v1557
        %1731 = vmatprep.subr.mxu0 %v1560
        %1732 = vmatpush1.msra.mxu0 %v1559
        %1733 = vmatprep.subr.mxu0 %v1562
        %1734 = vmatpush1.msra.mxu0 %v1561
        %1735 = vmatprep.subr.mxu0 %v1564
        %1736 = vmatpush1.msra.mxu0 %v1563
        %1737 = vmatprep.subr.mxu0 %v1566
        %1738 = vmatpush1.msra.mxu0 %v1565
        %1739 = vmatprep.subr.mxu0 %v1568
        %1740 = vmatpush1.msra.mxu0 %v1567
        %1741 = vmatprep.subr.mxu0 %v1570
        %1742 = vmatpush1.msra.mxu0 %v1569
        %1743 = vmatprep.subr.mxu0 %v1572
        %1744 = vmatpush1.msra.mxu0 %v1571
        %1745 = vmatprep.subr.mxu0 %v1574
        %1746 = vmatpush1.msra.mxu0 %v1573
        %1747 = vmatprep.subr.mxu0 %v1576
        %1748 = vmatpush1.msra.mxu0 %v1575
        %1749 = vmatprep.subr.mxu0 %v1578
        %1750 = vmatpush1.msra.mxu0 %v1577
        %1751 = vmatprep.subr.mxu0 %v1580
        %1752 = vmatpush1.msra.mxu0 %v1579
        %1753 = vmatprep.subr.mxu0 %v1582
        %1754 = vmatpush1.msra.mxu0 %v1581
        %1755 = vmatprep.subr.mxu0 %v1584
        %1756 = vmatpush1.msra.mxu0 %v1583
        %1757 = vmatprep.mubr.f32.mxu0 %v1503
        %1758 = vmatmul.mubr.f32.gmra.mrb[0].mxu0 %v1497
        %v1759 = vpop.f32.mrb[0].mxu0
        %v1760 = vadd.f32 %v1686, %v1759
        %v1761 = vpop.f32.mrb[0].mxu0
        %v1762 = vadd.f32 %v1690, %v1761
        %1763 = vmatprep.mubr.f32.mxu0 %v1502
        %1764 = vmatmul.mubr.f32.gmra.mrb[0].mxu0 %v1498
        %v1765 = vpop.f32.mrb[0].mxu0
        %v1766 = vadd.f32 %v1686, %v1765
        %v1767 = vpop.f32.mrb[0].mxu0
        %v1768 = vadd.f32 %v1690, %v1767
        %1769 = vdwg.mxu0
        %1770 = vmatprep.subr.mxu0 %v1586
        %1771 = vmatpush1.msra.mxu0 %v1585
        %1772 = vmatprep.subr.mxu0 %v1588
        %1773 = vmatpush1.msra.mxu0 %v1587
        %1774 = vmatprep.subr.mxu0 %v1590
        %1775 = vmatpush1.msra.mxu0 %v1589
        %1776 = vmatprep.subr.mxu0 %v1592
        %1777 = vmatpush1.msra.mxu0 %v1591
        %1778 = vmatprep.subr.mxu0 %v1594
        %1779 = vmatpush1.msra.mxu0 %v1593
        %1780 = vmatprep.subr.mxu0 %v1596
        %1781 = vmatpush1.msra.mxu0 %v1595
        %1782 = vmatprep.subr.mxu0 %v1598
        %1783 = vmatpush1.msra.mxu0 %v1597
        %1784 = vmatprep.subr.mxu0 %v1600
        %1785 = vmatpush1.msra.mxu0 %v1599
        %1786 = vmatprep.subr.mxu0 %v1602
        %1787 = vmatpush1.msra.mxu0 %v1601
        %1788 = vmatprep.subr.mxu0 %v1604
        %1789 = vmatpush1.msra.mxu0 %v1603
        %1790 = vmatprep.subr.mxu0 %v1606
        %1791 = vmatpush1.msra.mxu0 %v1605
        %1792 = vmatprep.subr.mxu0 %v1608
        %1793 = vmatpush1.msra.mxu0 %v1607
        %1794 = vmatprep.subr.mxu0 %v1610
        %1795 = vmatpush1.msra.mxu0 %v1609
        %1796 = vmatprep.subr.mxu0 %v1612
        %1797 = vmatpush1.msra.mxu0 %v1611
        %1798 = vmatprep.subr.mxu0 %v1614
        %1799 = vmatpush1.msra.mxu0 %v1613
        %1800 = vmatprep.subr.mxu0 %v1616
        %1801 = vmatpush1.msra.mxu0 %v1615
        %1802 = vmatprep.subr.mxu0 %v1618
        %1803 = vmatpush1.msra.mxu0 %v1617
        %1804 = vmatprep.subr.mxu0 %v1620
        %1805 = vmatpush1.msra.mxu0 %v1619
        %1806 = vmatprep.subr.mxu0 %v1622
        %1807 = vmatpush1.msra.mxu0 %v1621
        %1808 = vmatprep.subr.mxu0 %v1624
        %1809 = vmatpush1.msra.mxu0 %v1623
        %1810 = vmatprep.subr.mxu0 %v1626
        %1811 = vmatpush1.msra.mxu0 %v1625
        %1812 = vmatprep.subr.mxu0 %v1628
        %1813 = vmatpush1.msra.mxu0 %v1627
        %1814 = vmatprep.subr.mxu0 %v1630
        %1815 = vmatpush1.msra.mxu0 %v1629
        %1816 = vmatprep.subr.mxu0 %v1632
        %1817 = vmatpush1.msra.mxu0 %v1631
        %1818 = vmatprep.subr.mxu0 %v1634
        %1819 = vmatpush1.msra.mxu0 %v1633
        %1820 = vmatprep.subr.mxu0 %v1636
        %1821 = vmatpush1.msra.mxu0 %v1635
        %1822 = vmatprep.subr.mxu0 %v1638
        %1823 = vmatpush1.msra.mxu0 %v1637
        %1824 = vmatprep.subr.mxu0 %v1640
        %1825 = vmatpush1.msra.mxu0 %v1639
        %1826 = vmatprep.subr.mxu0 %v1642
        %1827 = vmatpush1.msra.mxu0 %v1641
        %1828 = vmatprep.subr.mxu0 %v1644
        %1829 = vmatpush1.msra.mxu0 %v1643
        %1830 = vmatprep.subr.mxu0 %v1646
        %1831 = vmatpush1.msra.mxu0 %v1645
        %1832 = vmatprep.subr.mxu0 %v1648
        %1833 = vmatpush1.msra.mxu0 %v1647
        %1834 = vmatprep.mubr.f32.mxu0 %v1513
        %1835 = vmatmul.mubr.f32.gmra.mrb[0].mxu0 %v1508
        %v1836 = vpop.f32.mrb[0].mxu0
        %v1837 = vadd.f32 %v1760, %v1836
        %v1838 = vpop.f32.mrb[0].mxu0
        %v1839 = vadd.f32 %v1762, %v1838
        %1840 = vmatprep.mubr.f32.mxu0 %v1512
        %1841 = vmatmul.mubr.f32.gmra.mrb[0].mxu0 %v1507
        %v1842 = vpop.f32.mrb[0].mxu0
        %v1843 = vadd.f32 %v1766, %v1842
        %v1844 = vpop.f32.mrb[0].mxu0
        %v1845 = vadd.f32 %v1768, %v1844
        %1846 = vdwg.mxu0
        %1847 = vmatprep.subr.mxu0 %v1650
        %1848 = vmatpush1.msra.mxu0 %v1649
        %1849 = vmatprep.subr.mxu0 %v1652
        %1850 = vmatpush1.msra.mxu0 %v1651
        %1851 = vmatprep.subr.mxu0 %v1654
        %1852 = vmatpush1.msra.mxu0 %v1653
        %1853 = vmatprep.subr.mxu0 %v1656
        %1854 = vmatpush1.msra.mxu0 %v1655
        %1855 = vmatprep.subr.mxu0 %v1658
        %1856 = vmatpush1.msra.mxu0 %v1657
        %1857 = vmatprep.subr.mxu0 %v1660
        %1858 = vmatpush1.msra.mxu0 %v1659
        %1859 = vmatprep.subr.mxu0 %v1662
        %1860 = vmatpush1.msra.mxu0 %v1661
        %1861 = vmatprep.subr.mxu0 %v1664
        %1862 = vmatpush1.msra.mxu0 %v1663
        %1863 = vmatprep.subr.mxu0 %v1666
        %1864 = vmatpush1.msra.mxu0 %v1665
        %1865 = vmatprep.subr.mxu0 %v1668
        %1866 = vmatpush1.msra.mxu0 %v1667
        %1867 = vmatprep.subr.mxu0 %v1670
        %1868 = vmatpush1.msra.mxu0 %v1669
        %1869 = vmatprep.subr.mxu0 %v1672
        %1870 = vmatpush1.msra.mxu0 %v1671
        %1871 = vmatprep.subr.mxu0 %v1674
        %1872 = vmatpush1.msra.mxu0 %v1673
        %1873 = vmatprep.subr.mxu0 %v1676
        %1874 = vmatpush1.msra.mxu0 %v1675
        %1875 = vmatprep.subr.mxu0 %v1678
        %1876 = vmatpush1.msra.mxu0 %v1677
        %1877 = vmatprep.subr.mxu0 %v1680
        %1878 = vmatpush1.msra.mxu0 %v1679
        %1879 = vmatprep.subr.mxu0 0.0
        %1880 = vmatpush1.msra.mxu0 0.0
        %1881 = vmatprep.subr.mxu0 0.0
        %1882 = vmatpush1.msra.mxu0 0.0
        %1883 = vmatprep.subr.mxu0 0.0
        %1884 = vmatpush1.msra.mxu0 0.0
        %1885 = vmatprep.subr.mxu0 0.0
        %1886 = vmatpush1.msra.mxu0 0.0
        %1887 = vmatprep.subr.mxu0 0.0
        %1888 = vmatpush1.msra.mxu0 0.0
        %1889 = vmatprep.subr.mxu0 0.0
        %1890 = vmatpush1.msra.mxu0 0.0
        %1891 = vmatprep.subr.mxu0 0.0
        %1892 = vmatpush1.msra.mxu0 0.0
        %1893 = vmatprep.subr.mxu0 0.0
        %1894 = vmatpush1.msra.mxu0 0.0
        %1895 = vmatprep.subr.mxu0 0.0
        %1896 = vmatpush1.msra.mxu0 0.0
        %1897 = vmatprep.subr.mxu0 0.0
        %1898 = vmatpush1.msra.mxu0 0.0
        %1899 = vmatprep.subr.mxu0 0.0
        %1900 = vmatpush1.msra.mxu0 0.0
        %1901 = vmatprep.subr.mxu0 0.0
        %1902 = vmatpush1.msra.mxu0 0.0
        %1903 = vmatprep.subr.mxu0 0.0
        %1904 = vmatpush1.msra.mxu0 0.0
        %1905 = vmatprep.subr.mxu0 0.0
        %1906 = vmatpush1.msra.mxu0 0.0
        %1907 = vmatprep.subr.mxu0 0.0
        %1908 = vmatpush1.msra.mxu0 0.0
        %1909 = vmatprep.subr.mxu0 0.0
        %1910 = vmatpush1.msra.mxu0 0.0
        %1911 = vmatprep.mubr.f32.mxu0 0.0
        %1912 = vmatmul.mubr.f32.gmra.mrb[0].mxu0 %v1518
        %v1913 = vpop.f32.mrb[0].mxu0
        %v1914 = vadd.f32 %v1837, %v1913
        %v1915 = vpop.f32.mrb[0].mxu0
        %v1916 = vadd.f32 %v1839, %v1915
        %1917 = vmatprep.mubr.f32.mxu0 0.0
        %1918 = vmatmul.mubr.f32.gmra.mrb[0].mxu0 %v1517
        %v1919 = vpop.f32.mrb[0].mxu0
        %v1920 = vadd.f32 %v1843, %v1919
        %v1921 = vpop.f32.mrb[0].mxu0
        %v1922 = vadd.f32 %v1845, %v1921
        %1923 = vdwg.mxu0
        %v1924 = vmax.f32 %v1914, 0.0
        %v1925 = vmax.f32 %v1916, 0.0
        %v1926 = vmax.f32 %v1920, 0.0
        %v1927 = vmax.f32 %v1922, 0.0
        %v1928 = vld [vmem:[%s9] sm:$0x1f]
        %vm1929 = vcmask 80896
        %v1931 = vsel %vm1929, %v1928, 0
        %vm1933 = vcmask 1041408
        %v1935 = vsel %vm1933, %v1926, 0
        %v1938 = vsel %vm1933, %v1927, 0
        %1940 = vmatprep.subr.mxu0 %v1925
        %1941 = vmatpush1.msra.mxu0 %v1924
        %1942 = vmatprep.subr.mxu0 %v1938
        %1943 = vmatpush1.msra.mxu0 %v1935
        %1944 = vmatprep.subr.mxu0 0.0
        %1945 = vmatpush1.msra.mxu0 0.0
        %1946 = vmatprep.subr.mxu0 0.0
        %1947 = vmatpush1.msra.mxu0 0.0
        %1948 = vmatprep.subr.mxu0 0.0
        %1949 = vmatpush1.msra.mxu0 0.0
        %1950 = vmatprep.subr.mxu0 0.0
        %1951 = vmatpush1.msra.mxu0 0.0
        %1952 = vmatprep.subr.mxu0 0.0
        %1953 = vmatpush1.msra.mxu0 0.0
        %1954 = vmatprep.subr.mxu0 0.0
        %1955 = vmatpush1.msra.mxu0 0.0
        %1956 = vmatprep.subr.mxu0 0.0
        %1957 = vmatpush1.msra.mxu0 0.0
        %1958 = vmatprep.subr.mxu0 0.0
        %1959 = vmatpush1.msra.mxu0 0.0
        %1960 = vmatprep.subr.mxu0 0.0
        %1961 = vmatpush1.msra.mxu0 0.0
        %1962 = vmatprep.subr.mxu0 0.0
        %1963 = vmatpush1.msra.mxu0 0.0
        %1964 = vmatprep.subr.mxu0 0.0
        %1965 = vmatpush1.msra.mxu0 0.0
        %1966 = vmatprep.subr.mxu0 0.0
        %1967 = vmatpush1.msra.mxu0 0.0
        %1968 = vmatprep.subr.mxu0 0.0
        %1969 = vmatpush1.msra.mxu0 0.0
        %1970 = vmatprep.subr.mxu0 0.0
        %1971 = vmatpush1.msra.mxu0 0.0
        %1972 = vmatprep.subr.mxu0 0.0
        %1973 = vmatpush1.msra.mxu0 0.0
        %1974 = vmatprep.subr.mxu0 0.0
        %1975 = vmatpush1.msra.mxu0 0.0
        %1976 = vmatprep.subr.mxu0 0.0
        %1977 = vmatpush1.msra.mxu0 0.0
        %1978 = vmatprep.subr.mxu0 0.0
        %1979 = vmatpush1.msra.mxu0 0.0
        %1980 = vmatprep.subr.mxu0 0.0
        %1981 = vmatpush1.msra.mxu0 0.0
        %1982 = vmatprep.subr.mxu0 0.0
        %1983 = vmatpush1.msra.mxu0 0.0
        %1984 = vmatprep.subr.mxu0 0.0
        %1985 = vmatpush1.msra.mxu0 0.0
        %1986 = vmatprep.subr.mxu0 0.0
        %1987 = vmatpush1.msra.mxu0 0.0
        %1988 = vmatprep.subr.mxu0 0.0
        %1989 = vmatpush1.msra.mxu0 0.0
        %1990 = vmatprep.subr.mxu0 0.0
        %1991 = vmatpush1.msra.mxu0 0.0
        %1992 = vmatprep.subr.mxu0 0.0
        %1993 = vmatpush1.msra.mxu0 0.0
        %1994 = vmatprep.subr.mxu0 0.0
        %1995 = vmatpush1.msra.mxu0 0.0
        %1996 = vmatprep.subr.mxu0 0.0
        %1997 = vmatpush1.msra.mxu0 0.0
        %1998 = vmatprep.subr.mxu0 0.0
        %1999 = vmatpush1.msra.mxu0 0.0
        %2000 = vmatprep.subr.mxu0 0.0
        %2001 = vmatpush1.msra.mxu0 0.0
        %2002 = vmatprep.subr.mxu0 0.0
        %2003 = vmatpush1.msra.mxu0 0.0
        %2004 = vmatprep.mubr.f32.mxu0 0.0
        %2005 = vmatmul.mubr.f32.gmra.mrb[0].mxu0 %v1931
        %v2006 = vpop.f32.mrb[0].mxu0
        %v2007 = vadd.f32 0.0, %v2006
        %v2008 = vpop.f32.mrb[0].mxu0
        %v2009 = vadd.f32 0.0, %v2008
        %2010 = vdwg.mxu0
        %v2011 = vld [vmem:[%s10] sm:$0x1f]
        %v2013 = vsel %vm1929, %v2011, 0
        %2015 = vmatprep.subr.mxu0 %v1925
        %2016 = vmatpush1.msra.mxu0 %v1924
        %2017 = vmatprep.subr.mxu0 %v1938
        %2018 = vmatpush1.msra.mxu0 %v1935
        %2019 = vmatprep.subr.mxu0 0.0
        %2020 = vmatpush1.msra.mxu0 0.0
        %2021 = vmatprep.subr.mxu0 0.0
        %2022 = vmatpush1.msra.mxu0 0.0
        %2023 = vmatprep.subr.mxu0 0.0
        %2024 = vmatpush1.msra.mxu0 0.0
        %2025 = vmatprep.subr.mxu0 0.0
        %2026 = vmatpush1.msra.mxu0 0.0
        %2027 = vmatprep.subr.mxu0 0.0
        %2028 = vmatpush1.msra.mxu0 0.0
        %2029 = vmatprep.subr.mxu0 0.0
        %2030 = vmatpush1.msra.mxu0 0.0
        %2031 = vmatprep.subr.mxu0 0.0
        %2032 = vmatpush1.msra.mxu0 0.0
        %2033 = vmatprep.subr.mxu0 0.0
        %2034 = vmatpush1.msra.mxu0 0.0
        %2035 = vmatprep.subr.mxu0 0.0
        %2036 = vmatpush1.msra.mxu0 0.0
        %2037 = vmatprep.subr.mxu0 0.0
        %2038 = vmatpush1.msra.mxu0 0.0
        %2039 = vmatprep.subr.mxu0 0.0
        %2040 = vmatpush1.msra.mxu0 0.0
        %2041 = vmatprep.subr.mxu0 0.0
        %2042 = vmatpush1.msra.mxu0 0.0
        %2043 = vmatprep.subr.mxu0 0.0
        %2044 = vmatpush1.msra.mxu0 0.0
        %2045 = vmatprep.subr.mxu0 0.0
        %2046 = vmatpush1.msra.mxu0 0.0
        %2047 = vmatprep.subr.mxu0 0.0
        %2048 = vmatpush1.msra.mxu0 0.0
        %2049 = vmatprep.subr.mxu0 0.0
        %2050 = vmatpush1.msra.mxu0 0.0
        %2051 = vmatprep.subr.mxu0 0.0
        %2052 = vmatpush1.msra.mxu0 0.0
        %2053 = vmatprep.subr.mxu0 0.0
        %2054 = vmatpush1.msra.mxu0 0.0
        %2055 = vmatprep.subr.mxu0 0.0
        %2056 = vmatpush1.msra.mxu0 0.0
        %2057 = vmatprep.subr.mxu0 0.0
        %2058 = vmatpush1.msra.mxu0 0.0
        %2059 = vmatprep.subr.mxu0 0.0
        %2060 = vmatpush1.msra.mxu0 0.0
        %2061 = vmatprep.subr.mxu0 0.0
        %2062 = vmatpush1.msra.mxu0 0.0
        %2063 = vmatprep.subr.mxu0 0.0
        %2064 = vmatpush1.msra.mxu0 0.0
        %2065 = vmatprep.subr.mxu0 0.0
        %2066 = vmatpush1.msra.mxu0 0.0
        %2067 = vmatprep.subr.mxu0 0.0
        %2068 = vmatpush1.msra.mxu0 0.0
        %2069 = vmatprep.subr.mxu0 0.0
        %2070 = vmatpush1.msra.mxu0 0.0
        %2071 = vmatprep.subr.mxu0 0.0
        %2072 = vmatpush1.msra.mxu0 0.0
        %2073 = vmatprep.subr.mxu0 0.0
        %2074 = vmatpush1.msra.mxu0 0.0
        %2075 = vmatprep.subr.mxu0 0.0
        %2076 = vmatpush1.msra.mxu0 0.0
        %2077 = vmatprep.subr.mxu0 0.0
        %2078 = vmatpush1.msra.mxu0 0.0
        %2079 = vmatprep.mubr.f32.mxu0 0.0
        %2080 = vmatmul.mubr.f32.gmra.mrb[0].mxu0 %v2013
        %v2081 = vpop.f32.mrb[0].mxu0
        %v2082 = vadd.f32 0.0, %v2081
        %v2083 = vpop.f32.mrb[0].mxu0
        %v2084 = vadd.f32 0.0, %v2083
        %2085 = vdwg.mxu0
        %v2086 = vmax.f32 %v2007, %v2082
        %v2087 = vmax.f32 %v2009, %v2084
        %v2088 = vld [vmem:[%s11] sm:$0xff]
        %v2089 = vld [vmem:[%s11 + $0x8] sm:$0xff]
        %v2090 = vld [vmem:[%s11 + $0x10] sm:$0xff]
        %v2091 = vld [vmem:[%s11 + $0x18] sm:$0xff]
        %v2092 = vld [vmem:[%s11 + $0x20] sm:$0xff]
        %v2093 = vld [vmem:[%s11 + $0x28] sm:$0xff]
        %v2094 = vld [vmem:[%s11 + $0x30] sm:$0xff]
        %v2095 = vld [vmem:[%s11 + $0x38] sm:$0xff]
        %v2096 = vld [vmem:[%s11 + $0x40] sm:$0xff]
        %v2097 = vld [vmem:[%s11 + $0x48] sm:$0xff]
        %v2098 = vld [vmem:[%s11 + $0x50] sm:$0xff]
        %v2099 = vld [vmem:[%s11 + $0x58] sm:$0xff]
        %v2100 = vld [vmem:[%s11 + $0x60] sm:$0xff]
        %v2101 = vld [vmem:[%s11 + $0x68] sm:$0xff]
        %v2102 = vld [vmem:[%s11 + $0x70] sm:$0xff]
        %v2103 = vld [vmem:[%s11 + $0x78] sm:$0xff]
        %v2104 = vld [vmem:[%s11 + $0x80] sm:$0xff]
        %v2105 = vld [vmem:[%s11 + $0x88] sm:$0xff]
        %v2106 = vld [vmem:[%s11 + $0x90] sm:$0xff]
        %v2107 = vld [vmem:[%s11 + $0x98] sm:$0xff]
        %vm2108 = vcmask 261120
        %v2110 = vsel %vm2108, %v2087, 0
        %2112 = vmatprep.subr.mxu0 0.0
        %2113 = vmatpush1.msra.mxu0 %v2088
        %2114 = vmatprep.subr.mxu0 0.0
        %2115 = vmatpush1.msra.mxu0 %v2089
        %2116 = vmatprep.subr.mxu0 0.0
        %2117 = vmatpush1.msra.mxu0 %v2090
        %2118 = vmatprep.subr.mxu0 0.0
        %2119 = vmatpush1.msra.mxu0 %v2091
        %2120 = vmatprep.subr.mxu0 0.0
        %2121 = vmatpush1.msra.mxu0 %v2092
        %2122 = vmatprep.subr.mxu0 0.0
        %2123 = vmatpush1.msra.mxu0 %v2093
        %2124 = vmatprep.subr.mxu0 0.0
        %2125 = vmatpush1.msra.mxu0 %v2094
        %2126 = vmatprep.subr.mxu0 0.0
        %2127 = vmatpush1.msra.mxu0 %v2095
        %2128 = vmatprep.subr.mxu0 0.0
        %2129 = vmatpush1.msra.mxu0 %v2096
        %2130 = vmatprep.subr.mxu0 0.0
        %2131 = vmatpush1.msra.mxu0 %v2097
        %2132 = vmatprep.subr.mxu0 0.0
        %2133 = vmatpush1.msra.mxu0 %v2098
        %2134 = vmatprep.subr.mxu0 0.0
        %2135 = vmatpush1.msra.mxu0 %v2099
        %2136 = vmatprep.subr.mxu0 0.0
        %2137 = vmatpush1.msra.mxu0 %v2100
        %2138 = vmatprep.subr.mxu0 0.0
        %2139 = vmatpush1.msra.mxu0 %v2101
        %2140 = vmatprep.subr.mxu0 0.0
        %2141 = vmatpush1.msra.mxu0 %v2102
        %2142 = vmatprep.subr.mxu0 0.0
        %2143 = vmatpush1.msra.mxu0 %v2103
        %2144 = vmatprep.subr.mxu0 0.0
        %2145 = vmatpush1.msra.mxu0 %v2104
        %2146 = vmatprep.subr.mxu0 0.0
        %2147 = vmatpush1.msra.mxu0 %v2105
        %2148 = vmatprep.subr.mxu0 0.0
        %2149 = vmatpush1.msra.mxu0 %v2106
        %2150 = vmatprep.subr.mxu0 0.0
        %2151 = vmatpush1.msra.mxu0 %v2107
        %2152 = vmatprep.subr.mxu0 0.0
        %2153 = vmatpush1.msra.mxu0 0.0
        %2154 = vmatprep.subr.mxu0 0.0
        %2155 = vmatpush1.msra.mxu0 0.0
        %2156 = vmatprep.subr.mxu0 0.0
        %2157 = vmatpush1.msra.mxu0 0.0
        %2158 = vmatprep.subr.mxu0 0.0
        %2159 = vmatpush1.msra.mxu0 0.0
        %2160 = vmatprep.subr.mxu0 0.0
        %2161 = vmatpush1.msra.mxu0 0.0
        %2162 = vmatprep.subr.mxu0 0.0
        %2163 = vmatpush1.msra.mxu0 0.0
        %2164 = vmatprep.subr.mxu0 0.0
        %2165 = vmatpush1.msra.mxu0 0.0
        %2166 = vmatprep.subr.mxu0 0.0
        %2167 = vmatpush1.msra.mxu0 0.0
        %2168 = vmatprep.subr.mxu0 0.0
        %2169 = vmatpush1.msra.mxu0 0.0
        %2170 = vmatprep.subr.mxu0 0.0
        %2171 = vmatpush1.msra.mxu0 0.0
        %2172 = vmatprep.subr.mxu0 0.0
        %2173 = vmatpush1.msra.mxu0 0.0
        %2174 = vmatprep.subr.mxu0 0.0
        %2175 = vmatpush1.msra.mxu0 0.0
        %2176 = vmatprep.mubr.f32.mxu0 %v2110
        %2177 = vmatmul.mubr.f32.gmra.mrb[0].mxu0 %v2086
        %v2178 = vpop.f32.mrb[0].mxu0
        %v2179 = vadd.f32 0.0, %v2178
        %v2180 = vpop.f32.mrb[0].mxu0
        %2181 = vdwg.mxu0
        %v2182 = vld [vmem:[%s12] sm:$0xff]
        %v2183 = vld [vmem:[%s12 + $0x8] sm:$0xff]
        %v2184 = vld [vmem:[%s12 + $0x10] sm:$0xff]
        %v2185 = vld [vmem:[%s12 + $0x18] sm:$0xff]
        %v2186 = vld [vmem:[%s12 + $0x20] sm:$0xff]
        %v2187 = vld [vmem:[%s12 + $0x28] sm:$0xff]
        %v2188 = vld [vmem:[%s12 + $0x30] sm:$0xff]
        %v2189 = vld [vmem:[%s12 + $0x38] sm:$0xff]
        %v2190 = vld [vmem:[%s12 + $0x40] sm:$0xff]
        %v2191 = vld [vmem:[%s12 + $0x48] sm:$0xff]
        %v2192 = vld [vmem:[%s12 + $0x50] sm:$0xff]
        %v2193 = vld [vmem:[%s12 + $0x58] sm:$0xff]
        %v2194 = vld [vmem:[%s12 + $0x60] sm:$0xff]
        %v2195 = vld [vmem:[%s12 + $0x68] sm:$0xff]
        %v2196 = vld [vmem:[%s12 + $0x70] sm:$0xff]
        %v2197 = vld [vmem:[%s12 + $0x78] sm:$0xff]
        %v2198 = vld [vmem:[%s12 + $0x80] sm:$0xff]
        %v2199 = vld [vmem:[%s12 + $0x88] sm:$0xff]
        %v2200 = vld [vmem:[%s12 + $0x90] sm:$0xff]
        %v2201 = vld [vmem:[%s12 + $0x98] sm:$0xff]
        %2202 = vmatprep.subr.mxu0 0.0
        %2203 = vmatpush1.msra.mxu0 %v2182
        %2204 = vmatprep.subr.mxu0 0.0
        %2205 = vmatpush1.msra.mxu0 %v2183
        %2206 = vmatprep.subr.mxu0 0.0
        %2207 = vmatpush1.msra.mxu0 %v2184
        %2208 = vmatprep.subr.mxu0 0.0
        %2209 = vmatpush1.msra.mxu0 %v2185
        %2210 = vmatprep.subr.mxu0 0.0
        %2211 = vmatpush1.msra.mxu0 %v2186
        %2212 = vmatprep.subr.mxu0 0.0
        %2213 = vmatpush1.msra.mxu0 %v2187
        %2214 = vmatprep.subr.mxu0 0.0
        %2215 = vmatpush1.msra.mxu0 %v2188
        %2216 = vmatprep.subr.mxu0 0.0
        %2217 = vmatpush1.msra.mxu0 %v2189
        %2218 = vmatprep.subr.mxu0 0.0
        %2219 = vmatpush1.msra.mxu0 %v2190
        %2220 = vmatprep.subr.mxu0 0.0
        %2221 = vmatpush1.msra.mxu0 %v2191
        %2222 = vmatprep.subr.mxu0 0.0
        %2223 = vmatpush1.msra.mxu0 %v2192
        %2224 = vmatprep.subr.mxu0 0.0
        %2225 = vmatpush1.msra.mxu0 %v2193
        %2226 = vmatprep.subr.mxu0 0.0
        %2227 = vmatpush1.msra.mxu0 %v2194
        %2228 = vmatprep.subr.mxu0 0.0
        %2229 = vmatpush1.msra.mxu0 %v2195
        %2230 = vmatprep.subr.mxu0 0.0
        %2231 = vmatpush1.msra.mxu0 %v2196
        %2232 = vmatprep.subr.mxu0 0.0
        %2233 = vmatpush1.msra.mxu0 %v2197
        %2234 = vmatprep.subr.mxu0 0.0
        %2235 = vmatpush1.msra.mxu0 %v2198
        %2236 = vmatprep.subr.mxu0 0.0
        %2237 = vmatpush1.msra.mxu0 %v2199
        %2238 = vmatprep.subr.mxu0 0.0
        %2239 = vmatpush1.msra.mxu0 %v2200
        %2240 = vmatprep.subr.mxu0 0.0
        %2241 = vmatpush1.msra.mxu0 %v2201
        %2242 = vmatprep.subr.mxu0 0.0
        %2243 = vmatpush1.msra.mxu0 0.0
        %2244 = vmatprep.subr.mxu0 0.0
        %2245 = vmatpush1.msra.mxu0 0.0
        %2246 = vmatprep.subr.mxu0 0.0
        %2247 = vmatpush1.msra.mxu0 0.0
        %2248 = vmatprep.subr.mxu0 0.0
        %2249 = vmatpush1.msra.mxu0 0.0
        %2250 = vmatprep.subr.mxu0 0.0
        %2251 = vmatpush1.msra.mxu0 0.0
        %2252 = vmatprep.subr.mxu0 0.0
        %2253 = vmatpush1.msra.mxu0 0.0
        %2254 = vmatprep.subr.mxu0 0.0
        %2255 = vmatpush1.msra.mxu0 0.0
        %2256 = vmatprep.subr.mxu0 0.0
        %2257 = vmatpush1.msra.mxu0 0.0
        %2258 = vmatprep.subr.mxu0 0.0
        %2259 = vmatpush1.msra.mxu0 0.0
        %2260 = vmatprep.subr.mxu0 0.0
        %2261 = vmatpush1.msra.mxu0 0.0
        %2262 = vmatprep.subr.mxu0 0.0
        %2263 = vmatpush1.msra.mxu0 0.0
        %2264 = vmatprep.subr.mxu0 0.0
        %2265 = vmatpush1.msra.mxu0 0.0
        %2266 = vmatprep.mubr.f32.mxu0 %v2110
        %2267 = vmatmul.mubr.f32.gmra.mrb[0].mxu0 %v2086
        %v2268 = vpop.f32.mrb[0].mxu0
        %v2269 = vadd.f32 0.0, %v2268
        %v2270 = vpop.f32.mrb[0].mxu0
        %2271 = vdwg.mxu0
        %v2272 = vmax.f32 %v2179, %v2269
        %v2274 = vrot.slane %v2272, 1
        %v2275 = vrot.slane %v2272, 2
        %v2276 = vrot.slane %v2272, 3
        %v2277 = vrot.slane %v2272, 4
        %v2278 = vcombine.low %v2272, %v2274
        %v2279 = vcombine.low %v2275, %v2276
        %v2281 = vunpack.c.l.s4 1966171168
        %v2282 = vunpack.c.0.s8 %v2281
        %v2283 = vlaneseq
        %v2284 = vshrl.u32 %v2283, 7
        %v2285 = vsub.s32 %v2282, %v2284
        %v2286 = vrot.slane %v2278, %v2285
        %v2288 = vunpack.c.l.s4 1966171168
        %v2289 = vunpack.c.0.s8 %v2288
        %v2290 = vlaneseq
        %v2291 = vshrl.u32 %v2290, 7
        %v2292 = vsub.s32 %v2289, %v2291
        %v2293 = vrot.slane %v2279, %v2292
        %v2295 = vunpack.c.l.s4 1966171168
        %v2296 = vunpack.c.0.s8 %v2295
        %v2297 = vlaneseq
        %v2298 = vshrl.u32 %v2297, 7
        %v2299 = vsub.s32 %v2296, %v2298
        %v2300 = vrot.slane %v2277, %v2299
        %v2301 = vcombine.low %v2286, %v2293
        %v2303 = vunpack.c.l.s4 1966171168
        %v2304 = vunpack.c.0.s8 %v2303
        %v2305 = vlaneseq
        %v2306 = vshrl.u32 %v2305, 7
        %v2307 = vsub.s32 %v2304, %v2306
        %v2308 = vrot.slane %v2301, %v2307
        %v2310 = vunpack.c.l.s4 1966171168
        %v2311 = vunpack.c.0.s8 %v2310
        %v2312 = vlaneseq
        %v2313 = vshrl.u32 %v2312, 7
        %v2314 = vsub.s32 %v2311, %v2313
        %v2315 = vrot.slane %v2300, %v2314
        %v2316 = vcombine.low %v2308, %v2315
        %v2318 = vlaneseq
        %vm2319 = vcmp.ge.s32.totalorder %v2318, 0
        %vm2320 = vcmp.lt.s32.totalorder %v2318, 640
        %vm2321 = vmand %vm2319, %vm2320
        %s2322 = sshra.s32 %s607, 3
        %s2323 = sand.u32 %s607, 7
        %s2324 = sshra.s32 %s607, 3
        %s2325 = sand.u32 %s607, 7
        %s2326 = smul.u32 %s2322, 5
        %s2327 = smul.u32 %s2326, 8
        %s2328 = sadd.s32 %s2327, %s2325
        %s2329 = scalar_lea.vmem [#allocation2], %s2328
        %2330 = vst.msk [vmem:[%s2329] ss:$8 sm:$0xf] %vm2321, %v2316
        %2331 = vst.msk [vmem:[%s2329] ss:$8 sm:$0x10] %vm2321, %v2316
      $region101: #{lenet_forward.1} parent=95 // loop_footer
        %s611 = sadd.s32 1, %s607
      $region102: #{lenet_forward.1} parent=95 // loop_footer_branch
        %606 = sbr.rel target = $region98
      $region103: #{lenet_forward.1} parent=95 // loop_exit
        _
      %v2332 = vld [vmem:[#allocation2] sm:$0xff]
      %v2333 = vld [vmem:[#allocation2 + $0x8] sm:$0xff]
      %v2334 = vld [vmem:[#allocation2 + $0x10] sm:$0xff]
      %v2335 = vld [vmem:[#allocation2 + $0x18] sm:$0xff]
      %v2336 = vld [vmem:[#allocation2 + $0x20] sm:$0xff]
      %v2337 = vld [vmem:[%s13] sm:$0xff]
      %v2338 = vld [vmem:[%s13 + $0x8] sm:$0xff]
      %v2339 = vld [vmem:[%s13 + $0x10] sm:$0xff]
      %v2340 = vld [vmem:[%s13 + $0x18] sm:$0xff]
      %v2341 = vld [vmem:[%s13 + $0x20] sm:$0xff]
      %v2342 = vld [vmem:[%s13 + $0x28] sm:$0xff]
      %v2343 = vld [vmem:[%s13 + $0x30] sm:$0xff]
      %v2344 = vld [vmem:[%s13 + $0x38] sm:$0xff]
      %v2345 = vld [vmem:[%s13 + $0x40] sm:$0xff]
      %v2346 = vld [vmem:[%s13 + $0x48] sm:$0xff]
      %v2347 = vld [vmem:[%s13 + $0x50] sm:$0xff]
      %v2348 = vld [vmem:[%s13 + $0x58] sm:$0xff]
      %v2349 = vld [vmem:[%s13 + $0x60] sm:$0xff]
      %v2350 = vld [vmem:[%s13 + $0x68] sm:$0xff]
      %v2351 = vld [vmem:[%s13 + $0x70] sm:$0xff]
      %v2352 = vld [vmem:[%s13 + $0x78] sm:$0xff]
      %v2353 = vld [vmem:[%s13 + $0x80] sm:$0xff]
      %v2354 = vld [vmem:[%s13 + $0x88] sm:$0xff]
      %v2355 = vld [vmem:[%s13 + $0x90] sm:$0xff]
      %v2356 = vld [vmem:[%s13 + $0x98] sm:$0xff]
      %v2357 = vld [vmem:[%s13 + $0xa0] sm:$0xff]
      %v2358 = vld [vmem:[%s13 + $0xa8] sm:$0xff]
      %v2359 = vld [vmem:[%s13 + $0xb0] sm:$0xff]
      %v2360 = vld [vmem:[%s13 + $0xb8] sm:$0xff]
      %v2361 = vld [vmem:[%s13 + $0xc0] sm:$0xff]
      %v2362 = vld [vmem:[%s13 + $0xc8] sm:$0xff]
      %v2363 = vld [vmem:[%s13 + $0xd0] sm:$0xff]
      %v2364 = vld [vmem:[%s13 + $0xd8] sm:$0xff]
      %v2365 = vld [vmem:[%s13 + $0xe0] sm:$0xff]
      %v2366 = vld [vmem:[%s13 + $0xe8] sm:$0xff]
      %v2367 = vld [vmem:[%s13 + $0xf0] sm:$0xff]
      %v2368 = vld [vmem:[%s13 + $0xf8] sm:$0xff]
      %v2369 = vld [vmem:[%s13 + $0x100] sm:$0xff]
      %v2370 = vld [vmem:[%s13 + $0x108] sm:$0xff]
      %v2371 = vld [vmem:[%s13 + $0x110] sm:$0xff]
      %v2372 = vld [vmem:[%s13 + $0x118] sm:$0xff]
      %v2373 = vld [vmem:[%s13 + $0x120] sm:$0xff]
      %v2374 = vld [vmem:[%s13 + $0x128] sm:$0xff]
      %v2375 = vld [vmem:[%s13 + $0x130] sm:$0xff]
      %v2376 = vld [vmem:[%s13 + $0x138] sm:$0xff]
      %v2377 = vld [vmem:[%s13 + $0x140] sm:$0xff]
      %v2378 = vld [vmem:[%s13 + $0x148] sm:$0xff]
      %v2379 = vld [vmem:[%s13 + $0x150] sm:$0xff]
      %v2380 = vld [vmem:[%s13 + $0x158] sm:$0xff]
      %v2381 = vld [vmem:[%s13 + $0x160] sm:$0xff]
      %v2382 = vld [vmem:[%s13 + $0x168] sm:$0xff]
      %v2383 = vld [vmem:[%s13 + $0x170] sm:$0xff]
      %v2384 = vld [vmem:[%s13 + $0x178] sm:$0xff]
      %v2385 = vld [vmem:[%s13 + $0x180] sm:$0xff]
      %v2386 = vld [vmem:[%s13 + $0x188] sm:$0xff]
      %v2387 = vld [vmem:[%s13 + $0x190] sm:$0xff]
      %v2388 = vld [vmem:[%s13 + $0x198] sm:$0xff]
      %v2389 = vld [vmem:[%s13 + $0x1a0] sm:$0xff]
      %v2390 = vld [vmem:[%s13 + $0x1a8] sm:$0xff]
      %v2391 = vld [vmem:[%s13 + $0x1b0] sm:$0xff]
      %v2392 = vld [vmem:[%s13 + $0x1b8] sm:$0xff]
      %v2393 = vld [vmem:[%s13 + $0x1c0] sm:$0xff]
      %v2394 = vld [vmem:[%s13 + $0x1c8] sm:$0xff]
      %v2395 = vld [vmem:[%s13 + $0x1d0] sm:$0xff]
      %v2396 = vld [vmem:[%s13 + $0x1d8] sm:$0xff]
      %v2397 = vld [vmem:[%s13 + $0x1e0] sm:$0xff]
      %v2398 = vld [vmem:[%s13 + $0x1e8] sm:$0xff]
      %v2399 = vld [vmem:[%s13 + $0x1f0] sm:$0xff]
      %v2400 = vld [vmem:[%s13 + $0x1f8] sm:$0xff]
      %v2401 = vld [vmem:[%s13 + $0x200] sm:$0xff]
      %v2402 = vld [vmem:[%s13 + $0x208] sm:$0xff]
      %v2403 = vld [vmem:[%s13 + $0x210] sm:$0xff]
      %v2404 = vld [vmem:[%s13 + $0x218] sm:$0xff]
      %v2405 = vld [vmem:[%s13 + $0x220] sm:$0xff]
      %v2406 = vld [vmem:[%s13 + $0x228] sm:$0xff]
      %v2407 = vld [vmem:[%s13 + $0x230] sm:$0xff]
      %v2408 = vld [vmem:[%s13 + $0x238] sm:$0xff]
      %v2409 = vld [vmem:[%s13 + $0x240] sm:$0xff]
      %v2410 = vld [vmem:[%s13 + $0x248] sm:$0xff]
      %v2411 = vld [vmem:[%s13 + $0x250] sm:$0xff]
      %v2412 = vld [vmem:[%s13 + $0x258] sm:$0xff]
      %v2413 = vld [vmem:[%s13 + $0x260] sm:$0xff]
      %v2414 = vld [vmem:[%s13 + $0x268] sm:$0xff]
      %v2415 = vld [vmem:[%s13 + $0x270] sm:$0xff]
      %v2416 = vld [vmem:[%s13 + $0x278] sm:$0xff]
      %v2417 = vld [vmem:[%s14] sm:$0x1]
      %v2419 = vlaneseq
      %v2420 = vshrl.u32 %v2419, 7
      %v2421 = vsub.s32 0, %v2420
      %v2422 = vrot.slane %v2417, %v2421
      %2424 = vmatprep.subr.mxu0 0.0
      %2425 = vmatpush1.msra.mxu0 %v2337
      %2426 = vmatprep.subr.mxu0 0.0
      %2427 = vmatpush1.msra.mxu0 %v2338
      %2428 = vmatprep.subr.mxu0 0.0
      %2429 = vmatpush1.msra.mxu0 %v2339
      %2430 = vmatprep.subr.mxu0 0.0
      %2431 = vmatpush1.msra.mxu0 %v2340
      %2432 = vmatprep.subr.mxu0 0.0
      %2433 = vmatpush1.msra.mxu0 %v2341
      %2434 = vmatprep.subr.mxu0 0.0
      %2435 = vmatpush1.msra.mxu0 %v2342
      %2436 = vmatprep.subr.mxu0 0.0
      %2437 = vmatpush1.msra.mxu0 %v2343
      %2438 = vmatprep.subr.mxu0 0.0
      %2439 = vmatpush1.msra.mxu0 %v2344
      %2440 = vmatprep.subr.mxu0 0.0
      %2441 = vmatpush1.msra.mxu0 %v2345
      %2442 = vmatprep.subr.mxu0 0.0
      %2443 = vmatpush1.msra.mxu0 %v2346
      %2444 = vmatprep.subr.mxu0 0.0
      %2445 = vmatpush1.msra.mxu0 %v2347
      %2446 = vmatprep.subr.mxu0 0.0
      %2447 = vmatpush1.msra.mxu0 %v2348
      %2448 = vmatprep.subr.mxu0 0.0
      %2449 = vmatpush1.msra.mxu0 %v2349
      %2450 = vmatprep.subr.mxu0 0.0
      %2451 = vmatpush1.msra.mxu0 %v2350
      %2452 = vmatprep.subr.mxu0 0.0
      %2453 = vmatpush1.msra.mxu0 %v2351
      %2454 = vmatprep.subr.mxu0 0.0
      %2455 = vmatpush1.msra.mxu0 %v2352
      %2456 = vmatprep.subr.mxu0 0.0
      %2457 = vmatpush1.msra.mxu0 %v2353
      %2458 = vmatprep.subr.mxu0 0.0
      %2459 = vmatpush1.msra.mxu0 %v2354
      %2460 = vmatprep.subr.mxu0 0.0
      %2461 = vmatpush1.msra.mxu0 %v2355
      %2462 = vmatprep.subr.mxu0 0.0
      %2463 = vmatpush1.msra.mxu0 %v2356
      %2464 = vmatprep.subr.mxu0 0.0
      %2465 = vmatpush1.msra.mxu0 %v2357
      %2466 = vmatprep.subr.mxu0 0.0
      %2467 = vmatpush1.msra.mxu0 %v2358
      %2468 = vmatprep.subr.mxu0 0.0
      %2469 = vmatpush1.msra.mxu0 %v2359
      %2470 = vmatprep.subr.mxu0 0.0
      %2471 = vmatpush1.msra.mxu0 %v2360
      %2472 = vmatprep.subr.mxu0 0.0
      %2473 = vmatpush1.msra.mxu0 %v2361
      %2474 = vmatprep.subr.mxu0 0.0
      %2475 = vmatpush1.msra.mxu0 %v2362
      %2476 = vmatprep.subr.mxu0 0.0
      %2477 = vmatpush1.msra.mxu0 %v2363
      %2478 = vmatprep.subr.mxu0 0.0
      %2479 = vmatpush1.msra.mxu0 %v2364
      %2480 = vmatprep.subr.mxu0 0.0
      %2481 = vmatpush1.msra.mxu0 %v2365
      %2482 = vmatprep.subr.mxu0 0.0
      %2483 = vmatpush1.msra.mxu0 %v2366
      %2484 = vmatprep.subr.mxu0 0.0
      %2485 = vmatpush1.msra.mxu0 %v2367
      %2486 = vmatprep.subr.mxu0 0.0
      %2487 = vmatpush1.msra.mxu0 %v2368
      %2488 = vmatprep.mubr.f32.mxu0 %v2333
      %2489 = vmatmul.mubr.f32.gmra.mrb[0].mxu0 %v2332
      %v2490 = vpop.f32.mrb[0].mxu0
      %v2491 = vadd.f32 %v2422, %v2490
      %v2492 = vpop.f32.mrb[0].mxu0
      %2493 = vdwg.mxu0
      %2494 = vmatprep.subr.mxu0 0.0
      %2495 = vmatpush1.msra.mxu0 %v2369
      %2496 = vmatprep.subr.mxu0 0.0
      %2497 = vmatpush1.msra.mxu0 %v2370
      %2498 = vmatprep.subr.mxu0 0.0
      %2499 = vmatpush1.msra.mxu0 %v2371
      %2500 = vmatprep.subr.mxu0 0.0
      %2501 = vmatpush1.msra.mxu0 %v2372
      %2502 = vmatprep.subr.mxu0 0.0
      %2503 = vmatpush1.msra.mxu0 %v2373
      %2504 = vmatprep.subr.mxu0 0.0
      %2505 = vmatpush1.msra.mxu0 %v2374
      %2506 = vmatprep.subr.mxu0 0.0
      %2507 = vmatpush1.msra.mxu0 %v2375
      %2508 = vmatprep.subr.mxu0 0.0
      %2509 = vmatpush1.msra.mxu0 %v2376
      %2510 = vmatprep.subr.mxu0 0.0
      %2511 = vmatpush1.msra.mxu0 %v2377
      %2512 = vmatprep.subr.mxu0 0.0
      %2513 = vmatpush1.msra.mxu0 %v2378
      %2514 = vmatprep.subr.mxu0 0.0
      %2515 = vmatpush1.msra.mxu0 %v2379
      %2516 = vmatprep.subr.mxu0 0.0
      %2517 = vmatpush1.msra.mxu0 %v2380
      %2518 = vmatprep.subr.mxu0 0.0
      %2519 = vmatpush1.msra.mxu0 %v2381
      %2520 = vmatprep.subr.mxu0 0.0
      %2521 = vmatpush1.msra.mxu0 %v2382
      %2522 = vmatprep.subr.mxu0 0.0
      %2523 = vmatpush1.msra.mxu0 %v2383
      %2524 = vmatprep.subr.mxu0 0.0
      %2525 = vmatpush1.msra.mxu0 %v2384
      %2526 = vmatprep.subr.mxu0 0.0
      %2527 = vmatpush1.msra.mxu0 %v2385
      %2528 = vmatprep.subr.mxu0 0.0
      %2529 = vmatpush1.msra.mxu0 %v2386
      %2530 = vmatprep.subr.mxu0 0.0
      %2531 = vmatpush1.msra.mxu0 %v2387
      %2532 = vmatprep.subr.mxu0 0.0
      %2533 = vmatpush1.msra.mxu0 %v2388
      %2534 = vmatprep.subr.mxu0 0.0
      %2535 = vmatpush1.msra.mxu0 %v2389
      %2536 = vmatprep.subr.mxu0 0.0
      %2537 = vmatpush1.msra.mxu0 %v2390
      %2538 = vmatprep.subr.mxu0 0.0
      %2539 = vmatpush1.msra.mxu0 %v2391
      %2540 = vmatprep.subr.mxu0 0.0
      %2541 = vmatpush1.msra.mxu0 %v2392
      %2542 = vmatprep.subr.mxu0 0.0
      %2543 = vmatpush1.msra.mxu0 %v2393
      %2544 = vmatprep.subr.mxu0 0.0
      %2545 = vmatpush1.msra.mxu0 %v2394
      %2546 = vmatprep.subr.mxu0 0.0
      %2547 = vmatpush1.msra.mxu0 %v2395
      %2548 = vmatprep.subr.mxu0 0.0
      %2549 = vmatpush1.msra.mxu0 %v2396
      %2550 = vmatprep.subr.mxu0 0.0
      %2551 = vmatpush1.msra.mxu0 %v2397
      %2552 = vmatprep.subr.mxu0 0.0
      %2553 = vmatpush1.msra.mxu0 %v2398
      %2554 = vmatprep.subr.mxu0 0.0
      %2555 = vmatpush1.msra.mxu0 %v2399
      %2556 = vmatprep.subr.mxu0 0.0
      %2557 = vmatpush1.msra.mxu0 %v2400
      %2558 = vmatprep.mubr.f32.mxu0 %v2335
      %2559 = vmatmul.mubr.f32.gmra.mrb[0].mxu0 %v2334
      %v2560 = vpop.f32.mrb[0].mxu0
      %v2561 = vadd.f32 %v2491, %v2560
      %v2562 = vpop.f32.mrb[0].mxu0
      %2563 = vdwg.mxu0
      %2564 = vmatprep.subr.mxu0 0.0
      %2565 = vmatpush1.msra.mxu0 %v2401
      %2566 = vmatprep.subr.mxu0 0.0
      %2567 = vmatpush1.msra.mxu0 %v2402
      %2568 = vmatprep.subr.mxu0 0.0
      %2569 = vmatpush1.msra.mxu0 %v2403
      %2570 = vmatprep.subr.mxu0 0.0
      %2571 = vmatpush1.msra.mxu0 %v2404
      %2572 = vmatprep.subr.mxu0 0.0
      %2573 = vmatpush1.msra.mxu0 %v2405
      %2574 = vmatprep.subr.mxu0 0.0
      %2575 = vmatpush1.msra.mxu0 %v2406
      %2576 = vmatprep.subr.mxu0 0.0
      %2577 = vmatpush1.msra.mxu0 %v2407
      %2578 = vmatprep.subr.mxu0 0.0
      %2579 = vmatpush1.msra.mxu0 %v2408
      %2580 = vmatprep.subr.mxu0 0.0
      %2581 = vmatpush1.msra.mxu0 %v2409
      %2582 = vmatprep.subr.mxu0 0.0
      %2583 = vmatpush1.msra.mxu0 %v2410
      %2584 = vmatprep.subr.mxu0 0.0
      %2585 = vmatpush1.msra.mxu0 %v2411
      %2586 = vmatprep.subr.mxu0 0.0
      %2587 = vmatpush1.msra.mxu0 %v2412
      %2588 = vmatprep.subr.mxu0 0.0
      %2589 = vmatpush1.msra.mxu0 %v2413
      %2590 = vmatprep.subr.mxu0 0.0
      %2591 = vmatpush1.msra.mxu0 %v2414
      %2592 = vmatprep.subr.mxu0 0.0
      %2593 = vmatpush1.msra.mxu0 %v2415
      %2594 = vmatprep.subr.mxu0 0.0
      %2595 = vmatpush1.msra.mxu0 %v2416
      %2596 = vmatprep.subr.mxu0 0.0
      %2597 = vmatpush1.msra.mxu0 0.0
      %2598 = vmatprep.subr.mxu0 0.0
      %2599 = vmatpush1.msra.mxu0 0.0
      %2600 = vmatprep.subr.mxu0 0.0
      %2601 = vmatpush1.msra.mxu0 0.0
      %2602 = vmatprep.subr.mxu0 0.0
      %2603 = vmatpush1.msra.mxu0 0.0
      %2604 = vmatprep.subr.mxu0 0.0
      %2605 = vmatpush1.msra.mxu0 0.0
      %2606 = vmatprep.subr.mxu0 0.0
      %2607 = vmatpush1.msra.mxu0 0.0
      %2608 = vmatprep.subr.mxu0 0.0
      %2609 = vmatpush1.msra.mxu0 0.0
      %2610 = vmatprep.subr.mxu0 0.0
      %2611 = vmatpush1.msra.mxu0 0.0
      %2612 = vmatprep.subr.mxu0 0.0
      %2613 = vmatpush1.msra.mxu0 0.0
      %2614 = vmatprep.subr.mxu0 0.0
      %2615 = vmatpush1.msra.mxu0 0.0
      %2616 = vmatprep.subr.mxu0 0.0
      %2617 = vmatpush1.msra.mxu0 0.0
      %2618 = vmatprep.subr.mxu0 0.0
      %2619 = vmatpush1.msra.mxu0 0.0
      %2620 = vmatprep.subr.mxu0 0.0
      %2621 = vmatpush1.msra.mxu0 0.0
      %2622 = vmatprep.subr.mxu0 0.0
      %2623 = vmatpush1.msra.mxu0 0.0
      %2624 = vmatprep.subr.mxu0 0.0
      %2625 = vmatpush1.msra.mxu0 0.0
      %2626 = vmatprep.subr.mxu0 0.0
      %2627 = vmatpush1.msra.mxu0 0.0
      %2628 = vmatprep.mubr.f32.mxu0 0.0
      %2629 = vmatmul.mubr.f32.gmra.mrb[0].mxu0 %v2336
      %v2630 = vpop.f32.mrb[0].mxu0
      %v2631 = vadd.f32 %v2561, %v2630
      %v2632 = vpop.f32.mrb[0].mxu0
      %2633 = vdwg.mxu0
      %v2634 = vmax.f32 %v2631, 0.0
      %v2635 = vld [vmem:[%s15] sm:$0xff]
      %v2636 = vld [vmem:[%s15 + $0x8] sm:$0xff]
      %v2637 = vld [vmem:[%s15 + $0x10] sm:$0xff]
      %v2638 = vld [vmem:[%s15 + $0x18] sm:$0xff]
      %v2639 = vld [vmem:[%s15 + $0x20] sm:$0xff]
      %v2640 = vld [vmem:[%s15 + $0x28] sm:$0xff]
      %v2641 = vld [vmem:[%s15 + $0x30] sm:$0xff]
      %v2642 = vld [vmem:[%s15 + $0x38] sm:$0xff]
      %v2643 = vld [vmem:[%s15 + $0x40] sm:$0xff]
      %v2644 = vld [vmem:[%s15 + $0x48] sm:$0xff]
      %v2645 = vld [vmem:[%s15 + $0x50] sm:$0xff]
      %v2646 = vld [vmem:[%s15 + $0x58] sm:$0xff]
      %v2647 = vld [vmem:[%s15 + $0x60] sm:$0xff]
      %v2648 = vld [vmem:[%s15 + $0x68] sm:$0xff]
      %v2649 = vld [vmem:[%s15 + $0x70] sm:$0xff]
      %v2650 = vld [vmem:[%s16] sm:$0x1]
      %v2652 = vlaneseq
      %v2653 = vshrl.u32 %v2652, 7
      %v2654 = vsub.s32 0, %v2653
      %v2655 = vrot.slane %v2650, %v2654
      %vm2657 = vcmask 982016
      %v2659 = vsel %vm2657, %v2634, 0
      %2661 = vmatprep.subr.mxu0 0.0
      %2662 = vmatpush1.msra.mxu0 %v2635
      %2663 = vmatprep.subr.mxu0 0.0
      %2664 = vmatpush1.msra.mxu0 %v2636
      %2665 = vmatprep.subr.mxu0 0.0
      %2666 = vmatpush1.msra.mxu0 %v2637
      %2667 = vmatprep.subr.mxu0 0.0
      %2668 = vmatpush1.msra.mxu0 %v2638
      %2669 = vmatprep.subr.mxu0 0.0
      %2670 = vmatpush1.msra.mxu0 %v2639
      %2671 = vmatprep.subr.mxu0 0.0
      %2672 = vmatpush1.msra.mxu0 %v2640
      %2673 = vmatprep.subr.mxu0 0.0
      %2674 = vmatpush1.msra.mxu0 %v2641
      %2675 = vmatprep.subr.mxu0 0.0
      %2676 = vmatpush1.msra.mxu0 %v2642
      %2677 = vmatprep.subr.mxu0 0.0
      %2678 = vmatpush1.msra.mxu0 %v2643
      %2679 = vmatprep.subr.mxu0 0.0
      %2680 = vmatpush1.msra.mxu0 %v2644
      %2681 = vmatprep.subr.mxu0 0.0
      %2682 = vmatpush1.msra.mxu0 %v2645
      %2683 = vmatprep.subr.mxu0 0.0
      %2684 = vmatpush1.msra.mxu0 %v2646
      %2685 = vmatprep.subr.mxu0 0.0
      %2686 = vmatpush1.msra.mxu0 %v2647
      %2687 = vmatprep.subr.mxu0 0.0
      %2688 = vmatpush1.msra.mxu0 %v2648
      %2689 = vmatprep.subr.mxu0 0.0
      %2690 = vmatpush1.msra.mxu0 %v2649
      %2691 = vmatprep.subr.mxu0 0.0
      %2692 = vmatpush1.msra.mxu0 0.0
      %2693 = vmatprep.subr.mxu0 0.0
      %2694 = vmatpush1.msra.mxu0 0.0
      %2695 = vmatprep.subr.mxu0 0.0
      %2696 = vmatpush1.msra.mxu0 0.0
      %2697 = vmatprep.subr.mxu0 0.0
      %2698 = vmatpush1.msra.mxu0 0.0
      %2699 = vmatprep.subr.mxu0 0.0
      %2700 = vmatpush1.msra.mxu0 0.0
      %2701 = vmatprep.subr.mxu0 0.0
      %2702 = vmatpush1.msra.mxu0 0.0
      %2703 = vmatprep.subr.mxu0 0.0
      %2704 = vmatpush1.msra.mxu0 0.0
      %2705 = vmatprep.subr.mxu0 0.0
      %2706 = vmatpush1.msra.mxu0 0.0
      %2707 = vmatprep.subr.mxu0 0.0
      %2708 = vmatpush1.msra.mxu0 0.0
      %2709 = vmatprep.subr.mxu0 0.0
      %2710 = vmatpush1.msra.mxu0 0.0
      %2711 = vmatprep.subr.mxu0 0.0
      %2712 = vmatpush1.msra.mxu0 0.0
      %2713 = vmatprep.subr.mxu0 0.0
      %2714 = vmatpush1.msra.mxu0 0.0
      %2715 = vmatprep.subr.mxu0 0.0
      %2716 = vmatpush1.msra.mxu0 0.0
      %2717 = vmatprep.subr.mxu0 0.0
      %2718 = vmatpush1.msra.mxu0 0.0
      %2719 = vmatprep.subr.mxu0 0.0
      %2720 = vmatpush1.msra.mxu0 0.0
      %2721 = vmatprep.subr.mxu0 0.0
      %2722 = vmatpush1.msra.mxu0 0.0
      %2723 = vmatprep.subr.mxu0 0.0
      %2724 = vmatpush1.msra.mxu0 0.0
      %2725 = vmatprep.mubr.f32.mxu0 0.0
      %2726 = vmatmul.mubr.f32.gmra.mrb[0].mxu0 %v2659
      %v2727 = vpop.f32.mrb[0].mxu0
      %v2728 = vadd.f32 %v2655, %v2727
      %v2729 = vpop.f32.mrb[0].mxu0
      %2730 = vdwg.mxu0
      %v2731 = vmax.f32 %v2728, 0.0
      %v2732 = vld [vmem:[%s17] sm:$0xff]
      %v2733 = vld [vmem:[%s17 + $0x8] sm:$0xff]
      %v2734 = vld [vmem:[%s17 + $0x10] sm:$0xff]
      %v2735 = vld [vmem:[%s17 + $0x18] sm:$0xff]
      %v2736 = vld [vmem:[%s17 + $0x20] sm:$0xff]
      %v2737 = vld [vmem:[%s17 + $0x28] sm:$0xff]
      %v2738 = vld [vmem:[%s17 + $0x30] sm:$0xff]
      %v2739 = vld [vmem:[%s17 + $0x38] sm:$0xff]
      %v2740 = vld [vmem:[%s17 + $0x40] sm:$0xff]
      %v2741 = vld [vmem:[%s17 + $0x48] sm:$0xff]
      %v2742 = vld [vmem:[%s17 + $0x50] sm:$0xf]
      %v2743 = vld [vmem:[%s18] sm:$0x1]
      %v2745 = vlaneseq
      %v2746 = vshrl.u32 %v2745, 7
      %v2747 = vsub.s32 0, %v2746
      %v2748 = vrot.slane %v2743, %v2747
      %vm2750 = vcmask 687104
      %v2752 = vsel %vm2750, %v2731, 0
      %vm2754 = vcmask 1043456
      %v2756 = vsel %vm2754, %v2742, 0
      %2758 = vmatprep.subr.mxu0 0.0
      %2759 = vmatpush1.msra.mxu0 %v2732
      %2760 = vmatprep.subr.mxu0 0.0
      %2761 = vmatpush1.msra.mxu0 %v2733
      %2762 = vmatprep.subr.mxu0 0.0
      %2763 = vmatpush1.msra.mxu0 %v2734
      %2764 = vmatprep.subr.mxu0 0.0
      %2765 = vmatpush1.msra.mxu0 %v2735
      %2766 = vmatprep.subr.mxu0 0.0
      %2767 = vmatpush1.msra.mxu0 %v2736
      %2768 = vmatprep.subr.mxu0 0.0
      %2769 = vmatpush1.msra.mxu0 %v2737
      %2770 = vmatprep.subr.mxu0 0.0
      %2771 = vmatpush1.msra.mxu0 %v2738
      %2772 = vmatprep.subr.mxu0 0.0
      %2773 = vmatpush1.msra.mxu0 %v2739
      %2774 = vmatprep.subr.mxu0 0.0
      %2775 = vmatpush1.msra.mxu0 %v2740
      %2776 = vmatprep.subr.mxu0 0.0
      %2777 = vmatpush1.msra.mxu0 %v2741
      %2778 = vmatprep.subr.mxu0 0.0
      %2779 = vmatpush1.msra.mxu0 %v2756
      %2780 = vmatprep.subr.mxu0 0.0
      %2781 = vmatpush1.msra.mxu0 0.0
      %2782 = vmatprep.subr.mxu0 0.0
      %2783 = vmatpush1.msra.mxu0 0.0
      %2784 = vmatprep.subr.mxu0 0.0
      %2785 = vmatpush1.msra.mxu0 0.0
      %2786 = vmatprep.subr.mxu0 0.0
      %2787 = vmatpush1.msra.mxu0 0.0
      %2788 = vmatprep.subr.mxu0 0.0
      %2789 = vmatpush1.msra.mxu0 0.0
      %2790 = vmatprep.subr.mxu0 0.0
      %2791 = vmatpush1.msra.mxu0 0.0
      %2792 = vmatprep.subr.mxu0 0.0
      %2793 = vmatpush1.msra.mxu0 0.0
      %2794 = vmatprep.subr.mxu0 0.0
      %2795 = vmatpush1.msra.mxu0 0.0
      %2796 = vmatprep.subr.mxu0 0.0
      %2797 = vmatpush1.msra.mxu0 0.0
      %2798 = vmatprep.subr.mxu0 0.0
      %2799 = vmatpush1.msra.mxu0 0.0
      %2800 = vmatprep.subr.mxu0 0.0
      %2801 = vmatpush1.msra.mxu0 0.0
      %2802 = vmatprep.subr.mxu0 0.0
      %2803 = vmatpush1.msra.mxu0 0.0
      %2804 = vmatprep.subr.mxu0 0.0
      %2805 = vmatpush1.msra.mxu0 0.0
      %2806 = vmatprep.subr.mxu0 0.0
      %2807 = vmatpush1.msra.mxu0 0.0
      %2808 = vmatprep.subr.mxu0 0.0
      %2809 = vmatpush1.msra.mxu0 0.0
      %2810 = vmatprep.subr.mxu0 0.0
      %2811 = vmatpush1.msra.mxu0 0.0
      %2812 = vmatprep.subr.mxu0 0.0
      %2813 = vmatpush1.msra.mxu0 0.0
      %2814 = vmatprep.subr.mxu0 0.0
      %2815 = vmatpush1.msra.mxu0 0.0
      %2816 = vmatprep.subr.mxu0 0.0
      %2817 = vmatpush1.msra.mxu0 0.0
      %2818 = vmatprep.subr.mxu0 0.0
      %2819 = vmatpush1.msra.mxu0 0.0
      %2820 = vmatprep.subr.mxu0 0.0
      %2821 = vmatpush1.msra.mxu0 0.0
      %2822 = vmatprep.mubr.f32.mxu0 0.0
      %2823 = vmatmul.mubr.f32.gmra.mrb[0].mxu0 %v2752
      %v2824 = vpop.f32.mrb[0].mxu0
      %v2825 = vadd.f32 %v2748, %v2824
      %v2826 = vpop.f32.mrb[0].mxu0
      %2827 = vdwg.mxu0
      %vm2828 = vcmask 80896
      %v2829 = vsel %vm2828, %v2825, -inf
      %2830 = vmax.xlane.f32.xlu0 %v2829
      %v2831 = vpop.xlane.xlu0 %2830
      %v2832 = vsub.f32 %v2825, %v2831
      %v2833 = vmul.f32 %v2832, 1.442695
      %v2834 = vpow.pop %v2833
      %v2835 = vsel %vm2828, %v2834, 0.0
      %2836 = vadd.xlane.f32.xlu0 %v2835
      %v2837 = vpop.xlane.xlu0 %2836
      %v2838 = vrcp.pop %v2837
      %v2839 = vmul.f32 %v2834, %v2838
      %2840 = vst.msk [vmem:[%s605] sm:$0xff] %vm2828, %v2839
      %p2841 = scmp.lt.s32.totalorder %s30, 2
      %s2842 = scalar_select %p2841, %s30, 2
      %s2843 = smul.addr %s2842, 8
      %s2844 = scalar_lea.vmem %s19, %s2843
      // Predicated region
      $region104: #{lenet_forward.1} parent=95 // pred_check
        %p2845 = pneg %p452
      $region105: #{lenet_forward.1} parent=95 // pred_check_branch
        %2847 = sbr.rel (%p2845) target = $region107
      $region106: #{lenet_forward.1} parent=95 // pred_region
        _
      $region107: #{lenet_forward.1} parent=95 // pred_fallthru
        _
    $region96: #{lenet_forward.1} parent=5 // pred_fallthru
      _
    %p2848 = scmp.le.s32.totalorder 2, %s25
    // Predicated region
    $region108: #{lenet_forward.1} parent=5 // pred_check
      %p2849 = pneg %p2848
    $region109: #{lenet_forward.1} parent=5 // pred_check_branch
      %2851 = sbr.rel (%p2849) target = $region111
    $region110: #{lenet_forward.1} parent=5 // pred_region
      %s2852 = ssub.s32 %s25, 2
      // Predicated region
      $region112: #{lenet_forward.1} parent=110 // pred_check
        %p2853 = pneg %p458
      $region113: #{lenet_forward.1} parent=110 // pred_check_branch
        %2855 = sbr.rel (%p2853) target = $region115
      $region114: #{lenet_forward.1} parent=110 // pred_region
        %p2856 = scmp.lt.s32.totalorder %s31, 2
        %s2857 = scalar_select %p2856, %s31, 2
        %s2858 = smul.addr %s2857, 8
        %s2859 = scalar_lea.vmem %s19, %s2858
      $region115: #{lenet_forward.1} parent=110 // pred_fallthru
        _
    $region111: #{lenet_forward.1} parent=5 // pred_fallthru
      _
  $region6: #{lenet_forward.1} parent=0 // loop_footer
    %s29 = sadd.s32 1, %s25
  $region7: #{lenet_forward.1} parent=0 // loop_footer_branch
    %24 = sbr.rel target = $region3
  $region8: #{lenet_forward.1} parent=0 // loop_exit
    _

</llo_original>
